<compile_context>
chip_gen: v6e
topology: v6e:2x2x1
jax: 0.10.0
libtpu: 0.0.40
codegen_flags: <defaults>
</compile_context>

<pallas_src>
import functools

import jax
import jax.numpy as jnp
import numpy as np
from jax.experimental import pallas as pl
from jax.experimental.pallas import tpu as pltpu

NPLANES = 3
RES_BLOCKS_DEEPEST_LAYER = 2
BATCH_NORM = False
RESIDUAL = True

ACT_DTYPE = jnp.bfloat16      # HBM activations + taps scratch + weights
TAPS_DTYPE = jnp.bfloat16
WEIGHT_DTYPE = jnp.bfloat16

VMEM_LIMIT_BYTES = 48 * 1024 * 1024    # explicit scoped-VMEM limit (< v7x 64 MiB phys)
BT_VMEM_BUDGET_BYTES = 24 * 1024 * 1024  # budget used when choosing B_t (headroom left)

# Off-centre 3x3 taps, in a fixed order shared by weight prep, mask prep, kernel.
OFF_TAPS = [(dy, dx) for dy in (-1, 0, 1) for dx in (-1, 0, 1) if not (dy == 0 and dx == 0)]
OFF_TAP_IDS = [(dy + 1) * 3 + (dx + 1) for dy, dx in OFF_TAPS]   # [0,1,2,3,5,6,7,8]


def _round_up(x, m):
    return (x + m - 1) // m * m


# ----------------------------- fused Pallas kernel ---------------------------

def _deepest_block_kernel(masks_ref, x_ref, wm_ref, wcc_ref, wcr_ref, ws_ref,
                          o_ref, feat_ref, taps_ref, res_ref,
                          *, h, w, bt, c_pad, n_convs):
    """Fused merger -> residual blocks -> splitter for B_t batch samples.

    masks_ref: [8, B_t*HW]            per-tap 0/1 edge masks (per-sample)
    x_ref:     [B_t, Cp_pad, HW]      input samples (channels on sublanes)
    wm_ref:    [Cpad, Cp_pad]         merger weight (zero-padded)
    wcc_ref:   [n_convs, Cpad, Cpad]  3x3 conv centre-tap weights
    wcr_ref:   [n_convs, Cpad, 8*Cpad] 3x3 conv off-centre weights, (tap, cin) cols
    ws_ref:    [Cp_pad, Cpad]         splitter weight (zero-padded)
    o_ref:     [B_t, Cp_pad, HW]      output samples
    feat_ref:  [Cpad, B_t*HW]  f32    resident lane-concatenated feature map
    taps_ref:  [8*Cpad, B_t*HW] bf16  in-kernel im2col buffer (off-centre taps)
    res_ref:   [Cpad, B_t*HW]  f32    residual spill (keeps vreg pressure low)
    """
    hw = h * w
    bhw = bt * hw
    f32 = jnp.float32
    bf = taps_ref.dtype

    # ---- merger: Conv3d [P,1,1] == per-sample channel matmul, results
    #      lane-concatenated into the resident feature map ----
    for b in range(bt):
        feat_ref[:, b * hw:(b + 1) * hw] = jnp.dot(
            wm_ref[...], x_ref[b], preferred_element_type=f32)

    def conv3x3(ci):
        f = feat_ref[...]
        # 8 off-centre taps: XLU roll of the whole lane-concatenated map, then a
        # single multiply by the precomputed (loop-invariant) per-sample edge mask.
        for j, (dy, dx) in enumerate(OFF_TAPS):
            shift = dy * w + dx                      # flattened-HW source offset
            tap = pltpu.roll(f, shift=(-shift) % bhw, axis=1)
            tap = tap * masks_ref[j:j + 1, :]
            taps_ref[j * c_pad:(j + 1) * c_pad, :] = tap.astype(bf)
        # Centre tap skips the taps_ref round-trip entirely.
        acc = jnp.dot(wcc_ref[ci], f.astype(bf), preferred_element_type=f32)
        acc = acc + jnp.dot(wcr_ref[ci], taps_ref[...], preferred_element_type=f32)
        return acc

    # ---- BlockSeries of ResidualBlocks: all activations stay in VMEM ----
    for blk in range(n_convs // 2):
        res_ref[...] = feat_ref[...]                                   # residual (f32)
        feat_ref[...] = jnp.maximum(conv3x3(2 * blk), 0.0)
        feat_ref[...] = jnp.maximum(conv3x3(2 * blk + 1) + res_ref[...], 0.0)

    # ---- splitter: ConvTranspose3d [P,1,1] == per-sample channel matmul ----
    for b in range(bt):
        o_ref[b] = jnp.dot(
            ws_ref[...], feat_ref[:, b * hw:(b + 1) * hw].astype(bf),
            preferred_element_type=f32).astype(o_ref.dtype)


# ------------------------------- JAX wrapper ---------------------------------

def _edge_masks(h, w, bt):
    """Per-tap 0/1 masks over the lane-concatenated [B_t*HW] axis (per-sample rows)."""
    col = np.tile(np.arange(w), h * bt)                       # lane % W
    row = np.tile(np.repeat(np.arange(h), w), bt)             # (lane // W) % H
    rows = []
    for dy, dx in OFF_TAPS:
        m = np.ones(bt * h * w, dtype=bool)
        if dy == -1:
            m &= (row >= 1)
        if dy == 1:
            m &= (row <= h - 2)
        if dx == -1:
            m &= (col >= 1)
        if dx == 1:
            m &= (col <= w - 2)
        rows.append(m)
    return jnp.asarray(np.stack(rows).astype(np.float32))     # [8, B_t*HW]


def _choose_bt(n, c_pad, cp_pad, hw):
    """Largest divisor of n whose VMEM footprint fits the (v7x-safe) budget."""
    per = hw * (c_pad * 4 * 2          # feat + residual scratch (f32)
                + 8 * c_pad * 2        # taps scratch (bf16)
                + 2 * cp_pad * 2       # double-buffered x block (bf16)
                + 2 * cp_pad * 4)      # double-buffered out block (f32)
    max_bt = max(1, BT_VMEM_BUDGET_BYTES // per)
    bt = 1
    for cand in range(1, n + 1):
        if n % cand == 0 and cand <= max_bt:
            bt = cand
    # NOTE: for large n on v7x, prefer a bt with (n // bt) % 2 == 0 so both
    # TensorCores get an even share of the "parallel" grid axis.
    return bt


def deepest_block_forward(x_ncphw, prepared):
    n, c_in, p, h, w = x_ncphw.shape
    hw = h * w
    cp_in = c_in * p
    wm, wcc, wcr, ws = prepared["wm"], prepared["wcc"], prepared["wcr"], prepared["ws"]
    c_pad = wm.shape[0]
    cp_pad = wm.shape[1]
    n_convs = wcc.shape[0]

    bt = _choose_bt(n, c_pad, cp_pad, hw)
    bhw = bt * hw
    grid = (n // bt,)

    # Channels-on-sublanes / HW-on-lanes; pad channel dim to cp_pad (sublane align).
    x2d = x_ncphw.reshape(n, cp_in, hw)
    if cp_pad > cp_in:
        x2d = jnp.pad(x2d, ((0, 0), (0, cp_pad - cp_in), (0, 0)))
    x2d = x2d.astype(ACT_DTYPE)

    masks = _edge_masks(h, w, bt)                              # [8, bhw] f32 constant

    kernel = functools.partial(_deepest_block_kernel, h=h, w=w, bt=bt,
                               c_pad=c_pad, n_convs=n_convs)

    flops = 2 * n * hw * (c_pad * cp_pad                       # merger
                          + n_convs * 9 * c_pad * c_pad        # 3x3 convs
                          + cp_pad * c_pad)                    # splitter
    bytes_accessed = (x2d.size * 2 + masks.size * 4
                      + (wm.size + wcc.size + wcr.size + ws.size) * 2
                      + n * cp_pad * hw * 4)

    out2d = pl.pallas_call(
        kernel,
        grid=grid,
        in_specs=[
            pl.BlockSpec((8, bhw), lambda g: (0, 0)),                    # edge masks
            pl.BlockSpec((bt, cp_pad, hw), lambda g: (g, 0, 0)),         # x
            pl.BlockSpec((c_pad, cp_pad), lambda g: (0, 0)),             # merger W
            pl.BlockSpec((n_convs, c_pad, c_pad), lambda g: (0, 0, 0)),  # conv centre W
            pl.BlockSpec((n_convs, c_pad, 8 * c_pad), lambda g: (0, 0, 0)),  # conv off W
            pl.BlockSpec((cp_pad, c_pad), lambda g: (0, 0)),             # splitter W
        ],
        out_specs=pl.BlockSpec((bt, cp_pad, hw), lambda g: (g, 0, 0)),
        out_shape=jax.ShapeDtypeStruct((n, cp_pad, hw), jnp.float32),
        scratch_shapes=[
            pltpu.VMEM((c_pad, bhw), jnp.float32),        # resident feature map
            pltpu.VMEM((8 * c_pad, bhw), TAPS_DTYPE),     # off-centre im2col taps
            pltpu.VMEM((c_pad, bhw), jnp.float32),        # residual spill
        ],
        compiler_params=pltpu.CompilerParams(
            dimension_semantics=("parallel",),
            vmem_limit_bytes=VMEM_LIMIT_BYTES),
        cost_estimate=pl.CostEstimate(flops=flops, transcendentals=0,
                                      bytes_accessed=int(bytes_accessed)),
    )(masks, x2d, wm, wcc, wcr, ws)

    return out2d[:, :cp_in, :].reshape(n, c_in, p, h, w)


# ----------------------- params: init + one-time layout prep -----------------

def init_params(key, c_in, p):
    c_big = p * c_in
    keys = jax.random.split(key, 2 + 2 * RES_BLOCKS_DEEPEST_LAYER)
    scale = 0.1
    # merger: Conv3d weight [C_big, C_in, P, 1, 1] -> stored squeezed [C_big, C_in, P]
    merger = scale * jax.random.normal(keys[0], (c_big, c_in, p), jnp.float32)
    # splitter: ConvTranspose3d weight [C_big(in), C_in(out), P, 1, 1] -> [C_big, C_in, P]
    splitter = scale * jax.random.normal(keys[1], (c_big, c_in, p), jnp.float32)
    blocks = []
    for i in range(RES_BLOCKS_DEEPEST_LAYER):
        # ResidualBlock convs: Conv3d kernel [1,3,3] -> stored squeezed [Co, Ci, 3, 3]
        w1 = scale * jax.random.normal(keys[2 + 2 * i], (c_big, c_big, 3, 3), jnp.float32)
        w2 = scale * jax.random.normal(keys[3 + 2 * i], (c_big, c_big, 3, 3), jnp.float32)
        blocks.append((w1, w2))
    return {"merger": merger, "splitter": splitter, "blocks": blocks}


def prepare_params(params):
    """One-time weight layout prep into the kernel's padded, (tap,cin)-major layout."""
    merger = params["merger"]        # [C_big, C_in, P]
    splitter = params["splitter"]    # [C_big, C_in, P]
    c_big, c_in, p = merger.shape
    cp_in = c_in * p
    c_pad = _round_up(c_big, 16)     # 16: keeps bf16 (16,128) sublane tiling aligned
    cp_pad = _round_up(cp_in, 16)

    # merger: out[o, hw] = sum_{c,p} W[o,c,p] * x[(c*P+p), hw]  -> [Cpad, Cp_pad]
    wm = jnp.pad(merger.reshape(c_big, cp_in),
                 ((0, c_pad - c_big), (0, cp_pad - cp_in)))

    # splitter (ConvTranspose3d): out[(c*P+p), hw] = sum_o W[o,c,p] * feat[o, hw]
    ws = jnp.pad(jnp.transpose(splitter, (1, 2, 0)).reshape(cp_in, c_big),
                 ((0, cp_pad - cp_in), (0, c_pad - c_big)))

    # 3x3 conv weights -> centre [Cpad, Cpad] + off-centre [Cpad, 8*Cpad]
    # off-centre column index = j*Cpad + cin with j following OFF_TAPS order.
    def conv_w(w_oihw):
        o, i, kh, kw = w_oihw.shape
        wt = jnp.transpose(w_oihw, (2, 3, 0, 1))                     # [3,3,O,I]
        wt = jnp.pad(wt, ((0, 0), (0, 0), (0, c_pad - o), (0, c_pad - i)))
        wt = wt.reshape(kh * kw, c_pad, c_pad)                       # [9, O, I]
        center = wt[4]
        off = wt[jnp.asarray(OFF_TAP_IDS)]                           # [8, O, I]
        off = jnp.transpose(off, (1, 0, 2)).reshape(c_pad, 8 * c_pad)
        return center, off

    centers, offs = [], []
    for w1, w2 in params["blocks"]:
        for wi in (w1, w2):
            c, o_ = conv_w(wi)
            centers.append(c)
            offs.append(o_)
    wcc = jnp.stack(centers)
    wcr = jnp.stack(offs)

    return {"wm": wm.astype(WEIGHT_DTYPE),
            "wcc": wcc.astype(WEIGHT_DTYPE),
            "wcr": wcr.astype(WEIGHT_DTYPE),
            "ws": ws.astype(WEIGHT_DTYPE)}


# ------------------------------ pure-JAX reference ---------------------------

def reference_forward(x_ncphw, params):
    z = jnp.einsum("ncphw,ocp->nohw", x_ncphw, params["merger"])
    for i in range(RES_BLOCKS_DEEPEST_LAYER):
        w1, w2 = params["blocks"][i]
        res = z
        o = jax.lax.conv_general_dilated(z, w1, (1, 1), ((1, 1), (1, 1)),
                                         dimension_numbers=("NCHW", "OIHW", "NCHW"))
        o = jnp.maximum(o, 0.0)
        o = jax.lax.conv_general_dilated(o, w2, (1, 1), ((1, 1), (1, 1)),
                                         dimension_numbers=("NCHW", "OIHW", "NCHW"))
        z = jnp.maximum(o + res, 0.0)
    return jnp.einsum("nchw,cop->nophw", z, params["splitter"])


if __name__ == "__main__":
    N, C_IN, H, W = 2, 4, 16, 16
    key = jax.random.PRNGKey(0)
    k_x, k_p = jax.random.split(key)
    x = jax.random.normal(k_x, (N, C_IN, NPLANES, H, W), jnp.float32)

    params = init_params(k_p, C_IN, NPLANES)
    prepared = prepare_params(params)            # hoisted one-time weight prep

    fwd = jax.jit(deepest_block_forward)
    out = jax.block_until_ready(fwd(x, prepared))
    assert out.shape == (N, C_IN, NPLANES, H, W)

    ref = reference_forward(x, params)
    np.testing.assert_allclose(np.asarray(out), np.asarray(ref), rtol=5e-2, atol=2e-2)

    print("KERNEL_OK")
</pallas_src>

<mosaic_0001>
module attributes {stable_mosaic.version = 11 : i64} {
  func.func @_deepest_block_kernel(%arg0: i32, %arg1: memref<8x512xf32, #tpu.memory_space<vmem>>, %arg2: memref<2x16x256xbf16, #tpu.memory_space<vmem>>, %arg3: memref<16x16xbf16, #tpu.memory_space<vmem>>, %arg4: memref<4x16x16xbf16, #tpu.memory_space<vmem>>, %arg5: memref<4x16x128xbf16, #tpu.memory_space<vmem>>, %arg6: memref<16x16xbf16, #tpu.memory_space<vmem>>, %arg7: memref<2x16x256xf32, #tpu.memory_space<vmem>>, %arg8: memref<16x512xf32, #tpu.memory_space<vmem>>, %arg9: memref<128x512xbf16, #tpu.memory_space<vmem>>, %arg10: memref<16x512xf32, #tpu.memory_space<vmem>>) attributes {dimension_semantics = [#tpu.dimension_semantics<parallel>], iteration_bounds = array<i64: 1>, scalar_prefetch = 0 : i64, scratch_operands = 3 : i64, tpu.core_type = #tpu.core_type<tc>, window_params = [{pipeline_mode = #tpu.pipeline_mode<synchronous>, transform_indices = @transform_0, window_bounds = array<i64: 8, 512>}, {transform_indices = @transform_1, window_bounds = array<i64: 2, 16, 256>}, {pipeline_mode = #tpu.pipeline_mode<synchronous>, transform_indices = @transform_2, window_bounds = array<i64: 16, 16>}, {pipeline_mode = #tpu.pipeline_mode<synchronous>, transform_indices = @transform_3, window_bounds = array<i64: 4, 16, 16>}, {pipeline_mode = #tpu.pipeline_mode<synchronous>, transform_indices = @transform_4, window_bounds = array<i64: 4, 16, 128>}, {pipeline_mode = #tpu.pipeline_mode<synchronous>, transform_indices = @transform_5, window_bounds = array<i64: 16, 16>}, {transform_indices = @transform_6, window_bounds = array<i64: 2, 16, 256>}]} {
    %c0 = arith.constant 0 : index
    %c0_0 = arith.constant 0 : index
    %0 = vector.load %arg3[%c0, %c0_0] : memref<16x16xbf16, #tpu.memory_space<vmem>>, vector<16x16xbf16>
    %c0_1 = arith.constant 0 : index
    %c0_2 = arith.constant 0 : index
    %c0_3 = arith.constant 0 : index
    %1 = vector.load %arg2[%c0_1, %c0_2, %c0_3] : memref<2x16x256xbf16, #tpu.memory_space<vmem>>, vector<1x16x256xbf16>
    %2 = vector.shape_cast %1 : vector<1x16x256xbf16> to vector<16x256xbf16>
    %cst = arith.constant dense<0.000000e+00> : vector<16x256xf32>
    %3 = tpu.matmul %0, %2, %cst {dimension_numbers = #tpu.dot_dimension_numbers<[1], [0], [0], [1], [0, 0, 1, 1], [], []>} : vector<16x16xbf16>, vector<16x256xbf16>, vector<16x256xf32> -> vector<16x256xf32>
    %c0_4 = arith.constant 0 : index
    %c0_5 = arith.constant 0 : index
    %4 = vector.load %arg8[%c0_4, %c0_5] : memref<16x512xf32, #tpu.memory_space<vmem>>, vector<16x256xf32>
    tpu.vector_store %arg8[%c0_4, %c0_5], %3 {strides = array<i32>} : memref<16x512xf32, #tpu.memory_space<vmem>>, vector<16x256xf32>,
    %c0_6 = arith.constant 0 : index
    %c0_7 = arith.constant 0 : index
    %5 = vector.load %arg3[%c0_6, %c0_7] : memref<16x16xbf16, #tpu.memory_space<vmem>>, vector<16x16xbf16>
    %c1 = arith.constant 1 : index
    %c0_8 = arith.constant 0 : index
    %c0_9 = arith.constant 0 : index
    %6 = vector.load %arg2[%c1, %c0_8, %c0_9] : memref<2x16x256xbf16, #tpu.memory_space<vmem>>, vector<1x16x256xbf16>
    %7 = vector.shape_cast %6 : vector<1x16x256xbf16> to vector<16x256xbf16>
    %cst_10 = arith.constant dense<0.000000e+00> : vector<16x256xf32>
    %8 = tpu.matmul %5, %7, %cst_10 {dimension_numbers = #tpu.dot_dimension_numbers<[1], [0], [0], [1], [0, 0, 1, 1], [], []>} : vector<16x16xbf16>, vector<16x256xbf16>, vector<16x256xf32> -> vector<16x256xf32>
    %c0_11 = arith.constant 0 : index
    %c256 = arith.constant 256 : index
    %9 = vector.load %arg8[%c0_11, %c256] : memref<16x512xf32, #tpu.memory_space<vmem>>, vector<16x256xf32>
    tpu.vector_store %arg8[%c0_11, %c256], %8 {strides = array<i32>} : memref<16x512xf32, #tpu.memory_space<vmem>>, vector<16x256xf32>,
    %c0_12 = arith.constant 0 : index
    %c0_13 = arith.constant 0 : index
    %10 = vector.load %arg8[%c0_12, %c0_13] : memref<16x512xf32, #tpu.memory_space<vmem>>, vector<16x512xf32>
    %c0_14 = arith.constant 0 : index
    %c0_15 = arith.constant 0 : index
    %11 = vector.load %arg10[%c0_14, %c0_15] : memref<16x512xf32, #tpu.memory_space<vmem>>, vector<16x512xf32>
    tpu.vector_store %arg10[%c0_14, %c0_15], %10 {strides = array<i32>} : memref<16x512xf32, #tpu.memory_space<vmem>>, vector<16x512xf32>,
    %c0_16 = arith.constant 0 : index
    %c0_17 = arith.constant 0 : index
    %12 = vector.load %arg8[%c0_16, %c0_17] : memref<16x512xf32, #tpu.memory_space<vmem>>, vector<16x512xf32>
    %c17_i32 = arith.constant 17 : i32
    %13 = tpu.dynamic_rotate %12 by %c17_i32 dim 1 : vector<16x512xf32>, i32 -> vector<16x512xf32>
    %c0_18 = arith.constant 0 : index
    %c0_19 = arith.constant 0 : index
    %14 = vector.load %arg1[%c0_18, %c0_19] : memref<8x512xf32, #tpu.memory_space<vmem>>, vector<1x512xf32>
    %15 = vector.broadcast %14 : vector<1x512xf32> to vector<16x512xf32>
    %16 = arith.mulf %13, %15 : vector<16x512xf32>
    %17 = arith.truncf %16 : vector<16x512xf32> to vector<16x512xbf16>
    %c0_20 = arith.constant 0 : index
    %c0_21 = arith.constant 0 : index
    %18 = vector.load %arg9[%c0_20, %c0_21] : memref<128x512xbf16, #tpu.memory_space<vmem>>, vector<16x512xbf16>
    tpu.vector_store %arg9[%c0_20, %c0_21], %17 {strides = array<i32>} : memref<128x512xbf16, #tpu.memory_space<vmem>>, vector<16x512xbf16>,
    %c16_i32 = arith.constant 16 : i32
    %19 = tpu.dynamic_rotate %12 by %c16_i32 dim 1 : vector<16x512xf32>, i32 -> vector<16x512xf32>
    %c1_22 = arith.constant 1 : index
    %c0_23 = arith.constant 0 : index
    %20 = vector.load %arg1[%c1_22, %c0_23] : memref<8x512xf32, #tpu.memory_space<vmem>>, vector<1x512xf32>
    %21 = vector.broadcast %20 : vector<1x512xf32> to vector<16x512xf32>
    %22 = arith.mulf %19, %21 : vector<16x512xf32>
    %23 = arith.truncf %22 : vector<16x512xf32> to vector<16x512xbf16>
    %c16 = arith.constant 16 : index
    %c0_24 = arith.constant 0 : index
    %24 = vector.load %arg9[%c16, %c0_24] : memref<128x512xbf16, #tpu.memory_space<vmem>>, vector<16x512xbf16>
    tpu.vector_store %arg9[%c16, %c0_24], %23 {strides = array<i32>} : memref<128x512xbf16, #tpu.memory_space<vmem>>, vector<16x512xbf16>,
    %c15_i32 = arith.constant 15 : i32
    %25 = tpu.dynamic_rotate %12 by %c15_i32 dim 1 : vector<16x512xf32>, i32 -> vector<16x512xf32>
    %c2 = arith.constant 2 : index
    %c0_25 = arith.constant 0 : index
    %26 = vector.load %arg1[%c2, %c0_25] : memref<8x512xf32, #tpu.memory_space<vmem>>, vector<1x512xf32>
    %27 = vector.broadcast %26 : vector<1x512xf32> to vector<16x512xf32>
    %28 = arith.mulf %25, %27 : vector<16x512xf32>
    %29 = arith.truncf %28 : vector<16x512xf32> to vector<16x512xbf16>
    %c32 = arith.constant 32 : index
    %c0_26 = arith.constant 0 : index
    %30 = vector.load %arg9[%c32, %c0_26] : memref<128x512xbf16, #tpu.memory_space<vmem>>, vector<16x512xbf16>
    tpu.vector_store %arg9[%c32, %c0_26], %29 {strides = array<i32>} : memref<128x512xbf16, #tpu.memory_space<vmem>>, vector<16x512xbf16>,
    %c1_i32 = arith.constant 1 : i32
    %31 = tpu.dynamic_rotate %12 by %c1_i32 dim 1 : vector<16x512xf32>, i32 -> vector<16x512xf32>
    %c3 = arith.constant 3 : index
    %c0_27 = arith.constant 0 : index
    %32 = vector.load %arg1[%c3, %c0_27] : memref<8x512xf32, #tpu.memory_space<vmem>>, vector<1x512xf32>
    %33 = vector.broadcast %32 : vector<1x512xf32> to vector<16x512xf32>
    %34 = arith.mulf %31, %33 : vector<16x512xf32>
    %35 = arith.truncf %34 : vector<16x512xf32> to vector<16x512xbf16>
    %c48 = arith.constant 48 : index
    %c0_28 = arith.constant 0 : index
    %36 = vector.load %arg9[%c48, %c0_28] : memref<128x512xbf16, #tpu.memory_space<vmem>>, vector<16x512xbf16>
    tpu.vector_store %arg9[%c48, %c0_28], %35 {strides = array<i32>} : memref<128x512xbf16, #tpu.memory_space<vmem>>, vector<16x512xbf16>,
    %c511_i32 = arith.constant 511 : i32
    %37 = tpu.dynamic_rotate %12 by %c511_i32 dim 1 : vector<16x512xf32>, i32 -> vector<16x512xf32>
    %c4 = arith.constant 4 : index
    %c0_29 = arith.constant 0 : index
    %38 = vector.load %arg1[%c4, %c0_29] : memref<8x512xf32, #tpu.memory_space<vmem>>, vector<1x512xf32>
    %39 = vector.broadcast %38 : vector<1x512xf32> to vector<16x512xf32>
    %40 = arith.mulf %37, %39 : vector<16x512xf32>
    %41 = arith.truncf %40 : vector<16x512xf32> to vector<16x512xbf16>
    %c64 = arith.constant 64 : index
    %c0_30 = arith.constant 0 : index
    %42 = vector.load %arg9[%c64, %c0_30] : memref<128x512xbf16, #tpu.memory_space<vmem>>, vector<16x512xbf16>
    tpu.vector_store %arg9[%c64, %c0_30], %41 {strides = array<i32>} : memref<128x512xbf16, #tpu.memory_space<vmem>>, vector<16x512xbf16>,
    %c497_i32 = arith.constant 497 : i32
    %43 = tpu.dynamic_rotate %12 by %c497_i32 dim 1 : vector<16x512xf32>, i32 -> vector<16x512xf32>
    %c5 = arith.constant 5 : index
    %c0_31 = arith.constant 0 : index
    %44 = vector.load %arg1[%c5, %c0_31] : memref<8x512xf32, #tpu.memory_space<vmem>>, vector<1x512xf32>
    %45 = vector.broadcast %44 : vector<1x512xf32> to vector<16x512xf32>
    %46 = arith.mulf %43, %45 : vector<16x512xf32>
    %47 = arith.truncf %46 : vector<16x512xf32> to vector<16x512xbf16>
    %c80 = arith.constant 80 : index
    %c0_32 = arith.constant 0 : index
    %48 = vector.load %arg9[%c80, %c0_32] : memref<128x512xbf16, #tpu.memory_space<vmem>>, vector<16x512xbf16>
    tpu.vector_store %arg9[%c80, %c0_32], %47 {strides = array<i32>} : memref<128x512xbf16, #tpu.memory_space<vmem>>, vector<16x512xbf16>,
    %c496_i32 = arith.constant 496 : i32
    %49 = tpu.dynamic_rotate %12 by %c496_i32 dim 1 : vector<16x512xf32>, i32 -> vector<16x512xf32>
    %c6 = arith.constant 6 : index
    %c0_33 = arith.constant 0 : index
    %50 = vector.load %arg1[%c6, %c0_33] : memref<8x512xf32, #tpu.memory_space<vmem>>, vector<1x512xf32>
    %51 = vector.broadcast %50 : vector<1x512xf32> to vector<16x512xf32>
    %52 = arith.mulf %49, %51 : vector<16x512xf32>
    %53 = arith.truncf %52 : vector<16x512xf32> to vector<16x512xbf16>
    %c96 = arith.constant 96 : index
    %c0_34 = arith.constant 0 : index
    %54 = vector.load %arg9[%c96, %c0_34] : memref<128x512xbf16, #tpu.memory_space<vmem>>, vector<16x512xbf16>
    tpu.vector_store %arg9[%c96, %c0_34], %53 {strides = array<i32>} : memref<128x512xbf16, #tpu.memory_space<vmem>>, vector<16x512xbf16>,
    %c495_i32 = arith.constant 495 : i32
    %55 = tpu.dynamic_rotate %12 by %c495_i32 dim 1 : vector<16x512xf32>, i32 -> vector<16x512xf32>
    %c7 = arith.constant 7 : index
    %c0_35 = arith.constant 0 : index
    %56 = vector.load %arg1[%c7, %c0_35] : memref<8x512xf32, #tpu.memory_space<vmem>>, vector<1x512xf32>
    %57 = vector.broadcast %56 : vector<1x512xf32> to vector<16x512xf32>
    %58 = arith.mulf %55, %57 : vector<16x512xf32>
    %59 = arith.truncf %58 : vector<16x512xf32> to vector<16x512xbf16>
    %c112 = arith.constant 112 : index
    %c0_36 = arith.constant 0 : index
    %60 = vector.load %arg9[%c112, %c0_36] : memref<128x512xbf16, #tpu.memory_space<vmem>>, vector<16x512xbf16>
    tpu.vector_store %arg9[%c112, %c0_36], %59 {strides = array<i32>} : memref<128x512xbf16, #tpu.memory_space<vmem>>, vector<16x512xbf16>,
    %c0_37 = arith.constant 0 : index
    %c0_38 = arith.constant 0 : index
    %c0_39 = arith.constant 0 : index
    %61 = vector.load %arg4[%c0_37, %c0_38, %c0_39] : memref<4x16x16xbf16, #tpu.memory_space<vmem>>, vector<1x16x16xbf16>
    %62 = vector.shape_cast %61 : vector<1x16x16xbf16> to vector<16x16xbf16>
    %63 = arith.truncf %12 : vector<16x512xf32> to vector<16x512xbf16>
    %cst_40 = arith.constant dense<0.000000e+00> : vector<16x512xf32>
    %64 = tpu.matmul %62, %63, %cst_40 {dimension_numbers = #tpu.dot_dimension_numbers<[1], [0], [0], [1], [0, 0, 1, 1], [], []>} : vector<16x16xbf16>, vector<16x512xbf16>, vector<16x512xf32> -> vector<16x512xf32>
    %c0_41 = arith.constant 0 : index
    %c0_42 = arith.constant 0 : index
    %c0_43 = arith.constant 0 : index
    %65 = vector.load %arg5[%c0_41, %c0_42, %c0_43] : memref<4x16x128xbf16, #tpu.memory_space<vmem>>, vector<1x16x128xbf16>
    %66 = vector.shape_cast %65 : vector<1x16x128xbf16> to vector<16x128xbf16>
    %c0_44 = arith.constant 0 : index
    %c0_45 = arith.constant 0 : index
    %67 = vector.load %arg9[%c0_44, %c0_45] : memref<128x512xbf16, #tpu.memory_space<vmem>>, vector<128x512xbf16>
    %cst_46 = arith.constant dense<0.000000e+00> : vector<16x512xf32>
    %68 = tpu.matmul %66, %67, %cst_46 {dimension_numbers = #tpu.dot_dimension_numbers<[1], [0], [0], [1], [0, 0, 1, 1], [], []>} : vector<16x128xbf16>, vector<128x512xbf16>, vector<16x512xf32> -> vector<16x512xf32>
    %69 = arith.addf %64, %68 : vector<16x512xf32>
    %cst_47 = arith.constant 0.000000e+00 : f32
    %70 = vector.broadcast %cst_47 : f32 to vector<16x512xf32>
    %71 = arith.maximumf %69, %70 : vector<16x512xf32>
    %c0_48 = arith.constant 0 : index
    %c0_49 = arith.constant 0 : index
    %72 = vector.load %arg8[%c0_48, %c0_49] : memref<16x512xf32, #tpu.memory_space<vmem>>, vector<16x512xf32>
    tpu.vector_store %arg8[%c0_48, %c0_49], %71 {strides = array<i32>} : memref<16x512xf32, #tpu.memory_space<vmem>>, vector<16x512xf32>,
    %c0_50 = arith.constant 0 : index
    %c0_51 = arith.constant 0 : index
    %73 = vector.load %arg8[%c0_50, %c0_51] : memref<16x512xf32, #tpu.memory_space<vmem>>, vector<16x512xf32>
    %c17_i32_52 = arith.constant 17 : i32
    %74 = tpu.dynamic_rotate %73 by %c17_i32_52 dim 1 : vector<16x512xf32>, i32 -> vector<16x512xf32>
    %c0_53 = arith.constant 0 : index
    %c0_54 = arith.constant 0 : index
    %75 = vector.load %arg1[%c0_53, %c0_54] : memref<8x512xf32, #tpu.memory_space<vmem>>, vector<1x512xf32>
    %76 = vector.broadcast %75 : vector<1x512xf32> to vector<16x512xf32>
    %77 = arith.mulf %74, %76 : vector<16x512xf32>
    %78 = arith.truncf %77 : vector<16x512xf32> to vector<16x512xbf16>
    %c0_55 = arith.constant 0 : index
    %c0_56 = arith.constant 0 : index
    %79 = vector.load %arg9[%c0_55, %c0_56] : memref<128x512xbf16, #tpu.memory_space<vmem>>, vector<16x512xbf16>
    tpu.vector_store %arg9[%c0_55, %c0_56], %78 {strides = array<i32>} : memref<128x512xbf16, #tpu.memory_space<vmem>>, vector<16x512xbf16>,
    %c16_i32_57 = arith.constant 16 : i32
    %80 = tpu.dynamic_rotate %73 by %c16_i32_57 dim 1 : vector<16x512xf32>, i32 -> vector<16x512xf32>
    %c1_58 = arith.constant 1 : index
    %c0_59 = arith.constant 0 : index
    %81 = vector.load %arg1[%c1_58, %c0_59] : memref<8x512xf32, #tpu.memory_space<vmem>>, vector<1x512xf32>
    %82 = vector.broadcast %81 : vector<1x512xf32> to vector<16x512xf32>
    %83 = arith.mulf %80, %82 : vector<16x512xf32>
    %84 = arith.truncf %83 : vector<16x512xf32> to vector<16x512xbf16>
    %c16_60 = arith.constant 16 : index
    %c0_61 = arith.constant 0 : index
    %85 = vector.load %arg9[%c16_60, %c0_61] : memref<128x512xbf16, #tpu.memory_space<vmem>>, vector<16x512xbf16>
    tpu.vector_store %arg9[%c16_60, %c0_61], %84 {strides = array<i32>} : memref<128x512xbf16, #tpu.memory_space<vmem>>, vector<16x512xbf16>,
    %c15_i32_62 = arith.constant 15 : i32
    %86 = tpu.dynamic_rotate %73 by %c15_i32_62 dim 1 : vector<16x512xf32>, i32 -> vector<16x512xf32>
    %c2_63 = arith.constant 2 : index
    %c0_64 = arith.constant 0 : index
    %87 = vector.load %arg1[%c2_63, %c0_64] : memref<8x512xf32, #tpu.memory_space<vmem>>, vector<1x512xf32>
    %88 = vector.broadcast %87 : vector<1x512xf32> to vector<16x512xf32>
    %89 = arith.mulf %86, %88 : vector<16x512xf32>
    %90 = arith.truncf %89 : vector<16x512xf32> to vector<16x512xbf16>
    %c32_65 = arith.constant 32 : index
    %c0_66 = arith.constant 0 : index
    %91 = vector.load %arg9[%c32_65, %c0_66] : memref<128x512xbf16, #tpu.memory_space<vmem>>, vector<16x512xbf16>
    tpu.vector_store %arg9[%c32_65, %c0_66], %90 {strides = array<i32>} : memref<128x512xbf16, #tpu.memory_space<vmem>>, vector<16x512xbf16>,
    %c1_i32_67 = arith.constant 1 : i32
    %92 = tpu.dynamic_rotate %73 by %c1_i32_67 dim 1 : vector<16x512xf32>, i32 -> vector<16x512xf32>
    %c3_68 = arith.constant 3 : index
    %c0_69 = arith.constant 0 : index
    %93 = vector.load %arg1[%c3_68, %c0_69] : memref<8x512xf32, #tpu.memory_space<vmem>>, vector<1x512xf32>
    %94 = vector.broadcast %93 : vector<1x512xf32> to vector<16x512xf32>
    %95 = arith.mulf %92, %94 : vector<16x512xf32>
    %96 = arith.truncf %95 : vector<16x512xf32> to vector<16x512xbf16>
    %c48_70 = arith.constant 48 : index
    %c0_71 = arith.constant 0 : index
    %97 = vector.load %arg9[%c48_70, %c0_71] : memref<128x512xbf16, #tpu.memory_space<vmem>>, vector<16x512xbf16>
    tpu.vector_store %arg9[%c48_70, %c0_71], %96 {strides = array<i32>} : memref<128x512xbf16, #tpu.memory_space<vmem>>, vector<16x512xbf16>,
    %c511_i32_72 = arith.constant 511 : i32
    %98 = tpu.dynamic_rotate %73 by %c511_i32_72 dim 1 : vector<16x512xf32>, i32 -> vector<16x512xf32>
    %c4_73 = arith.constant 4 : index
    %c0_74 = arith.constant 0 : index
    %99 = vector.load %arg1[%c4_73, %c0_74] : memref<8x512xf32, #tpu.memory_space<vmem>>, vector<1x512xf32>
    %100 = vector.broadcast %99 : vector<1x512xf32> to vector<16x512xf32>
    %101 = arith.mulf %98, %100 : vector<16x512xf32>
    %102 = arith.truncf %101 : vector<16x512xf32> to vector<16x512xbf16>
    %c64_75 = arith.constant 64 : index
    %c0_76 = arith.constant 0 : index
    %103 = vector.load %arg9[%c64_75, %c0_76] : memref<128x512xbf16, #tpu.memory_space<vmem>>, vector<16x512xbf16>
    tpu.vector_store %arg9[%c64_75, %c0_76], %102 {strides = array<i32>} : memref<128x512xbf16, #tpu.memory_space<vmem>>, vector<16x512xbf16>,
    %c497_i32_77 = arith.constant 497 : i32
    %104 = tpu.dynamic_rotate %73 by %c497_i32_77 dim 1 : vector<16x512xf32>, i32 -> vector<16x512xf32>
    %c5_78 = arith.constant 5 : index
    %c0_79 = arith.constant 0 : index
    %105 = vector.load %arg1[%c5_78, %c0_79] : memref<8x512xf32, #tpu.memory_space<vmem>>, vector<1x512xf32>
    %106 = vector.broadcast %105 : vector<1x512xf32> to vector<16x512xf32>
    %107 = arith.mulf %104, %106 : vector<16x512xf32>
    %108 = arith.truncf %107 : vector<16x512xf32> to vector<16x512xbf16>
    %c80_80 = arith.constant 80 : index
    %c0_81 = arith.constant 0 : index
    %109 = vector.load %arg9[%c80_80, %c0_81] : memref<128x512xbf16, #tpu.memory_space<vmem>>, vector<16x512xbf16>
    tpu.vector_store %arg9[%c80_80, %c0_81], %108 {strides = array<i32>} : memref<128x512xbf16, #tpu.memory_space<vmem>>, vector<16x512xbf16>,
    %c496_i32_82 = arith.constant 496 : i32
    %110 = tpu.dynamic_rotate %73 by %c496_i32_82 dim 1 : vector<16x512xf32>, i32 -> vector<16x512xf32>
    %c6_83 = arith.constant 6 : index
    %c0_84 = arith.constant 0 : index
    %111 = vector.load %arg1[%c6_83, %c0_84] : memref<8x512xf32, #tpu.memory_space<vmem>>, vector<1x512xf32>
    %112 = vector.broadcast %111 : vector<1x512xf32> to vector<16x512xf32>
    %113 = arith.mulf %110, %112 : vector<16x512xf32>
    %114 = arith.truncf %113 : vector<16x512xf32> to vector<16x512xbf16>
    %c96_85 = arith.constant 96 : index
    %c0_86 = arith.constant 0 : index
    %115 = vector.load %arg9[%c96_85, %c0_86] : memref<128x512xbf16, #tpu.memory_space<vmem>>, vector<16x512xbf16>
    tpu.vector_store %arg9[%c96_85, %c0_86], %114 {strides = array<i32>} : memref<128x512xbf16, #tpu.memory_space<vmem>>, vector<16x512xbf16>,
    %c495_i32_87 = arith.constant 495 : i32
    %116 = tpu.dynamic_rotate %73 by %c495_i32_87 dim 1 : vector<16x512xf32>, i32 -> vector<16x512xf32>
    %c7_88 = arith.constant 7 : index
    %c0_89 = arith.constant 0 : index
    %117 = vector.load %arg1[%c7_88, %c0_89] : memref<8x512xf32, #tpu.memory_space<vmem>>, vector<1x512xf32>
    %118 = vector.broadcast %117 : vector<1x512xf32> to vector<16x512xf32>
    %119 = arith.mulf %116, %118 : vector<16x512xf32>
    %120 = arith.truncf %119 : vector<16x512xf32> to vector<16x512xbf16>
    %c112_90 = arith.constant 112 : index
    %c0_91 = arith.constant 0 : index
    %121 = vector.load %arg9[%c112_90, %c0_91] : memref<128x512xbf16, #tpu.memory_space<vmem>>, vector<16x512xbf16>
    tpu.vector_store %arg9[%c112_90, %c0_91], %120 {strides = array<i32>} : memref<128x512xbf16, #tpu.memory_space<vmem>>, vector<16x512xbf16>,
    %c1_92 = arith.constant 1 : index
    %c0_93 = arith.constant 0 : index
    %c0_94 = arith.constant 0 : index
    %122 = vector.load %arg4[%c1_92, %c0_93, %c0_94] : memref<4x16x16xbf16, #tpu.memory_space<vmem>>, vector<1x16x16xbf16>
    %123 = vector.shape_cast %122 : vector<1x16x16xbf16> to vector<16x16xbf16>
    %124 = arith.truncf %73 : vector<16x512xf32> to vector<16x512xbf16>
    %cst_95 = arith.constant dense<0.000000e+00> : vector<16x512xf32>
    %125 = tpu.matmul %123, %124, %cst_95 {dimension_numbers = #tpu.dot_dimension_numbers<[1], [0], [0], [1], [0, 0, 1, 1], [], []>} : vector<16x16xbf16>, vector<16x512xbf16>, vector<16x512xf32> -> vector<16x512xf32>
    %c1_96 = arith.constant 1 : index
    %c0_97 = arith.constant 0 : index
    %c0_98 = arith.constant 0 : index
    %126 = vector.load %arg5[%c1_96, %c0_97, %c0_98] : memref<4x16x128xbf16, #tpu.memory_space<vmem>>, vector<1x16x128xbf16>
    %127 = vector.shape_cast %126 : vector<1x16x128xbf16> to vector<16x128xbf16>
    %c0_99 = arith.constant 0 : index
    %c0_100 = arith.constant 0 : index
    %128 = vector.load %arg9[%c0_99, %c0_100] : memref<128x512xbf16, #tpu.memory_space<vmem>>, vector<128x512xbf16>
    %cst_101 = arith.constant dense<0.000000e+00> : vector<16x512xf32>
    %129 = tpu.matmul %127, %128, %cst_101 {dimension_numbers = #tpu.dot_dimension_numbers<[1], [0], [0], [1], [0, 0, 1, 1], [], []>} : vector<16x128xbf16>, vector<128x512xbf16>, vector<16x512xf32> -> vector<16x512xf32>
    %130 = arith.addf %125, %129 : vector<16x512xf32>
    %c0_102 = arith.constant 0 : index
    %c0_103 = arith.constant 0 : index
    %131 = vector.load %arg10[%c0_102, %c0_103] : memref<16x512xf32, #tpu.memory_space<vmem>>, vector<16x512xf32>
    %132 = arith.addf %130, %131 : vector<16x512xf32>
    %cst_104 = arith.constant 0.000000e+00 : f32
    %133 = vector.broadcast %cst_104 : f32 to vector<16x512xf32>
    %134 = arith.maximumf %132, %133 : vector<16x512xf32>
    %c0_105 = arith.constant 0 : index
    %c0_106 = arith.constant 0 : index
    %135 = vector.load %arg8[%c0_105, %c0_106] : memref<16x512xf32, #tpu.memory_space<vmem>>, vector<16x512xf32>
    tpu.vector_store %arg8[%c0_105, %c0_106], %134 {strides = array<i32>} : memref<16x512xf32, #tpu.memory_space<vmem>>, vector<16x512xf32>,
    %c0_107 = arith.constant 0 : index
    %c0_108 = arith.constant 0 : index
    %136 = vector.load %arg8[%c0_107, %c0_108] : memref<16x512xf32, #tpu.memory_space<vmem>>, vector<16x512xf32>
    %c0_109 = arith.constant 0 : index
    %c0_110 = arith.constant 0 : index
    %137 = vector.load %arg10[%c0_109, %c0_110] : memref<16x512xf32, #tpu.memory_space<vmem>>, vector<16x512xf32>
    tpu.vector_store %arg10[%c0_109, %c0_110], %136 {strides = array<i32>} : memref<16x512xf32, #tpu.memory_space<vmem>>, vector<16x512xf32>,
    %c0_111 = arith.constant 0 : index
    %c0_112 = arith.constant 0 : index
    %138 = vector.load %arg8[%c0_111, %c0_112] : memref<16x512xf32, #tpu.memory_space<vmem>>, vector<16x512xf32>
    %c17_i32_113 = arith.constant 17 : i32
    %139 = tpu.dynamic_rotate %138 by %c17_i32_113 dim 1 : vector<16x512xf32>, i32 -> vector<16x512xf32>
    %c0_114 = arith.constant 0 : index
    %c0_115 = arith.constant 0 : index
    %140 = vector.load %arg1[%c0_114, %c0_115] : memref<8x512xf32, #tpu.memory_space<vmem>>, vector<1x512xf32>
    %141 = vector.broadcast %140 : vector<1x512xf32> to vector<16x512xf32>
    %142 = arith.mulf %139, %141 : vector<16x512xf32>
    %143 = arith.truncf %142 : vector<16x512xf32> to vector<16x512xbf16>
    %c0_116 = arith.constant 0 : index
    %c0_117 = arith.constant 0 : index
    %144 = vector.load %arg9[%c0_116, %c0_117] : memref<128x512xbf16, #tpu.memory_space<vmem>>, vector<16x512xbf16>
    tpu.vector_store %arg9[%c0_116, %c0_117], %143 {strides = array<i32>} : memref<128x512xbf16, #tpu.memory_space<vmem>>, vector<16x512xbf16>,
    %c16_i32_118 = arith.constant 16 : i32
    %145 = tpu.dynamic_rotate %138 by %c16_i32_118 dim 1 : vector<16x512xf32>, i32 -> vector<16x512xf32>
    %c1_119 = arith.constant 1 : index
    %c0_120 = arith.constant 0 : index
    %146 = vector.load %arg1[%c1_119, %c0_120] : memref<8x512xf32, #tpu.memory_space<vmem>>, vector<1x512xf32>
    %147 = vector.broadcast %146 : vector<1x512xf32> to vector<16x512xf32>
    %148 = arith.mulf %145, %147 : vector<16x512xf32>
    %149 = arith.truncf %148 : vector<16x512xf32> to vector<16x512xbf16>
    %c16_121 = arith.constant 16 : index
    %c0_122 = arith.constant 0 : index
    %150 = vector.load %arg9[%c16_121, %c0_122] : memref<128x512xbf16, #tpu.memory_space<vmem>>, vector<16x512xbf16>
    tpu.vector_store %arg9[%c16_121, %c0_122], %149 {strides = array<i32>} : memref<128x512xbf16, #tpu.memory_space<vmem>>, vector<16x512xbf16>,
    %c15_i32_123 = arith.constant 15 : i32
    %151 = tpu.dynamic_rotate %138 by %c15_i32_123 dim 1 : vector<16x512xf32>, i32 -> vector<16x512xf32>
    %c2_124 = arith.constant 2 : index
    %c0_125 = arith.constant 0 : index
    %152 = vector.load %arg1[%c2_124, %c0_125] : memref<8x512xf32, #tpu.memory_space<vmem>>, vector<1x512xf32>
    %153 = vector.broadcast %152 : vector<1x512xf32> to vector<16x512xf32>
    %154 = arith.mulf %151, %153 : vector<16x512xf32>
    %155 = arith.truncf %154 : vector<16x512xf32> to vector<16x512xbf16>
    %c32_126 = arith.constant 32 : index
    %c0_127 = arith.constant 0 : index
    %156 = vector.load %arg9[%c32_126, %c0_127] : memref<128x512xbf16, #tpu.memory_space<vmem>>, vector<16x512xbf16>
    tpu.vector_store %arg9[%c32_126, %c0_127], %155 {strides = array<i32>} : memref<128x512xbf16, #tpu.memory_space<vmem>>, vector<16x512xbf16>,
    %c1_i32_128 = arith.constant 1 : i32
    %157 = tpu.dynamic_rotate %138 by %c1_i32_128 dim 1 : vector<16x512xf32>, i32 -> vector<16x512xf32>
    %c3_129 = arith.constant 3 : index
    %c0_130 = arith.constant 0 : index
    %158 = vector.load %arg1[%c3_129, %c0_130] : memref<8x512xf32, #tpu.memory_space<vmem>>, vector<1x512xf32>
    %159 = vector.broadcast %158 : vector<1x512xf32> to vector<16x512xf32>
    %160 = arith.mulf %157, %159 : vector<16x512xf32>
    %161 = arith.truncf %160 : vector<16x512xf32> to vector<16x512xbf16>
    %c48_131 = arith.constant 48 : index
    %c0_132 = arith.constant 0 : index
    %162 = vector.load %arg9[%c48_131, %c0_132] : memref<128x512xbf16, #tpu.memory_space<vmem>>, vector<16x512xbf16>
    tpu.vector_store %arg9[%c48_131, %c0_132], %161 {strides = array<i32>} : memref<128x512xbf16, #tpu.memory_space<vmem>>, vector<16x512xbf16>,
    %c511_i32_133 = arith.constant 511 : i32
    %163 = tpu.dynamic_rotate %138 by %c511_i32_133 dim 1 : vector<16x512xf32>, i32 -> vector<16x512xf32>
    %c4_134 = arith.constant 4 : index
    %c0_135 = arith.constant 0 : index
    %164 = vector.load %arg1[%c4_134, %c0_135] : memref<8x512xf32, #tpu.memory_space<vmem>>, vector<1x512xf32>
    %165 = vector.broadcast %164 : vector<1x512xf32> to vector<16x512xf32>
    %166 = arith.mulf %163, %165 : vector<16x512xf32>
    %167 = arith.truncf %166 : vector<16x512xf32> to vector<16x512xbf16>
    %c64_136 = arith.constant 64 : index
    %c0_137 = arith.constant 0 : index
    %168 = vector.load %arg9[%c64_136, %c0_137] : memref<128x512xbf16, #tpu.memory_space<vmem>>, vector<16x512xbf16>
    tpu.vector_store %arg9[%c64_136, %c0_137], %167 {strides = array<i32>} : memref<128x512xbf16, #tpu.memory_space<vmem>>, vector<16x512xbf16>,
    %c497_i32_138 = arith.constant 497 : i32
    %169 = tpu.dynamic_rotate %138 by %c497_i32_138 dim 1 : vector<16x512xf32>, i32 -> vector<16x512xf32>
    %c5_139 = arith.constant 5 : index
    %c0_140 = arith.constant 0 : index
    %170 = vector.load %arg1[%c5_139, %c0_140] : memref<8x512xf32, #tpu.memory_space<vmem>>, vector<1x512xf32>
    %171 = vector.broadcast %170 : vector<1x512xf32> to vector<16x512xf32>
    %172 = arith.mulf %169, %171 : vector<16x512xf32>
    %173 = arith.truncf %172 : vector<16x512xf32> to vector<16x512xbf16>
    %c80_141 = arith.constant 80 : index
    %c0_142 = arith.constant 0 : index
    %174 = vector.load %arg9[%c80_141, %c0_142] : memref<128x512xbf16, #tpu.memory_space<vmem>>, vector<16x512xbf16>
    tpu.vector_store %arg9[%c80_141, %c0_142], %173 {strides = array<i32>} : memref<128x512xbf16, #tpu.memory_space<vmem>>, vector<16x512xbf16>,
    %c496_i32_143 = arith.constant 496 : i32
    %175 = tpu.dynamic_rotate %138 by %c496_i32_143 dim 1 : vector<16x512xf32>, i32 -> vector<16x512xf32>
    %c6_144 = arith.constant 6 : index
    %c0_145 = arith.constant 0 : index
    %176 = vector.load %arg1[%c6_144, %c0_145] : memref<8x512xf32, #tpu.memory_space<vmem>>, vector<1x512xf32>
    %177 = vector.broadcast %176 : vector<1x512xf32> to vector<16x512xf32>
    %178 = arith.mulf %175, %177 : vector<16x512xf32>
    %179 = arith.truncf %178 : vector<16x512xf32> to vector<16x512xbf16>
    %c96_146 = arith.constant 96 : index
    %c0_147 = arith.constant 0 : index
    %180 = vector.load %arg9[%c96_146, %c0_147] : memref<128x512xbf16, #tpu.memory_space<vmem>>, vector<16x512xbf16>
    tpu.vector_store %arg9[%c96_146, %c0_147], %179 {strides = array<i32>} : memref<128x512xbf16, #tpu.memory_space<vmem>>, vector<16x512xbf16>,
    %c495_i32_148 = arith.constant 495 : i32
    %181 = tpu.dynamic_rotate %138 by %c495_i32_148 dim 1 : vector<16x512xf32>, i32 -> vector<16x512xf32>
    %c7_149 = arith.constant 7 : index
    %c0_150 = arith.constant 0 : index
    %182 = vector.load %arg1[%c7_149, %c0_150] : memref<8x512xf32, #tpu.memory_space<vmem>>, vector<1x512xf32>
    %183 = vector.broadcast %182 : vector<1x512xf32> to vector<16x512xf32>
    %184 = arith.mulf %181, %183 : vector<16x512xf32>
    %185 = arith.truncf %184 : vector<16x512xf32> to vector<16x512xbf16>
    %c112_151 = arith.constant 112 : index
    %c0_152 = arith.constant 0 : index
    %186 = vector.load %arg9[%c112_151, %c0_152] : memref<128x512xbf16, #tpu.memory_space<vmem>>, vector<16x512xbf16>
    tpu.vector_store %arg9[%c112_151, %c0_152], %185 {strides = array<i32>} : memref<128x512xbf16, #tpu.memory_space<vmem>>, vector<16x512xbf16>,
    %c2_153 = arith.constant 2 : index
    %c0_154 = arith.constant 0 : index
    %c0_155 = arith.constant 0 : index
    %187 = vector.load %arg4[%c2_153, %c0_154, %c0_155] : memref<4x16x16xbf16, #tpu.memory_space<vmem>>, vector<1x16x16xbf16>
    %188 = vector.shape_cast %187 : vector<1x16x16xbf16> to vector<16x16xbf16>
    %189 = arith.truncf %138 : vector<16x512xf32> to vector<16x512xbf16>
    %cst_156 = arith.constant dense<0.000000e+00> : vector<16x512xf32>
    %190 = tpu.matmul %188, %189, %cst_156 {dimension_numbers = #tpu.dot_dimension_numbers<[1], [0], [0], [1], [0, 0, 1, 1], [], []>} : vector<16x16xbf16>, vector<16x512xbf16>, vector<16x512xf32> -> vector<16x512xf32>
    %c2_157 = arith.constant 2 : index
    %c0_158 = arith.constant 0 : index
    %c0_159 = arith.constant 0 : index
    %191 = vector.load %arg5[%c2_157, %c0_158, %c0_159] : memref<4x16x128xbf16, #tpu.memory_space<vmem>>, vector<1x16x128xbf16>
    %192 = vector.shape_cast %191 : vector<1x16x128xbf16> to vector<16x128xbf16>
    %c0_160 = arith.constant 0 : index
    %c0_161 = arith.constant 0 : index
    %193 = vector.load %arg9[%c0_160, %c0_161] : memref<128x512xbf16, #tpu.memory_space<vmem>>, vector<128x512xbf16>
    %cst_162 = arith.constant dense<0.000000e+00> : vector<16x512xf32>
    %194 = tpu.matmul %192, %193, %cst_162 {dimension_numbers = #tpu.dot_dimension_numbers<[1], [0], [0], [1], [0, 0, 1, 1], [], []>} : vector<16x128xbf16>, vector<128x512xbf16>, vector<16x512xf32> -> vector<16x512xf32>
    %195 = arith.addf %190, %194 : vector<16x512xf32>
    %cst_163 = arith.constant 0.000000e+00 : f32
    %196 = vector.broadcast %cst_163 : f32 to vector<16x512xf32>
    %197 = arith.maximumf %195, %196 : vector<16x512xf32>
    %c0_164 = arith.constant 0 : index
    %c0_165 = arith.constant 0 : index
    %198 = vector.load %arg8[%c0_164, %c0_165] : memref<16x512xf32, #tpu.memory_space<vmem>>, vector<16x512xf32>
    tpu.vector_store %arg8[%c0_164, %c0_165], %197 {strides = array<i32>} : memref<16x512xf32, #tpu.memory_space<vmem>>, vector<16x512xf32>,
    %c0_166 = arith.constant 0 : index
    %c0_167 = arith.constant 0 : index
    %199 = vector.load %arg8[%c0_166, %c0_167] : memref<16x512xf32, #tpu.memory_space<vmem>>, vector<16x512xf32>
    %c17_i32_168 = arith.constant 17 : i32
    %200 = tpu.dynamic_rotate %199 by %c17_i32_168 dim 1 : vector<16x512xf32>, i32 -> vector<16x512xf32>
    %c0_169 = arith.constant 0 : index
    %c0_170 = arith.constant 0 : index
    %201 = vector.load %arg1[%c0_169, %c0_170] : memref<8x512xf32, #tpu.memory_space<vmem>>, vector<1x512xf32>
    %202 = vector.broadcast %201 : vector<1x512xf32> to vector<16x512xf32>
    %203 = arith.mulf %200, %202 : vector<16x512xf32>
    %204 = arith.truncf %203 : vector<16x512xf32> to vector<16x512xbf16>
    %c0_171 = arith.constant 0 : index
    %c0_172 = arith.constant 0 : index
    %205 = vector.load %arg9[%c0_171, %c0_172] : memref<128x512xbf16, #tpu.memory_space<vmem>>, vector<16x512xbf16>
    tpu.vector_store %arg9[%c0_171, %c0_172], %204 {strides = array<i32>} : memref<128x512xbf16, #tpu.memory_space<vmem>>, vector<16x512xbf16>,
    %c16_i32_173 = arith.constant 16 : i32
    %206 = tpu.dynamic_rotate %199 by %c16_i32_173 dim 1 : vector<16x512xf32>, i32 -> vector<16x512xf32>
    %c1_174 = arith.constant 1 : index
    %c0_175 = arith.constant 0 : index
    %207 = vector.load %arg1[%c1_174, %c0_175] : memref<8x512xf32, #tpu.memory_space<vmem>>, vector<1x512xf32>
    %208 = vector.broadcast %207 : vector<1x512xf32> to vector<16x512xf32>
    %209 = arith.mulf %206, %208 : vector<16x512xf32>
    %210 = arith.truncf %209 : vector<16x512xf32> to vector<16x512xbf16>
    %c16_176 = arith.constant 16 : index
    %c0_177 = arith.constant 0 : index
    %211 = vector.load %arg9[%c16_176, %c0_177] : memref<128x512xbf16, #tpu.memory_space<vmem>>, vector<16x512xbf16>
    tpu.vector_store %arg9[%c16_176, %c0_177], %210 {strides = array<i32>} : memref<128x512xbf16, #tpu.memory_space<vmem>>, vector<16x512xbf16>,
    %c15_i32_178 = arith.constant 15 : i32
    %212 = tpu.dynamic_rotate %199 by %c15_i32_178 dim 1 : vector<16x512xf32>, i32 -> vector<16x512xf32>
    %c2_179 = arith.constant 2 : index
    %c0_180 = arith.constant 0 : index
    %213 = vector.load %arg1[%c2_179, %c0_180] : memref<8x512xf32, #tpu.memory_space<vmem>>, vector<1x512xf32>
    %214 = vector.broadcast %213 : vector<1x512xf32> to vector<16x512xf32>
    %215 = arith.mulf %212, %214 : vector<16x512xf32>
    %216 = arith.truncf %215 : vector<16x512xf32> to vector<16x512xbf16>
    %c32_181 = arith.constant 32 : index
    %c0_182 = arith.constant 0 : index
    %217 = vector.load %arg9[%c32_181, %c0_182] : memref<128x512xbf16, #tpu.memory_space<vmem>>, vector<16x512xbf16>
    tpu.vector_store %arg9[%c32_181, %c0_182], %216 {strides = array<i32>} : memref<128x512xbf16, #tpu.memory_space<vmem>>, vector<16x512xbf16>,
    %c1_i32_183 = arith.constant 1 : i32
    %218 = tpu.dynamic_rotate %199 by %c1_i32_183 dim 1 : vector<16x512xf32>, i32 -> vector<16x512xf32>
    %c3_184 = arith.constant 3 : index
    %c0_185 = arith.constant 0 : index
    %219 = vector.load %arg1[%c3_184, %c0_185] : memref<8x512xf32, #tpu.memory_space<vmem>>, vector<1x512xf32>
    %220 = vector.broadcast %219 : vector<1x512xf32> to vector<16x512xf32>
    %221 = arith.mulf %218, %220 : vector<16x512xf32>
    %222 = arith.truncf %221 : vector<16x512xf32> to vector<16x512xbf16>
    %c48_186 = arith.constant 48 : index
    %c0_187 = arith.constant 0 : index
    %223 = vector.load %arg9[%c48_186, %c0_187] : memref<128x512xbf16, #tpu.memory_space<vmem>>, vector<16x512xbf16>
    tpu.vector_store %arg9[%c48_186, %c0_187], %222 {strides = array<i32>} : memref<128x512xbf16, #tpu.memory_space<vmem>>, vector<16x512xbf16>,
    %c511_i32_188 = arith.constant 511 : i32
    %224 = tpu.dynamic_rotate %199 by %c511_i32_188 dim 1 : vector<16x512xf32>, i32 -> vector<16x512xf32>
    %c4_189 = arith.constant 4 : index
    %c0_190 = arith.constant 0 : index
    %225 = vector.load %arg1[%c4_189, %c0_190] : memref<8x512xf32, #tpu.memory_space<vmem>>, vector<1x512xf32>
    %226 = vector.broadcast %225 : vector<1x512xf32> to vector<16x512xf32>
    %227 = arith.mulf %224, %226 : vector<16x512xf32>
    %228 = arith.truncf %227 : vector<16x512xf32> to vector<16x512xbf16>
    %c64_191 = arith.constant 64 : index
    %c0_192 = arith.constant 0 : index
    %229 = vector.load %arg9[%c64_191, %c0_192] : memref<128x512xbf16, #tpu.memory_space<vmem>>, vector<16x512xbf16>
    tpu.vector_store %arg9[%c64_191, %c0_192], %228 {strides = array<i32>} : memref<128x512xbf16, #tpu.memory_space<vmem>>, vector<16x512xbf16>,
    %c497_i32_193 = arith.constant 497 : i32
    %230 = tpu.dynamic_rotate %199 by %c497_i32_193 dim 1 : vector<16x512xf32>, i32 -> vector<16x512xf32>
    %c5_194 = arith.constant 5 : index
    %c0_195 = arith.constant 0 : index
    %231 = vector.load %arg1[%c5_194, %c0_195] : memref<8x512xf32, #tpu.memory_space<vmem>>, vector<1x512xf32>
    %232 = vector.broadcast %231 : vector<1x512xf32> to vector<16x512xf32>
    %233 = arith.mulf %230, %232 : vector<16x512xf32>
    %234 = arith.truncf %233 : vector<16x512xf32> to vector<16x512xbf16>
    %c80_196 = arith.constant 80 : index
    %c0_197 = arith.constant 0 : index
    %235 = vector.load %arg9[%c80_196, %c0_197] : memref<128x512xbf16, #tpu.memory_space<vmem>>, vector<16x512xbf16>
    tpu.vector_store %arg9[%c80_196, %c0_197], %234 {strides = array<i32>} : memref<128x512xbf16, #tpu.memory_space<vmem>>, vector<16x512xbf16>,
    %c496_i32_198 = arith.constant 496 : i32
    %236 = tpu.dynamic_rotate %199 by %c496_i32_198 dim 1 : vector<16x512xf32>, i32 -> vector<16x512xf32>
    %c6_199 = arith.constant 6 : index
    %c0_200 = arith.constant 0 : index
    %237 = vector.load %arg1[%c6_199, %c0_200] : memref<8x512xf32, #tpu.memory_space<vmem>>, vector<1x512xf32>
    %238 = vector.broadcast %237 : vector<1x512xf32> to vector<16x512xf32>
    %239 = arith.mulf %236, %238 : vector<16x512xf32>
    %240 = arith.truncf %239 : vector<16x512xf32> to vector<16x512xbf16>
    %c96_201 = arith.constant 96 : index
    %c0_202 = arith.constant 0 : index
    %241 = vector.load %arg9[%c96_201, %c0_202] : memref<128x512xbf16, #tpu.memory_space<vmem>>, vector<16x512xbf16>
    tpu.vector_store %arg9[%c96_201, %c0_202], %240 {strides = array<i32>} : memref<128x512xbf16, #tpu.memory_space<vmem>>, vector<16x512xbf16>,
    %c495_i32_203 = arith.constant 495 : i32
    %242 = tpu.dynamic_rotate %199 by %c495_i32_203 dim 1 : vector<16x512xf32>, i32 -> vector<16x512xf32>
    %c7_204 = arith.constant 7 : index
    %c0_205 = arith.constant 0 : index
    %243 = vector.load %arg1[%c7_204, %c0_205] : memref<8x512xf32, #tpu.memory_space<vmem>>, vector<1x512xf32>
    %244 = vector.broadcast %243 : vector<1x512xf32> to vector<16x512xf32>
    %245 = arith.mulf %242, %244 : vector<16x512xf32>
    %246 = arith.truncf %245 : vector<16x512xf32> to vector<16x512xbf16>
    %c112_206 = arith.constant 112 : index
    %c0_207 = arith.constant 0 : index
    %247 = vector.load %arg9[%c112_206, %c0_207] : memref<128x512xbf16, #tpu.memory_space<vmem>>, vector<16x512xbf16>
    tpu.vector_store %arg9[%c112_206, %c0_207], %246 {strides = array<i32>} : memref<128x512xbf16, #tpu.memory_space<vmem>>, vector<16x512xbf16>,
    %c3_208 = arith.constant 3 : index
    %c0_209 = arith.constant 0 : index
    %c0_210 = arith.constant 0 : index
    %248 = vector.load %arg4[%c3_208, %c0_209, %c0_210] : memref<4x16x16xbf16, #tpu.memory_space<vmem>>, vector<1x16x16xbf16>
    %249 = vector.shape_cast %248 : vector<1x16x16xbf16> to vector<16x16xbf16>
    %250 = arith.truncf %199 : vector<16x512xf32> to vector<16x512xbf16>
    %cst_211 = arith.constant dense<0.000000e+00> : vector<16x512xf32>
    %251 = tpu.matmul %249, %250, %cst_211 {dimension_numbers = #tpu.dot_dimension_numbers<[1], [0], [0], [1], [0, 0, 1, 1], [], []>} : vector<16x16xbf16>, vector<16x512xbf16>, vector<16x512xf32> -> vector<16x512xf32>
    %c3_212 = arith.constant 3 : index
    %c0_213 = arith.constant 0 : index
    %c0_214 = arith.constant 0 : index
    %252 = vector.load %arg5[%c3_212, %c0_213, %c0_214] : memref<4x16x128xbf16, #tpu.memory_space<vmem>>, vector<1x16x128xbf16>
    %253 = vector.shape_cast %252 : vector<1x16x128xbf16> to vector<16x128xbf16>
    %c0_215 = arith.constant 0 : index
    %c0_216 = arith.constant 0 : index
    %254 = vector.load %arg9[%c0_215, %c0_216] : memref<128x512xbf16, #tpu.memory_space<vmem>>, vector<128x512xbf16>
    %cst_217 = arith.constant dense<0.000000e+00> : vector<16x512xf32>
    %255 = tpu.matmul %253, %254, %cst_217 {dimension_numbers = #tpu.dot_dimension_numbers<[1], [0], [0], [1], [0, 0, 1, 1], [], []>} : vector<16x128xbf16>, vector<128x512xbf16>, vector<16x512xf32> -> vector<16x512xf32>
    %256 = arith.addf %251, %255 : vector<16x512xf32>
    %c0_218 = arith.constant 0 : index
    %c0_219 = arith.constant 0 : index
    %257 = vector.load %arg10[%c0_218, %c0_219] : memref<16x512xf32, #tpu.memory_space<vmem>>, vector<16x512xf32>
    %258 = arith.addf %256, %257 : vector<16x512xf32>
    %cst_220 = arith.constant 0.000000e+00 : f32
    %259 = vector.broadcast %cst_220 : f32 to vector<16x512xf32>
    %260 = arith.maximumf %258, %259 : vector<16x512xf32>
    %c0_221 = arith.constant 0 : index
    %c0_222 = arith.constant 0 : index
    %261 = vector.load %arg8[%c0_221, %c0_222] : memref<16x512xf32, #tpu.memory_space<vmem>>, vector<16x512xf32>
    tpu.vector_store %arg8[%c0_221, %c0_222], %260 {strides = array<i32>} : memref<16x512xf32, #tpu.memory_space<vmem>>, vector<16x512xf32>,
    %c0_223 = arith.constant 0 : index
    %c0_224 = arith.constant 0 : index
    %262 = vector.load %arg6[%c0_223, %c0_224] : memref<16x16xbf16, #tpu.memory_space<vmem>>, vector<16x16xbf16>
    %c0_225 = arith.constant 0 : index
    %c0_226 = arith.constant 0 : index
    %263 = vector.load %arg8[%c0_225, %c0_226] : memref<16x512xf32, #tpu.memory_space<vmem>>, vector<16x256xf32>
    %264 = arith.truncf %263 : vector<16x256xf32> to vector<16x256xbf16>
    %cst_227 = arith.constant dense<0.000000e+00> : vector<16x256xf32>
    %265 = tpu.matmul %262, %264, %cst_227 {dimension_numbers = #tpu.dot_dimension_numbers<[1], [0], [0], [1], [0, 0, 1, 1], [], []>} : vector<16x16xbf16>, vector<16x256xbf16>, vector<16x256xf32> -> vector<16x256xf32>
    %c0_228 = arith.constant 0 : index
    %c0_229 = arith.constant 0 : index
    %c0_230 = arith.constant 0 : index
    %266 = vector.load %arg7[%c0_228, %c0_229, %c0_230] : memref<2x16x256xf32, #tpu.memory_space<vmem>>, vector<1x16x256xf32>
    %267 = vector.shape_cast %266 : vector<1x16x256xf32> to vector<16x256xf32>
    %268 = vector.shape_cast %265 : vector<16x256xf32> to vector<1x16x256xf32>
    tpu.vector_store %arg7[%c0_228, %c0_229, %c0_230], %268 {strides = array<i32>} : memref<2x16x256xf32, #tpu.memory_space<vmem>>, vector<1x16x256xf32>,
    %c0_231 = arith.constant 0 : index
    %c0_232 = arith.constant 0 : index
    %269 = vector.load %arg6[%c0_231, %c0_232] : memref<16x16xbf16, #tpu.memory_space<vmem>>, vector<16x16xbf16>
    %c0_233 = arith.constant 0 : index
    %c256_234 = arith.constant 256 : index
    %270 = vector.load %arg8[%c0_233, %c256_234] : memref<16x512xf32, #tpu.memory_space<vmem>>, vector<16x256xf32>
    %271 = arith.truncf %270 : vector<16x256xf32> to vector<16x256xbf16>
    %cst_235 = arith.constant dense<0.000000e+00> : vector<16x256xf32>
    %272 = tpu.matmul %269, %271, %cst_235 {dimension_numbers = #tpu.dot_dimension_numbers<[1], [0], [0], [1], [0, 0, 1, 1], [], []>} : vector<16x16xbf16>, vector<16x256xbf16>, vector<16x256xf32> -> vector<16x256xf32>
    %c1_236 = arith.constant 1 : index
    %c0_237 = arith.constant 0 : index
    %c0_238 = arith.constant 0 : index
    %273 = vector.load %arg7[%c1_236, %c0_237, %c0_238] : memref<2x16x256xf32, #tpu.memory_space<vmem>>, vector<1x16x256xf32>
    %274 = vector.shape_cast %273 : vector<1x16x256xf32> to vector<16x256xf32>
    %275 = vector.shape_cast %272 : vector<16x256xf32> to vector<1x16x256xf32>
    tpu.vector_store %arg7[%c1_236, %c0_237, %c0_238], %275 {strides = array<i32>} : memref<2x16x256xf32, #tpu.memory_space<vmem>>, vector<1x16x256xf32>,
    return
  }
  func.func @transform_0(%arg0: i32) -> (i32, i32) {
    %c0_i32 = arith.constant 0 : i32
    %c0_i32_0 = arith.constant 0 : i32
    %c0_i32_1 = arith.constant 0 : i32
    return %c0_i32, %c0_i32_0 : i32, i32
  }
  func.func @transform_1(%arg0: i32) -> (i32, i32, i32) {
    %c0_i32 = arith.constant 0 : i32
    %c0_i32_0 = arith.constant 0 : i32
    %c0_i32_1 = arith.constant 0 : i32
    return %arg0, %c0_i32, %c0_i32_0 : i32, i32, i32
  }
  func.func @transform_2(%arg0: i32) -> (i32, i32) {
    %c0_i32 = arith.constant 0 : i32
    %c0_i32_0 = arith.constant 0 : i32
    %c0_i32_1 = arith.constant 0 : i32
    return %c0_i32, %c0_i32_0 : i32, i32
  }
  func.func @transform_3(%arg0: i32) -> (i32, i32, i32) {
    %c0_i32 = arith.constant 0 : i32
    %c0_i32_0 = arith.constant 0 : i32
    %c0_i32_1 = arith.constant 0 : i32
    %c0_i32_2 = arith.constant 0 : i32
    return %c0_i32, %c0_i32_0, %c0_i32_1 : i32, i32, i32
  }
  func.func @transform_4(%arg0: i32) -> (i32, i32, i32) {
    %c0_i32 = arith.constant 0 : i32
    %c0_i32_0 = arith.constant 0 : i32
    %c0_i32_1 = arith.constant 0 : i32
    %c0_i32_2 = arith.constant 0 : i32
    return %c0_i32, %c0_i32_0, %c0_i32_1 : i32, i32, i32
  }
  func.func @transform_5(%arg0: i32) -> (i32, i32) {
    %c0_i32 = arith.constant 0 : i32
    %c0_i32_0 = arith.constant 0 : i32
    %c0_i32_1 = arith.constant 0 : i32
    return %c0_i32, %c0_i32_0 : i32, i32
  }
  func.func @transform_6(%arg0: i32) -> (i32, i32, i32) {
    %c0_i32 = arith.constant 0 : i32
    %c0_i32_0 = arith.constant 0 : i32
    %c0_i32_1 = arith.constant 0 : i32
    return %arg0, %c0_i32, %c0_i32_0 : i32, i32, i32
  }
}

</mosaic_0001>

<llo_original>
// kernel: deepest_block_forward.1
$region0: #{deepest_block_forward.1}
  #allocation0 [shape = 'u32[]', space=smem, size = 0x4, offset = 0x4, fixed_abs, tag = 'smem constant byte address 0x4 - core index']
  #allocation1 [shape = 'u32[144,128]{1,0:T(1,128)}', space=vmem, size = 0x12000, scoped, tag = 'internal scratch']
  #allocation2 [shape = 'f32[16,512]{1,0:T(8,128)}', space=vmem, size = 0x8000, scoped, tag = 'scratch operand']
  #allocation3 [shape = 'bf16[128,512]{1,0:T(8,128)(2,1)}', space=vmem, size = 0x20000, scoped, tag = 'scratch operand']
  #allocation4 [shape = 'f32[16,512]{1,0:T(8,128)}', space=vmem, size = 0x8000, scoped, tag = 'scratch operand']
  %s0 = inlined_call_operand.vmem [shape: f32[8,512], index: 0, kind: input, shape index: {}]
  %s1 = inlined_call_operand.vmem [shape: bf16[2,16,256], index: 1, kind: input, shape index: {}]
  %s2 = inlined_call_operand.vmem [shape: bf16[16,16], index: 2, kind: input, shape index: {}]
  %s3 = inlined_call_operand.vmem [shape: bf16[4,16,16], index: 3, kind: input, shape index: {}]
  %s4 = inlined_call_operand.vmem [shape: bf16[4,16,128], index: 4, kind: input, shape index: {}]
  %s5 = inlined_call_operand.vmem [shape: bf16[16,16], index: 5, kind: input, shape index: {}]
  %s6 = inlined_call_operand.vmem [shape: f32[2,16,256], index: 6, kind: output, shape index: {}]
  %s7 = sld [smem:[#allocation0]]
  $region34: #{deepest_block_forward.1} parent=0
    _
  %s9 = ssub.s32 1, %s7
  %s10 = scalar_select 0, %s9, %s7
  // Predicated region
  $region2: #{deepest_block_forward.1} parent=0 // pred_check
    _
  $region3: #{deepest_block_forward.1} parent=0 // pred_check_branch
    %12 = sbr.rel (0) target = $region5
  $region4: #{deepest_block_forward.1} parent=0 // pred_region
    _
  $region5: #{deepest_block_forward.1} parent=0 // pred_fallthru
    _
  // Predicated region
  $region6: #{deepest_block_forward.1} parent=0 // pred_check
    _
  $region7: #{deepest_block_forward.1} parent=0 // pred_check_branch
    %14 = sbr.rel (0) target = $region9
  $region8: #{deepest_block_forward.1} parent=0 // pred_region
    _
  $region9: #{deepest_block_forward.1} parent=0 // pred_fallthru
    _
  // Predicated region
  $region10: #{deepest_block_forward.1} parent=0 // pred_check
    _
  $region11: #{deepest_block_forward.1} parent=0 // pred_check_branch
    %16 = sbr.rel (0) target = $region13
  $region12: #{deepest_block_forward.1} parent=0 // pred_region
    _
  $region13: #{deepest_block_forward.1} parent=0 // pred_fallthru
    _
  // Predicated region
  $region14: #{deepest_block_forward.1} parent=0 // pred_check
    _
  $region15: #{deepest_block_forward.1} parent=0 // pred_check_branch
    %18 = sbr.rel (0) target = $region17
  $region16: #{deepest_block_forward.1} parent=0 // pred_region
    _
  $region17: #{deepest_block_forward.1} parent=0 // pred_fallthru
    _
  // Predicated region
  $region18: #{deepest_block_forward.1} parent=0 // pred_check
    _
  $region19: #{deepest_block_forward.1} parent=0 // pred_check_branch
    %20 = sbr.rel (0) target = $region21
  $region20: #{deepest_block_forward.1} parent=0 // pred_region
    _
  $region21: #{deepest_block_forward.1} parent=0 // pred_fallthru
    _
  // Predicated region
  $region22: #{deepest_block_forward.1} parent=0 // pred_check
    _
  $region23: #{deepest_block_forward.1} parent=0 // pred_check_branch
    %22 = sbr.rel (0) target = $region25
  $region24: #{deepest_block_forward.1} parent=0 // pred_region
    _
  $region25: #{deepest_block_forward.1} parent=0 // pred_fallthru
    _
  %v24 = vld [vmem:[%s2] sm:$0xf]
  %v25 = vld [vmem:[%s2 + $0x4] sm:$0xf]
  %v26 = vld [vmem:[%s1] sm:$0xff]
  %v27 = vld [vmem:[%s1 + $0x8] sm:$0xff]
  %v30 = vunpack.c.l.b16 %v24
  %v31 = vunpack.c.l.b16 %v25
  %v32 = vpack.c.b16 %v31, %v30
  %v35 = vunpack.c.l.b16 %v26
  %v36 = vunpack.c.h.b16 %v26
  %v37 = vunpack.c.l.b16 %v27
  %v38 = vunpack.c.h.b16 %v27
  %v39 = vpack.c.b16 %v37, %v35
  %v40 = vpack.c.b16 %v38, %v36
  %vm43 = vcmask 130048
  %v45 = vsel %vm43, %v32, 0
  %47 = vmatprep.subr.bf16.mxu0 0
  %48 = vmatpush1.bf16.msra.mxu0 0
  %49 = vmatprep.subr.bf16.mxu0 0
  %50 = vmatpush1.bf16.msra.mxu0 0
  %51 = vmatprep.subr.bf16.mxu0 0
  %52 = vmatpush1.bf16.msra.mxu0 0
  %53 = vmatprep.subr.bf16.mxu0 0
  %54 = vmatpush1.bf16.msra.mxu0 0
  %55 = vmatprep.subr.bf16.mxu0 0
  %56 = vmatpush1.bf16.msra.mxu0 0
  %57 = vmatprep.subr.bf16.mxu0 0
  %58 = vmatpush1.bf16.msra.mxu0 0
  %59 = vmatprep.subr.bf16.mxu0 0
  %60 = vmatpush1.bf16.msra.mxu0 0
  %61 = vmatprep.subr.bf16.mxu0 %v40
  %62 = vmatpush1.bf16.msra.mxu0 %v39
  %63 = vmatprep.subr.bf16.mxu0 0
  %64 = vmatpush2.bf16.msra.mxu0 0
  %65 = vmatprep.subr.bf16.mxu0 0
  %66 = vmatpush2.bf16.msra.mxu0 0
  %67 = vmatprep.subr.bf16.mxu0 0
  %68 = vmatpush2.bf16.msra.mxu0 0
  %69 = vmatprep.subr.bf16.mxu0 0
  %70 = vmatpush2.bf16.msra.mxu0 0
  %71 = vmatprep.subr.bf16.mxu0 0
  %72 = vmatpush2.bf16.msra.mxu0 0
  %73 = vmatprep.subr.bf16.mxu0 0
  %74 = vmatpush2.bf16.msra.mxu0 0
  %75 = vmatprep.subr.bf16.mxu0 0
  %76 = vmatpush2.bf16.msra.mxu0 0
  %77 = vmatprep.subr.bf16.mxu0 0
  %78 = vmatpush2.bf16.msra.mxu0 0
  %79 = vmatprep.mubr.bf16.mxu0 0
  %80 = vmatmul.mubr.bf16.gmra.mxu0 %v45
  %v81 = vpop.f32.mrf.mxu0
  %v82 = vadd.f32 0.0, %v81
  %v83 = vpop.f32.mrf.mxu0
  %v84 = vadd.f32 0.0, %v83
  %v85 = vpop.f32.mrf.mxu0
  %v86 = vadd.f32 0.0, %v85
  %v87 = vpop.f32.mrf.mxu0
  %v88 = vadd.f32 0.0, %v87
  %89 = vdwg.mxu0
  %90 = vst [vmem:[#allocation2] sm:$0xff] %v82
  %91 = vst [vmem:[#allocation2 + $0x8] sm:$0xff] %v84
  %92 = vst [vmem:[#allocation2 + $0x20] sm:$0xff] %v86
  %93 = vst [vmem:[#allocation2 + $0x28] sm:$0xff] %v88
  %v94 = vld [vmem:[%s2] sm:$0xf]
  %v95 = vld [vmem:[%s2 + $0x4] sm:$0xf]
  %s96 = scalar_lea.vmem %s1, 16
  %v97 = vld [vmem:[%s96] sm:$0xff]
  %v98 = vld [vmem:[%s96 + $0x8] sm:$0xff]
  %v101 = vunpack.c.l.b16 %v94
  %v102 = vunpack.c.l.b16 %v95
  %v103 = vpack.c.b16 %v102, %v101
  %v106 = vunpack.c.l.b16 %v97
  %v107 = vunpack.c.h.b16 %v97
  %v108 = vunpack.c.l.b16 %v98
  %v109 = vunpack.c.h.b16 %v98
  %v110 = vpack.c.b16 %v108, %v106
  %v111 = vpack.c.b16 %v109, %v107
  %v115 = vsel %vm43, %v103, 0
  %117 = vmatprep.subr.bf16.mxu0 0
  %118 = vmatpush1.bf16.msra.mxu0 0
  %119 = vmatprep.subr.bf16.mxu0 0
  %120 = vmatpush1.bf16.msra.mxu0 0
  %121 = vmatprep.subr.bf16.mxu0 0
  %122 = vmatpush1.bf16.msra.mxu0 0
  %123 = vmatprep.subr.bf16.mxu0 0
  %124 = vmatpush1.bf16.msra.mxu0 0
  %125 = vmatprep.subr.bf16.mxu0 0
  %126 = vmatpush1.bf16.msra.mxu0 0
  %127 = vmatprep.subr.bf16.mxu0 0
  %128 = vmatpush1.bf16.msra.mxu0 0
  %129 = vmatprep.subr.bf16.mxu0 0
  %130 = vmatpush1.bf16.msra.mxu0 0
  %131 = vmatprep.subr.bf16.mxu0 %v111
  %132 = vmatpush1.bf16.msra.mxu0 %v110
  %133 = vmatprep.subr.bf16.mxu0 0
  %134 = vmatpush2.bf16.msra.mxu0 0
  %135 = vmatprep.subr.bf16.mxu0 0
  %136 = vmatpush2.bf16.msra.mxu0 0
  %137 = vmatprep.subr.bf16.mxu0 0
  %138 = vmatpush2.bf16.msra.mxu0 0
  %139 = vmatprep.subr.bf16.mxu0 0
  %140 = vmatpush2.bf16.msra.mxu0 0
  %141 = vmatprep.subr.bf16.mxu0 0
  %142 = vmatpush2.bf16.msra.mxu0 0
  %143 = vmatprep.subr.bf16.mxu0 0
  %144 = vmatpush2.bf16.msra.mxu0 0
  %145 = vmatprep.subr.bf16.mxu0 0
  %146 = vmatpush2.bf16.msra.mxu0 0
  %147 = vmatprep.subr.bf16.mxu0 0
  %148 = vmatpush2.bf16.msra.mxu0 0
  %149 = vmatprep.mubr.bf16.mxu0 0
  %150 = vmatmul.mubr.bf16.gmra.mxu0 %v115
  %v151 = vpop.f32.mrf.mxu0
  %v152 = vadd.f32 0.0, %v151
  %v153 = vpop.f32.mrf.mxu0
  %v154 = vadd.f32 0.0, %v153
  %v155 = vpop.f32.mrf.mxu0
  %v156 = vadd.f32 0.0, %v155
  %v157 = vpop.f32.mrf.mxu0
  %v158 = vadd.f32 0.0, %v157
  %159 = vdwg.mxu0
  %160 = vst [vmem:[#allocation2 + $0x10] sm:$0xff] %v152
  %161 = vst [vmem:[#allocation2 + $0x18] sm:$0xff] %v154
  %162 = vst [vmem:[#allocation2 + $0x30] sm:$0xff] %v156
  %163 = vst [vmem:[#allocation2 + $0x38] sm:$0xff] %v158
  %v164 = vld [vmem:[#allocation2] sm:$0xff]
  %v165 = vld [vmem:[#allocation2 + $0x8] sm:$0xff]
  %v166 = vld [vmem:[#allocation2 + $0x10] sm:$0xff]
  %v167 = vld [vmem:[#allocation2 + $0x18] sm:$0xff]
  %v168 = vld [vmem:[#allocation2 + $0x20] sm:$0xff]
  %v169 = vld [vmem:[#allocation2 + $0x28] sm:$0xff]
  %v170 = vld [vmem:[#allocation2 + $0x30] sm:$0xff]
  %v171 = vld [vmem:[#allocation2 + $0x38] sm:$0xff]
  %172 = vst [vmem:[#allocation4] sm:$0xff] %v164
  %173 = vst [vmem:[#allocation4 + $0x8] sm:$0xff] %v165
  %174 = vst [vmem:[#allocation4 + $0x10] sm:$0xff] %v166
  %175 = vst [vmem:[#allocation4 + $0x18] sm:$0xff] %v167
  %176 = vst [vmem:[#allocation4 + $0x20] sm:$0xff] %v168
  %177 = vst [vmem:[#allocation4 + $0x28] sm:$0xff] %v169
  %178 = vst [vmem:[#allocation4 + $0x30] sm:$0xff] %v170
  %179 = vst [vmem:[#allocation4 + $0x38] sm:$0xff] %v171
  %v180 = vld [vmem:[#allocation2] sm:$0xff]
  %v181 = vld [vmem:[#allocation2 + $0x8] sm:$0xff]
  %v182 = vld [vmem:[#allocation2 + $0x10] sm:$0xff]
  %v183 = vld [vmem:[#allocation2 + $0x18] sm:$0xff]
  %v184 = vld [vmem:[#allocation2 + $0x20] sm:$0xff]
  %v185 = vld [vmem:[#allocation2 + $0x28] sm:$0xff]
  %v186 = vld [vmem:[#allocation2 + $0x30] sm:$0xff]
  %v187 = vld [vmem:[#allocation2 + $0x38] sm:$0xff]
  %188 = vrot.lane.b32.xlu0 %v180, 17
  %v189 = vpop.permute.xlu0 %188
  %190 = vrot.lane.b32.xlu0 %v184, 17
  %v191 = vpop.permute.xlu0 %190
  %192 = vrot.lane.b32.xlu0 %v181, 17
  %v193 = vpop.permute.xlu0 %192
  %194 = vrot.lane.b32.xlu0 %v185, 17
  %v195 = vpop.permute.xlu0 %194
  %196 = vrot.lane.b32.xlu0 %v182, 17
  %v197 = vpop.permute.xlu0 %196
  %198 = vrot.lane.b32.xlu0 %v186, 17
  %v199 = vpop.permute.xlu0 %198
  %200 = vrot.lane.b32.xlu0 %v183, 17
  %v201 = vpop.permute.xlu0 %200
  %202 = vrot.lane.b32.xlu0 %v187, 17
  %v203 = vpop.permute.xlu0 %202
  %v204 = vlaneseq
  %v205 = vand.u32 %v204, 127
  %vm206 = vcmp.lt.s32.totalorder %v205, 17
  %v207 = vsel %vm206, %v197, %v201
  %v208 = vsel %vm206, %v199, %v203
  %v209 = vsel %vm206, %v193, %v197
  %v210 = vsel %vm206, %v195, %v199
  %v211 = vsel %vm206, %v189, %v193
  %v212 = vsel %vm206, %v191, %v195
  %v213 = vsel %vm206, %v201, %v189
  %v214 = vsel %vm206, %v203, %v191
  %v215 = vld [vmem:[%s0] ss:$8 sm:$0xf]
  %v217 = vlaneseq
  %v218 = vshrl.u32 %v217, 7
  %v219 = vsub.s32 0, %v218
  %v220 = vrot.slane %v215, %v219
  %v221 = vlaneseq
  %v222 = vshrl.u32 %v221, 7
  %v223 = vsub.s32 1, %v222
  %v224 = vrot.slane %v215, %v223
  %v225 = vlaneseq
  %v226 = vshrl.u32 %v225, 7
  %v227 = vsub.s32 2, %v226
  %v228 = vrot.slane %v215, %v227
  %v229 = vlaneseq
  %v230 = vshrl.u32 %v229, 7
  %v231 = vsub.s32 3, %v230
  %v232 = vrot.slane %v215, %v231
  %v237 = vmul.f32 %v213, %v220
  %v238 = vmul.f32 %v211, %v224
  %v239 = vmul.f32 %v209, %v228
  %v240 = vmul.f32 %v207, %v232
  %v241 = vmul.f32 %v214, %v220
  %v242 = vmul.f32 %v212, %v224
  %v243 = vmul.f32 %v210, %v228
  %v244 = vmul.f32 %v208, %v232
  %v245 = vpack.c.bf16 %v241, %v237
  %v246 = vpack.c.bf16 %v242, %v238
  %v247 = vpack.c.bf16 %v243, %v239
  %v248 = vpack.c.bf16 %v244, %v240
  %v253 = vunpack.c.l.b16 %v245
  %v254 = vunpack.c.l.b16 %v246
  %v255 = vunpack.c.l.b16 %v247
  %v256 = vunpack.c.l.b16 %v248
  %v257 = vunpack.c.h.b16 %v245
  %v258 = vunpack.c.h.b16 %v246
  %v259 = vunpack.c.h.b16 %v247
  %v260 = vunpack.c.h.b16 %v248
  %v261 = vpack.c.b16 %v254, %v253
  %v262 = vpack.c.b16 %v256, %v255
  %v263 = vpack.c.b16 %v258, %v257
  %v264 = vpack.c.b16 %v260, %v259
  %269 = vst [vmem:[#allocation3] sm:$0xff] %v261
  %270 = vst [vmem:[#allocation3 + $0x8] sm:$0xff] %v262
  %271 = vst [vmem:[#allocation3 + $0x10] sm:$0xff] %v263
  %272 = vst [vmem:[#allocation3 + $0x18] sm:$0xff] %v264
  %273 = vrot.lane.b32.xlu0 %v180, 16
  %v274 = vpop.permute.xlu0 %273
  %275 = vrot.lane.b32.xlu0 %v184, 16
  %v276 = vpop.permute.xlu0 %275
  %277 = vrot.lane.b32.xlu0 %v181, 16
  %v278 = vpop.permute.xlu0 %277
  %279 = vrot.lane.b32.xlu0 %v185, 16
  %v280 = vpop.permute.xlu0 %279
  %281 = vrot.lane.b32.xlu0 %v182, 16
  %v282 = vpop.permute.xlu0 %281
  %283 = vrot.lane.b32.xlu0 %v186, 16
  %v284 = vpop.permute.xlu0 %283
  %285 = vrot.lane.b32.xlu0 %v183, 16
  %v286 = vpop.permute.xlu0 %285
  %287 = vrot.lane.b32.xlu0 %v187, 16
  %v288 = vpop.permute.xlu0 %287
  %vm289 = vcmp.lt.s32.totalorder %v205, 16
  %v290 = vsel %vm289, %v282, %v286
  %v291 = vsel %vm289, %v284, %v288
  %v292 = vsel %vm289, %v278, %v282
  %v293 = vsel %vm289, %v280, %v284
  %v294 = vsel %vm289, %v274, %v278
  %v295 = vsel %vm289, %v276, %v280
  %v296 = vsel %vm289, %v286, %v274
  %v297 = vsel %vm289, %v288, %v276
  %s298 = scalar_lea.vmem %s0, 1
  %v299 = vld [vmem:[%s298] ss:$8 sm:$0xf]
  %v301 = vlaneseq
  %v302 = vshrl.u32 %v301, 7
  %v303 = vsub.s32 0, %v302
  %v304 = vrot.slane %v299, %v303
  %v305 = vlaneseq
  %v306 = vshrl.u32 %v305, 7
  %v307 = vsub.s32 1, %v306
  %v308 = vrot.slane %v299, %v307
  %v309 = vlaneseq
  %v310 = vshrl.u32 %v309, 7
  %v311 = vsub.s32 2, %v310
  %v312 = vrot.slane %v299, %v311
  %v313 = vlaneseq
  %v314 = vshrl.u32 %v313, 7
  %v315 = vsub.s32 3, %v314
  %v316 = vrot.slane %v299, %v315
  %v321 = vmul.f32 %v296, %v304
  %v322 = vmul.f32 %v294, %v308
  %v323 = vmul.f32 %v292, %v312
  %v324 = vmul.f32 %v290, %v316
  %v325 = vmul.f32 %v297, %v304
  %v326 = vmul.f32 %v295, %v308
  %v327 = vmul.f32 %v293, %v312
  %v328 = vmul.f32 %v291, %v316
  %v329 = vpack.c.bf16 %v325, %v321
  %v330 = vpack.c.bf16 %v326, %v322
  %v331 = vpack.c.bf16 %v327, %v323
  %v332 = vpack.c.bf16 %v328, %v324
  %v337 = vunpack.c.l.b16 %v329
  %v338 = vunpack.c.l.b16 %v330
  %v339 = vunpack.c.l.b16 %v331
  %v340 = vunpack.c.l.b16 %v332
  %v341 = vunpack.c.h.b16 %v329
  %v342 = vunpack.c.h.b16 %v330
  %v343 = vunpack.c.h.b16 %v331
  %v344 = vunpack.c.h.b16 %v332
  %v345 = vpack.c.b16 %v338, %v337
  %v346 = vpack.c.b16 %v340, %v339
  %v347 = vpack.c.b16 %v342, %v341
  %v348 = vpack.c.b16 %v344, %v343
  %353 = vst [vmem:[#allocation3 + $0x20] sm:$0xff] %v345
  %354 = vst [vmem:[#allocation3 + $0x28] sm:$0xff] %v346
  %355 = vst [vmem:[#allocation3 + $0x30] sm:$0xff] %v347
  %356 = vst [vmem:[#allocation3 + $0x38] sm:$0xff] %v348
  %357 = vrot.lane.b32.xlu0 %v180, 15
  %v358 = vpop.permute.xlu0 %357
  %359 = vrot.lane.b32.xlu0 %v184, 15
  %v360 = vpop.permute.xlu0 %359
  %361 = vrot.lane.b32.xlu0 %v181, 15
  %v362 = vpop.permute.xlu0 %361
  %363 = vrot.lane.b32.xlu0 %v185, 15
  %v364 = vpop.permute.xlu0 %363
  %365 = vrot.lane.b32.xlu0 %v182, 15
  %v366 = vpop.permute.xlu0 %365
  %367 = vrot.lane.b32.xlu0 %v186, 15
  %v368 = vpop.permute.xlu0 %367
  %369 = vrot.lane.b32.xlu0 %v183, 15
  %v370 = vpop.permute.xlu0 %369
  %371 = vrot.lane.b32.xlu0 %v187, 15
  %v372 = vpop.permute.xlu0 %371
  %vm373 = vcmp.lt.s32.totalorder %v205, 15
  %v374 = vsel %vm373, %v366, %v370
  %v375 = vsel %vm373, %v368, %v372
  %v376 = vsel %vm373, %v362, %v366
  %v377 = vsel %vm373, %v364, %v368
  %v378 = vsel %vm373, %v358, %v362
  %v379 = vsel %vm373, %v360, %v364
  %v380 = vsel %vm373, %v370, %v358
  %v381 = vsel %vm373, %v372, %v360
  %s382 = scalar_lea.vmem %s0, 2
  %v383 = vld [vmem:[%s382] ss:$8 sm:$0xf]
  %v385 = vlaneseq
  %v386 = vshrl.u32 %v385, 7
  %v387 = vsub.s32 0, %v386
  %v388 = vrot.slane %v383, %v387
  %v389 = vlaneseq
  %v390 = vshrl.u32 %v389, 7
  %v391 = vsub.s32 1, %v390
  %v392 = vrot.slane %v383, %v391
  %v393 = vlaneseq
  %v394 = vshrl.u32 %v393, 7
  %v395 = vsub.s32 2, %v394
  %v396 = vrot.slane %v383, %v395
  %v397 = vlaneseq
  %v398 = vshrl.u32 %v397, 7
  %v399 = vsub.s32 3, %v398
  %v400 = vrot.slane %v383, %v399
  %v405 = vmul.f32 %v380, %v388
  %v406 = vmul.f32 %v378, %v392
  %v407 = vmul.f32 %v376, %v396
  %v408 = vmul.f32 %v374, %v400
  %v409 = vmul.f32 %v381, %v388
  %v410 = vmul.f32 %v379, %v392
  %v411 = vmul.f32 %v377, %v396
  %v412 = vmul.f32 %v375, %v400
  %v413 = vpack.c.bf16 %v409, %v405
  %v414 = vpack.c.bf16 %v410, %v406
  %v415 = vpack.c.bf16 %v411, %v407
  %v416 = vpack.c.bf16 %v412, %v408
  %v421 = vunpack.c.l.b16 %v413
  %v422 = vunpack.c.l.b16 %v414
  %v423 = vunpack.c.l.b16 %v415
  %v424 = vunpack.c.l.b16 %v416
  %v425 = vunpack.c.h.b16 %v413
  %v426 = vunpack.c.h.b16 %v414
  %v427 = vunpack.c.h.b16 %v415
  %v428 = vunpack.c.h.b16 %v416
  %v429 = vpack.c.b16 %v422, %v421
  %v430 = vpack.c.b16 %v424, %v423
  %v431 = vpack.c.b16 %v426, %v425
  %v432 = vpack.c.b16 %v428, %v427
  %437 = vst [vmem:[#allocation3 + $0x40] sm:$0xff] %v429
  %438 = vst [vmem:[#allocation3 + $0x48] sm:$0xff] %v430
  %439 = vst [vmem:[#allocation3 + $0x50] sm:$0xff] %v431
  %440 = vst [vmem:[#allocation3 + $0x58] sm:$0xff] %v432
  %441 = vrot.lane.b32.xlu0 %v180, 1
  %v442 = vpop.permute.xlu0 %441
  %443 = vrot.lane.b32.xlu0 %v184, 1
  %v444 = vpop.permute.xlu0 %443
  %445 = vrot.lane.b32.xlu0 %v181, 1
  %v446 = vpop.permute.xlu0 %445
  %447 = vrot.lane.b32.xlu0 %v185, 1
  %v448 = vpop.permute.xlu0 %447
  %449 = vrot.lane.b32.xlu0 %v182, 1
  %v450 = vpop.permute.xlu0 %449
  %451 = vrot.lane.b32.xlu0 %v186, 1
  %v452 = vpop.permute.xlu0 %451
  %453 = vrot.lane.b32.xlu0 %v183, 1
  %v454 = vpop.permute.xlu0 %453
  %455 = vrot.lane.b32.xlu0 %v187, 1
  %v456 = vpop.permute.xlu0 %455
  %vm457 = vcmp.lt.s32.totalorder %v205, 1
  %v458 = vsel %vm457, %v450, %v454
  %v459 = vsel %vm457, %v452, %v456
  %v460 = vsel %vm457, %v446, %v450
  %v461 = vsel %vm457, %v448, %v452
  %v462 = vsel %vm457, %v442, %v446
  %v463 = vsel %vm457, %v444, %v448
  %v464 = vsel %vm457, %v454, %v442
  %v465 = vsel %vm457, %v456, %v444
  %s466 = scalar_lea.vmem %s0, 3
  %v467 = vld [vmem:[%s466] ss:$8 sm:$0xf]
  %v469 = vlaneseq
  %v470 = vshrl.u32 %v469, 7
  %v471 = vsub.s32 0, %v470
  %v472 = vrot.slane %v467, %v471
  %v473 = vlaneseq
  %v474 = vshrl.u32 %v473, 7
  %v475 = vsub.s32 1, %v474
  %v476 = vrot.slane %v467, %v475
  %v477 = vlaneseq
  %v478 = vshrl.u32 %v477, 7
  %v479 = vsub.s32 2, %v478
  %v480 = vrot.slane %v467, %v479
  %v481 = vlaneseq
  %v482 = vshrl.u32 %v481, 7
  %v483 = vsub.s32 3, %v482
  %v484 = vrot.slane %v467, %v483
  %v489 = vmul.f32 %v464, %v472
  %v490 = vmul.f32 %v462, %v476
  %v491 = vmul.f32 %v460, %v480
  %v492 = vmul.f32 %v458, %v484
  %v493 = vmul.f32 %v465, %v472
  %v494 = vmul.f32 %v463, %v476
  %v495 = vmul.f32 %v461, %v480
  %v496 = vmul.f32 %v459, %v484
  %v497 = vpack.c.bf16 %v493, %v489
  %v498 = vpack.c.bf16 %v494, %v490
  %v499 = vpack.c.bf16 %v495, %v491
  %v500 = vpack.c.bf16 %v496, %v492
  %v505 = vunpack.c.l.b16 %v497
  %v506 = vunpack.c.l.b16 %v498
  %v507 = vunpack.c.l.b16 %v499
  %v508 = vunpack.c.l.b16 %v500
  %v509 = vunpack.c.h.b16 %v497
  %v510 = vunpack.c.h.b16 %v498
  %v511 = vunpack.c.h.b16 %v499
  %v512 = vunpack.c.h.b16 %v500
  %v513 = vpack.c.b16 %v506, %v505
  %v514 = vpack.c.b16 %v508, %v507
  %v515 = vpack.c.b16 %v510, %v509
  %v516 = vpack.c.b16 %v512, %v511
  %521 = vst [vmem:[#allocation3 + $0x60] sm:$0xff] %v513
  %522 = vst [vmem:[#allocation3 + $0x68] sm:$0xff] %v514
  %523 = vst [vmem:[#allocation3 + $0x70] sm:$0xff] %v515
  %524 = vst [vmem:[#allocation3 + $0x78] sm:$0xff] %v516
  %525 = vrot.lane.b32.xlu0 %v180, 127
  %v526 = vpop.permute.xlu0 %525
  %527 = vrot.lane.b32.xlu0 %v184, 127
  %v528 = vpop.permute.xlu0 %527
  %529 = vrot.lane.b32.xlu0 %v181, 127
  %v530 = vpop.permute.xlu0 %529
  %531 = vrot.lane.b32.xlu0 %v185, 127
  %v532 = vpop.permute.xlu0 %531
  %533 = vrot.lane.b32.xlu0 %v182, 127
  %v534 = vpop.permute.xlu0 %533
  %535 = vrot.lane.b32.xlu0 %v186, 127
  %v536 = vpop.permute.xlu0 %535
  %537 = vrot.lane.b32.xlu0 %v183, 127
  %v538 = vpop.permute.xlu0 %537
  %539 = vrot.lane.b32.xlu0 %v187, 127
  %v540 = vpop.permute.xlu0 %539
  %vm541 = vcmp.lt.s32.totalorder %v205, 127
  %v542 = vsel %vm541, %v534, %v538
  %v543 = vsel %vm541, %v536, %v540
  %v544 = vsel %vm541, %v530, %v534
  %v545 = vsel %vm541, %v532, %v536
  %v546 = vsel %vm541, %v526, %v530
  %v547 = vsel %vm541, %v528, %v532
  %v548 = vsel %vm541, %v538, %v526
  %v549 = vsel %vm541, %v540, %v528
  %s550 = scalar_lea.vmem %s0, 4
  %v551 = vld [vmem:[%s550] ss:$8 sm:$0xf]
  %v553 = vlaneseq
  %v554 = vshrl.u32 %v553, 7
  %v555 = vsub.s32 0, %v554
  %v556 = vrot.slane %v551, %v555
  %v557 = vlaneseq
  %v558 = vshrl.u32 %v557, 7
  %v559 = vsub.s32 1, %v558
  %v560 = vrot.slane %v551, %v559
  %v561 = vlaneseq
  %v562 = vshrl.u32 %v561, 7
  %v563 = vsub.s32 2, %v562
  %v564 = vrot.slane %v551, %v563
  %v565 = vlaneseq
  %v566 = vshrl.u32 %v565, 7
  %v567 = vsub.s32 3, %v566
  %v568 = vrot.slane %v551, %v567
  %v573 = vmul.f32 %v546, %v556
  %v574 = vmul.f32 %v544, %v560
  %v575 = vmul.f32 %v542, %v564
  %v576 = vmul.f32 %v548, %v568
  %v577 = vmul.f32 %v547, %v556
  %v578 = vmul.f32 %v545, %v560
  %v579 = vmul.f32 %v543, %v564
  %v580 = vmul.f32 %v549, %v568
  %v581 = vpack.c.bf16 %v577, %v573
  %v582 = vpack.c.bf16 %v578, %v574
  %v583 = vpack.c.bf16 %v579, %v575
  %v584 = vpack.c.bf16 %v580, %v576
  %v589 = vunpack.c.l.b16 %v581
  %v590 = vunpack.c.l.b16 %v582
  %v591 = vunpack.c.l.b16 %v583
  %v592 = vunpack.c.l.b16 %v584
  %v593 = vunpack.c.h.b16 %v581
  %v594 = vunpack.c.h.b16 %v582
  %v595 = vunpack.c.h.b16 %v583
  %v596 = vunpack.c.h.b16 %v584
  %v597 = vpack.c.b16 %v590, %v589
  %v598 = vpack.c.b16 %v592, %v591
  %v599 = vpack.c.b16 %v594, %v593
  %v600 = vpack.c.b16 %v596, %v595
  %605 = vst [vmem:[#allocation3 + $0x80] sm:$0xff] %v597
  %606 = vst [vmem:[#allocation3 + $0x88] sm:$0xff] %v598
  %607 = vst [vmem:[#allocation3 + $0x90] sm:$0xff] %v599
  %608 = vst [vmem:[#allocation3 + $0x98] sm:$0xff] %v600
  %609 = vrot.lane.b32.xlu0 %v180, 113
  %v610 = vpop.permute.xlu0 %609
  %611 = vrot.lane.b32.xlu0 %v184, 113
  %v612 = vpop.permute.xlu0 %611
  %613 = vrot.lane.b32.xlu0 %v181, 113
  %v614 = vpop.permute.xlu0 %613
  %615 = vrot.lane.b32.xlu0 %v185, 113
  %v616 = vpop.permute.xlu0 %615
  %617 = vrot.lane.b32.xlu0 %v182, 113
  %v618 = vpop.permute.xlu0 %617
  %619 = vrot.lane.b32.xlu0 %v186, 113
  %v620 = vpop.permute.xlu0 %619
  %621 = vrot.lane.b32.xlu0 %v183, 113
  %v622 = vpop.permute.xlu0 %621
  %623 = vrot.lane.b32.xlu0 %v187, 113
  %v624 = vpop.permute.xlu0 %623
  %vm625 = vcmp.lt.s32.totalorder %v205, 113
  %v626 = vsel %vm625, %v618, %v622
  %v627 = vsel %vm625, %v620, %v624
  %v628 = vsel %vm625, %v614, %v618
  %v629 = vsel %vm625, %v616, %v620
  %v630 = vsel %vm625, %v610, %v614
  %v631 = vsel %vm625, %v612, %v616
  %v632 = vsel %vm625, %v622, %v610
  %v633 = vsel %vm625, %v624, %v612
  %s634 = scalar_lea.vmem %s0, 5
  %v635 = vld [vmem:[%s634] ss:$8 sm:$0xf]
  %v637 = vlaneseq
  %v638 = vshrl.u32 %v637, 7
  %v639 = vsub.s32 0, %v638
  %v640 = vrot.slane %v635, %v639
  %v641 = vlaneseq
  %v642 = vshrl.u32 %v641, 7
  %v643 = vsub.s32 1, %v642
  %v644 = vrot.slane %v635, %v643
  %v645 = vlaneseq
  %v646 = vshrl.u32 %v645, 7
  %v647 = vsub.s32 2, %v646
  %v648 = vrot.slane %v635, %v647
  %v649 = vlaneseq
  %v650 = vshrl.u32 %v649, 7
  %v651 = vsub.s32 3, %v650
  %v652 = vrot.slane %v635, %v651
  %v657 = vmul.f32 %v630, %v640
  %v658 = vmul.f32 %v628, %v644
  %v659 = vmul.f32 %v626, %v648
  %v660 = vmul.f32 %v632, %v652
  %v661 = vmul.f32 %v631, %v640
  %v662 = vmul.f32 %v629, %v644
  %v663 = vmul.f32 %v627, %v648
  %v664 = vmul.f32 %v633, %v652
  %v665 = vpack.c.bf16 %v661, %v657
  %v666 = vpack.c.bf16 %v662, %v658
  %v667 = vpack.c.bf16 %v663, %v659
  %v668 = vpack.c.bf16 %v664, %v660
  %v673 = vunpack.c.l.b16 %v665
  %v674 = vunpack.c.l.b16 %v666
  %v675 = vunpack.c.l.b16 %v667
  %v676 = vunpack.c.l.b16 %v668
  %v677 = vunpack.c.h.b16 %v665
  %v678 = vunpack.c.h.b16 %v666
  %v679 = vunpack.c.h.b16 %v667
  %v680 = vunpack.c.h.b16 %v668
  %v681 = vpack.c.b16 %v674, %v673
  %v682 = vpack.c.b16 %v676, %v675
  %v683 = vpack.c.b16 %v678, %v677
  %v684 = vpack.c.b16 %v680, %v679
  %689 = vst [vmem:[#allocation3 + $0xa0] sm:$0xff] %v681
  %690 = vst [vmem:[#allocation3 + $0xa8] sm:$0xff] %v682
  %691 = vst [vmem:[#allocation3 + $0xb0] sm:$0xff] %v683
  %692 = vst [vmem:[#allocation3 + $0xb8] sm:$0xff] %v684
  %693 = vrot.lane.b32.xlu0 %v180, 112
  %v694 = vpop.permute.xlu0 %693
  %695 = vrot.lane.b32.xlu0 %v184, 112
  %v696 = vpop.permute.xlu0 %695
  %697 = vrot.lane.b32.xlu0 %v181, 112
  %v698 = vpop.permute.xlu0 %697
  %699 = vrot.lane.b32.xlu0 %v185, 112
  %v700 = vpop.permute.xlu0 %699
  %701 = vrot.lane.b32.xlu0 %v182, 112
  %v702 = vpop.permute.xlu0 %701
  %703 = vrot.lane.b32.xlu0 %v186, 112
  %v704 = vpop.permute.xlu0 %703
  %705 = vrot.lane.b32.xlu0 %v183, 112
  %v706 = vpop.permute.xlu0 %705
  %707 = vrot.lane.b32.xlu0 %v187, 112
  %v708 = vpop.permute.xlu0 %707
  %vm709 = vcmp.lt.s32.totalorder %v205, 112
  %v710 = vsel %vm709, %v702, %v706
  %v711 = vsel %vm709, %v704, %v708
  %v712 = vsel %vm709, %v698, %v702
  %v713 = vsel %vm709, %v700, %v704
  %v714 = vsel %vm709, %v694, %v698
  %v715 = vsel %vm709, %v696, %v700
  %v716 = vsel %vm709, %v706, %v694
  %v717 = vsel %vm709, %v708, %v696
  %s718 = scalar_lea.vmem %s0, 6
  %v719 = vld [vmem:[%s718] ss:$8 sm:$0xf]
  %v721 = vlaneseq
  %v722 = vshrl.u32 %v721, 7
  %v723 = vsub.s32 0, %v722
  %v724 = vrot.slane %v719, %v723
  %v725 = vlaneseq
  %v726 = vshrl.u32 %v725, 7
  %v727 = vsub.s32 1, %v726
  %v728 = vrot.slane %v719, %v727
  %v729 = vlaneseq
  %v730 = vshrl.u32 %v729, 7
  %v731 = vsub.s32 2, %v730
  %v732 = vrot.slane %v719, %v731
  %v733 = vlaneseq
  %v734 = vshrl.u32 %v733, 7
  %v735 = vsub.s32 3, %v734
  %v736 = vrot.slane %v719, %v735
  %v741 = vmul.f32 %v714, %v724
  %v742 = vmul.f32 %v712, %v728
  %v743 = vmul.f32 %v710, %v732
  %v744 = vmul.f32 %v716, %v736
  %v745 = vmul.f32 %v715, %v724
  %v746 = vmul.f32 %v713, %v728
  %v747 = vmul.f32 %v711, %v732
  %v748 = vmul.f32 %v717, %v736
  %v749 = vpack.c.bf16 %v745, %v741
  %v750 = vpack.c.bf16 %v746, %v742
  %v751 = vpack.c.bf16 %v747, %v743
  %v752 = vpack.c.bf16 %v748, %v744
  %v757 = vunpack.c.l.b16 %v749
  %v758 = vunpack.c.l.b16 %v750
  %v759 = vunpack.c.l.b16 %v751
  %v760 = vunpack.c.l.b16 %v752
  %v761 = vunpack.c.h.b16 %v749
  %v762 = vunpack.c.h.b16 %v750
  %v763 = vunpack.c.h.b16 %v751
  %v764 = vunpack.c.h.b16 %v752
  %v765 = vpack.c.b16 %v758, %v757
  %v766 = vpack.c.b16 %v760, %v759
  %v767 = vpack.c.b16 %v762, %v761
  %v768 = vpack.c.b16 %v764, %v763
  %773 = vst [vmem:[#allocation3 + $0xc0] sm:$0xff] %v765
  %774 = vst [vmem:[#allocation3 + $0xc8] sm:$0xff] %v766
  %775 = vst [vmem:[#allocation3 + $0xd0] sm:$0xff] %v767
  %776 = vst [vmem:[#allocation3 + $0xd8] sm:$0xff] %v768
  %777 = vrot.lane.b32.xlu0 %v180, 111
  %v778 = vpop.permute.xlu0 %777
  %779 = vrot.lane.b32.xlu0 %v184, 111
  %v780 = vpop.permute.xlu0 %779
  %781 = vrot.lane.b32.xlu0 %v181, 111
  %v782 = vpop.permute.xlu0 %781
  %783 = vrot.lane.b32.xlu0 %v185, 111
  %v784 = vpop.permute.xlu0 %783
  %785 = vrot.lane.b32.xlu0 %v182, 111
  %v786 = vpop.permute.xlu0 %785
  %787 = vrot.lane.b32.xlu0 %v186, 111
  %v788 = vpop.permute.xlu0 %787
  %789 = vrot.lane.b32.xlu0 %v183, 111
  %v790 = vpop.permute.xlu0 %789
  %791 = vrot.lane.b32.xlu0 %v187, 111
  %v792 = vpop.permute.xlu0 %791
  %vm793 = vcmp.lt.s32.totalorder %v205, 111
  %v794 = vsel %vm793, %v786, %v790
  %v795 = vsel %vm793, %v788, %v792
  %v796 = vsel %vm793, %v782, %v786
  %v797 = vsel %vm793, %v784, %v788
  %v798 = vsel %vm793, %v778, %v782
  %v799 = vsel %vm793, %v780, %v784
  %v800 = vsel %vm793, %v790, %v778
  %v801 = vsel %vm793, %v792, %v780
  %s802 = scalar_lea.vmem %s0, 7
  %v803 = vld [vmem:[%s802] ss:$8 sm:$0xf]
  %v805 = vlaneseq
  %v806 = vshrl.u32 %v805, 7
  %v807 = vsub.s32 0, %v806
  %v808 = vrot.slane %v803, %v807
  %v809 = vlaneseq
  %v810 = vshrl.u32 %v809, 7
  %v811 = vsub.s32 1, %v810
  %v812 = vrot.slane %v803, %v811
  %v813 = vlaneseq
  %v814 = vshrl.u32 %v813, 7
  %v815 = vsub.s32 2, %v814
  %v816 = vrot.slane %v803, %v815
  %v817 = vlaneseq
  %v818 = vshrl.u32 %v817, 7
  %v819 = vsub.s32 3, %v818
  %v820 = vrot.slane %v803, %v819
  %v825 = vmul.f32 %v798, %v808
  %v826 = vmul.f32 %v796, %v812
  %v827 = vmul.f32 %v794, %v816
  %v828 = vmul.f32 %v800, %v820
  %v829 = vmul.f32 %v799, %v808
  %v830 = vmul.f32 %v797, %v812
  %v831 = vmul.f32 %v795, %v816
  %v832 = vmul.f32 %v801, %v820
  %v833 = vpack.c.bf16 %v829, %v825
  %v834 = vpack.c.bf16 %v830, %v826
  %v835 = vpack.c.bf16 %v831, %v827
  %v836 = vpack.c.bf16 %v832, %v828
  %v841 = vunpack.c.l.b16 %v833
  %v842 = vunpack.c.l.b16 %v834
  %v843 = vunpack.c.l.b16 %v835
  %v844 = vunpack.c.l.b16 %v836
  %v845 = vunpack.c.h.b16 %v833
  %v846 = vunpack.c.h.b16 %v834
  %v847 = vunpack.c.h.b16 %v835
  %v848 = vunpack.c.h.b16 %v836
  %v849 = vpack.c.b16 %v842, %v841
  %v850 = vpack.c.b16 %v844, %v843
  %v851 = vpack.c.b16 %v846, %v845
  %v852 = vpack.c.b16 %v848, %v847
  %857 = vst [vmem:[#allocation3 + $0xe0] sm:$0xff] %v849
  %858 = vst [vmem:[#allocation3 + $0xe8] sm:$0xff] %v850
  %859 = vst [vmem:[#allocation3 + $0xf0] sm:$0xff] %v851
  %860 = vst [vmem:[#allocation3 + $0xf8] sm:$0xff] %v852
  %v861 = vld [vmem:[%s3] sm:$0xf]
  %v862 = vld [vmem:[%s3 + $0x4] sm:$0xf]
  %v863 = vpack.c.bf16 %v184, %v180
  %v864 = vpack.c.bf16 %v185, %v181
  %v865 = vpack.c.bf16 %v186, %v182
  %v866 = vpack.c.bf16 %v187, %v183
  %v867 = vld [vmem:[%s4] sm:$0xf]
  %v868 = vld [vmem:[%s4 + $0x4] sm:$0xf]
  %v869 = vld [vmem:[#allocation3] sm:$0xff]
  %v870 = vld [vmem:[#allocation3 + $0x8] sm:$0xff]
  %v871 = vld [vmem:[#allocation3 + $0x10] sm:$0xff]
  %v872 = vld [vmem:[#allocation3 + $0x18] sm:$0xff]
  %v873 = vld [vmem:[#allocation3 + $0x20] sm:$0xff]
  %v874 = vld [vmem:[#allocation3 + $0x28] sm:$0xff]
  %v875 = vld [vmem:[#allocation3 + $0x30] sm:$0xff]
  %v876 = vld [vmem:[#allocation3 + $0x38] sm:$0xff]
  %v877 = vld [vmem:[#allocation3 + $0x40] sm:$0xff]
  %v878 = vld [vmem:[#allocation3 + $0x48] sm:$0xff]
  %v879 = vld [vmem:[#allocation3 + $0x50] sm:$0xff]
  %v880 = vld [vmem:[#allocation3 + $0x58] sm:$0xff]
  %v881 = vld [vmem:[#allocation3 + $0x60] sm:$0xff]
  %v882 = vld [vmem:[#allocation3 + $0x68] sm:$0xff]
  %v883 = vld [vmem:[#allocation3 + $0x70] sm:$0xff]
  %v884 = vld [vmem:[#allocation3 + $0x78] sm:$0xff]
  %v885 = vld [vmem:[#allocation3 + $0x80] sm:$0xff]
  %v886 = vld [vmem:[#allocation3 + $0x88] sm:$0xff]
  %v887 = vld [vmem:[#allocation3 + $0x90] sm:$0xff]
  %v888 = vld [vmem:[#allocation3 + $0x98] sm:$0xff]
  %v889 = vld [vmem:[#allocation3 + $0xa0] sm:$0xff]
  %v890 = vld [vmem:[#allocation3 + $0xa8] sm:$0xff]
  %v891 = vld [vmem:[#allocation3 + $0xb0] sm:$0xff]
  %v892 = vld [vmem:[#allocation3 + $0xb8] sm:$0xff]
  %v893 = vld [vmem:[#allocation3 + $0xc0] sm:$0xff]
  %v894 = vld [vmem:[#allocation3 + $0xc8] sm:$0xff]
  %v895 = vld [vmem:[#allocation3 + $0xd0] sm:$0xff]
  %v896 = vld [vmem:[#allocation3 + $0xd8] sm:$0xff]
  %v897 = vld [vmem:[#allocation3 + $0xe0] sm:$0xff]
  %v898 = vld [vmem:[#allocation3 + $0xe8] sm:$0xff]
  %v899 = vld [vmem:[#allocation3 + $0xf0] sm:$0xff]
  %v900 = vld [vmem:[#allocation3 + $0xf8] sm:$0xff]
  %v903 = vunpack.c.l.b16 %v867
  %v904 = vunpack.c.l.b16 %v868
  %v905 = vpack.c.b16 %v904, %v903
  %v939 = vunpack.c.l.b16 %v869
  %v940 = vunpack.c.h.b16 %v869
  %v941 = vunpack.c.l.b16 %v870
  %v942 = vunpack.c.h.b16 %v870
  %v943 = vunpack.c.l.b16 %v871
  %v944 = vunpack.c.h.b16 %v871
  %v945 = vunpack.c.l.b16 %v872
  %v946 = vunpack.c.h.b16 %v872
  %v947 = vunpack.c.l.b16 %v873
  %v948 = vunpack.c.h.b16 %v873
  %v949 = vunpack.c.l.b16 %v874
  %v950 = vunpack.c.h.b16 %v874
  %v951 = vunpack.c.l.b16 %v875
  %v952 = vunpack.c.h.b16 %v875
  %v953 = vunpack.c.l.b16 %v876
  %v954 = vunpack.c.h.b16 %v876
  %v955 = vunpack.c.l.b16 %v877
  %v956 = vunpack.c.h.b16 %v877
  %v957 = vunpack.c.l.b16 %v878
  %v958 = vunpack.c.h.b16 %v878
  %v959 = vunpack.c.l.b16 %v879
  %v960 = vunpack.c.h.b16 %v879
  %v961 = vunpack.c.l.b16 %v880
  %v962 = vunpack.c.h.b16 %v880
  %v963 = vunpack.c.l.b16 %v881
  %v964 = vunpack.c.h.b16 %v881
  %v965 = vunpack.c.l.b16 %v882
  %v966 = vunpack.c.h.b16 %v882
  %v967 = vunpack.c.l.b16 %v883
  %v968 = vunpack.c.h.b16 %v883
  %v969 = vunpack.c.l.b16 %v884
  %v970 = vunpack.c.h.b16 %v884
  %v971 = vunpack.c.l.b16 %v885
  %v972 = vunpack.c.h.b16 %v885
  %v973 = vunpack.c.l.b16 %v886
  %v974 = vunpack.c.h.b16 %v886
  %v975 = vunpack.c.l.b16 %v887
  %v976 = vunpack.c.h.b16 %v887
  %v977 = vunpack.c.l.b16 %v888
  %v978 = vunpack.c.h.b16 %v888
  %v979 = vunpack.c.l.b16 %v889
  %v980 = vunpack.c.h.b16 %v889
  %v981 = vunpack.c.l.b16 %v890
  %v982 = vunpack.c.h.b16 %v890
  %v983 = vunpack.c.l.b16 %v891
  %v984 = vunpack.c.h.b16 %v891
  %v985 = vunpack.c.l.b16 %v892
  %v986 = vunpack.c.h.b16 %v892
  %v987 = vunpack.c.l.b16 %v893
  %v988 = vunpack.c.h.b16 %v893
  %v989 = vunpack.c.l.b16 %v894
  %v990 = vunpack.c.h.b16 %v894
  %v991 = vunpack.c.l.b16 %v895
  %v992 = vunpack.c.h.b16 %v895
  %v993 = vunpack.c.l.b16 %v896
  %v994 = vunpack.c.h.b16 %v896
  %v995 = vunpack.c.l.b16 %v897
  %v996 = vunpack.c.h.b16 %v897
  %v997 = vunpack.c.l.b16 %v898
  %v998 = vunpack.c.h.b16 %v898
  %v999 = vunpack.c.l.b16 %v899
  %v1000 = vunpack.c.h.b16 %v899
  %v1001 = vunpack.c.l.b16 %v900
  %v1002 = vunpack.c.h.b16 %v900
  %v1003 = vpack.c.b16 %v943, %v939
  %v1004 = vpack.c.b16 %v944, %v940
  %v1005 = vpack.c.b16 %v945, %v941
  %v1006 = vpack.c.b16 %v946, %v942
  %v1007 = vpack.c.b16 %v951, %v947
  %v1008 = vpack.c.b16 %v952, %v948
  %v1009 = vpack.c.b16 %v953, %v949
  %v1010 = vpack.c.b16 %v954, %v950
  %v1011 = vpack.c.b16 %v959, %v955
  %v1012 = vpack.c.b16 %v960, %v956
  %v1013 = vpack.c.b16 %v961, %v957
  %v1014 = vpack.c.b16 %v962, %v958
  %v1015 = vpack.c.b16 %v967, %v963
  %v1016 = vpack.c.b16 %v968, %v964
  %v1017 = vpack.c.b16 %v969, %v965
  %v1018 = vpack.c.b16 %v970, %v966
  %v1019 = vpack.c.b16 %v975, %v971
  %v1020 = vpack.c.b16 %v976, %v972
  %v1021 = vpack.c.b16 %v977, %v973
  %v1022 = vpack.c.b16 %v978, %v974
  %v1023 = vpack.c.b16 %v983, %v979
  %v1024 = vpack.c.b16 %v984, %v980
  %v1025 = vpack.c.b16 %v985, %v981
  %v1026 = vpack.c.b16 %v986, %v982
  %v1027 = vpack.c.b16 %v991, %v987
  %v1028 = vpack.c.b16 %v992, %v988
  %v1029 = vpack.c.b16 %v993, %v989
  %v1030 = vpack.c.b16 %v994, %v990
  %v1031 = vpack.c.b16 %v999, %v995
  %v1032 = vpack.c.b16 %v1000, %v996
  %v1033 = vpack.c.b16 %v1001, %v997
  %v1034 = vpack.c.b16 %v1002, %v998
  %1067 = vmatprep.subr.bf16.mxu0 %v1032
  %1068 = vmatpush1.bf16.msra.mxu0 %v1031
  %1069 = vmatprep.subr.bf16.mxu0 %v1028
  %1070 = vmatpush1.bf16.msra.mxu0 %v1027
  %1071 = vmatprep.subr.bf16.mxu0 %v1024
  %1072 = vmatpush1.bf16.msra.mxu0 %v1023
  %1073 = vmatprep.subr.bf16.mxu0 %v1020
  %1074 = vmatpush1.bf16.msra.mxu0 %v1019
  %1075 = vmatprep.subr.bf16.mxu0 %v1016
  %1076 = vmatpush1.bf16.msra.mxu0 %v1015
  %1077 = vmatprep.subr.bf16.mxu0 %v1012
  %1078 = vmatpush1.bf16.msra.mxu0 %v1011
  %1079 = vmatprep.subr.bf16.mxu0 %v1008
  %1080 = vmatpush1.bf16.msra.mxu0 %v1007
  %1081 = vmatprep.subr.bf16.mxu0 %v1004
  %1082 = vmatpush1.bf16.msra.mxu0 %v1003
  %1083 = vmatprep.subr.bf16.mxu0 0
  %1084 = vmatpush2.bf16.msra.mxu0 0
  %1085 = vmatprep.subr.bf16.mxu0 0
  %1086 = vmatpush2.bf16.msra.mxu0 0
  %1087 = vmatprep.subr.bf16.mxu0 0
  %1088 = vmatpush2.bf16.msra.mxu0 0
  %1089 = vmatprep.subr.bf16.mxu0 0
  %1090 = vmatpush2.bf16.msra.mxu0 0
  %1091 = vmatprep.subr.bf16.mxu0 0
  %1092 = vmatpush2.bf16.msra.mxu0 0
  %1093 = vmatprep.subr.bf16.mxu0 0
  %1094 = vmatpush2.bf16.msra.mxu0 0
  %1095 = vmatprep.subr.bf16.mxu0 0
  %1096 = vmatpush2.bf16.msra.mxu0 0
  %1097 = vmatprep.subr.bf16.mxu0 0
  %1098 = vmatpush2.bf16.msra.mxu0 0
  %1099 = vmatprep.mubr.bf16.mxu0 0
  %1100 = vmatmul.mubr.bf16.gmra.mxu0 %v905
  %v1101 = vpop.f32.mrf.mxu0
  %v1102 = vadd.f32 0.0, %v1101
  %v1103 = vpop.f32.mrf.mxu0
  %v1104 = vadd.f32 0.0, %v1103
  %v1105 = vpop.f32.mrf.mxu0
  %v1106 = vadd.f32 0.0, %v1105
  %v1107 = vpop.f32.mrf.mxu0
  %v1108 = vadd.f32 0.0, %v1107
  %1109 = vdwg.mxu0
  %1110 = vmatprep.subr.bf16.mxu0 %v1034
  %1111 = vmatpush1.bf16.msra.mxu0 %v1033
  %1112 = vmatprep.subr.bf16.mxu0 %v1030
  %1113 = vmatpush1.bf16.msra.mxu0 %v1029
  %1114 = vmatprep.subr.bf16.mxu0 %v1026
  %1115 = vmatpush1.bf16.msra.mxu0 %v1025
  %1116 = vmatprep.subr.bf16.mxu0 %v1022
  %1117 = vmatpush1.bf16.msra.mxu0 %v1021
  %1118 = vmatprep.subr.bf16.mxu0 %v1018
  %1119 = vmatpush1.bf16.msra.mxu0 %v1017
  %1120 = vmatprep.subr.bf16.mxu0 %v1014
  %1121 = vmatpush1.bf16.msra.mxu0 %v1013
  %1122 = vmatprep.subr.bf16.mxu0 %v1010
  %1123 = vmatpush1.bf16.msra.mxu0 %v1009
  %1124 = vmatprep.subr.bf16.mxu0 %v1006
  %1125 = vmatpush1.bf16.msra.mxu0 %v1005
  %1126 = vmatprep.subr.bf16.mxu0 0
  %1127 = vmatpush2.bf16.msra.mxu0 0
  %1128 = vmatprep.subr.bf16.mxu0 0
  %1129 = vmatpush2.bf16.msra.mxu0 0
  %1130 = vmatprep.subr.bf16.mxu0 0
  %1131 = vmatpush2.bf16.msra.mxu0 0
  %1132 = vmatprep.subr.bf16.mxu0 0
  %1133 = vmatpush2.bf16.msra.mxu0 0
  %1134 = vmatprep.subr.bf16.mxu0 0
  %1135 = vmatpush2.bf16.msra.mxu0 0
  %1136 = vmatprep.subr.bf16.mxu0 0
  %1137 = vmatpush2.bf16.msra.mxu0 0
  %1138 = vmatprep.subr.bf16.mxu0 0
  %1139 = vmatpush2.bf16.msra.mxu0 0
  %1140 = vmatprep.subr.bf16.mxu0 0
  %1141 = vmatpush2.bf16.msra.mxu0 0
  %1142 = vmatprep.mubr.bf16.mxu0 0
  %1143 = vmatmul.mubr.bf16.gmra.mxu0 %v905
  %v1144 = vpop.f32.mrf.mxu0
  %v1145 = vadd.f32 0.0, %v1144
  %v1146 = vpop.f32.mrf.mxu0
  %v1147 = vadd.f32 0.0, %v1146
  %v1148 = vpop.f32.mrf.mxu0
  %v1149 = vadd.f32 0.0, %v1148
  %v1150 = vpop.f32.mrf.mxu0
  %v1151 = vadd.f32 0.0, %v1150
  %1152 = vdwg.mxu0
  %v1155 = vunpack.c.l.b16 %v861
  %v1156 = vunpack.c.l.b16 %v862
  %v1157 = vpack.c.b16 %v1156, %v1155
  %v1159 = vsel %vm43, %v1157, 0
  %1161 = vmatprep.subr.bf16.mxu0 0
  %1162 = vmatpush1.bf16.msra.mxu0 0
  %1163 = vmatprep.subr.bf16.mxu0 0
  %1164 = vmatpush1.bf16.msra.mxu0 0
  %1165 = vmatprep.subr.bf16.mxu0 0
  %1166 = vmatpush1.bf16.msra.mxu0 0
  %1167 = vmatprep.subr.bf16.mxu0 0
  %1168 = vmatpush1.bf16.msra.mxu0 0
  %1169 = vmatprep.subr.bf16.mxu0 0
  %1170 = vmatpush1.bf16.msra.mxu0 0
  %1171 = vmatprep.subr.bf16.mxu0 0
  %1172 = vmatpush1.bf16.msra.mxu0 0
  %1173 = vmatprep.subr.bf16.mxu0 0
  %1174 = vmatpush1.bf16.msra.mxu0 0
  %1175 = vmatprep.subr.bf16.mxu0 %v864
  %1176 = vmatpush1.bf16.msra.mxu0 %v863
  %1177 = vmatprep.subr.bf16.mxu0 0
  %1178 = vmatpush2.bf16.msra.mxu0 0
  %1179 = vmatprep.subr.bf16.mxu0 0
  %1180 = vmatpush2.bf16.msra.mxu0 0
  %1181 = vmatprep.subr.bf16.mxu0 0
  %1182 = vmatpush2.bf16.msra.mxu0 0
  %1183 = vmatprep.subr.bf16.mxu0 0
  %1184 = vmatpush2.bf16.msra.mxu0 0
  %1185 = vmatprep.subr.bf16.mxu0 0
  %1186 = vmatpush2.bf16.msra.mxu0 0
  %1187 = vmatprep.subr.bf16.mxu0 0
  %1188 = vmatpush2.bf16.msra.mxu0 0
  %1189 = vmatprep.subr.bf16.mxu0 0
  %1190 = vmatpush2.bf16.msra.mxu0 0
  %1191 = vmatprep.subr.bf16.mxu0 0
  %1192 = vmatpush2.bf16.msra.mxu0 0
  %1193 = vmatprep.mubr.bf16.mxu0 0
  %1194 = vmatmul.mubr.bf16.gmra.mxu0 %v1159
  %v1195 = vpop.f32.mrf.mxu0
  %v1196 = vadd.f32 %v1102, %v1195
  %v1197 = vpop.f32.mrf.mxu0
  %v1198 = vadd.f32 %v1104, %v1197
  %v1199 = vpop.f32.mrf.mxu0
  %v1200 = vadd.f32 %v1106, %v1199
  %v1201 = vpop.f32.mrf.mxu0
  %v1202 = vadd.f32 %v1108, %v1201
  %1203 = vdwg.mxu0
  %1204 = vmatprep.subr.bf16.mxu0 0
  %1205 = vmatpush1.bf16.msra.mxu0 0
  %1206 = vmatprep.subr.bf16.mxu0 0
  %1207 = vmatpush1.bf16.msra.mxu0 0
  %1208 = vmatprep.subr.bf16.mxu0 0
  %1209 = vmatpush1.bf16.msra.mxu0 0
  %1210 = vmatprep.subr.bf16.mxu0 0
  %1211 = vmatpush1.bf16.msra.mxu0 0
  %1212 = vmatprep.subr.bf16.mxu0 0
  %1213 = vmatpush1.bf16.msra.mxu0 0
  %1214 = vmatprep.subr.bf16.mxu0 0
  %1215 = vmatpush1.bf16.msra.mxu0 0
  %1216 = vmatprep.subr.bf16.mxu0 0
  %1217 = vmatpush1.bf16.msra.mxu0 0
  %1218 = vmatprep.subr.bf16.mxu0 %v866
  %1219 = vmatpush1.bf16.msra.mxu0 %v865
  %1220 = vmatprep.subr.bf16.mxu0 0
  %1221 = vmatpush2.bf16.msra.mxu0 0
  %1222 = vmatprep.subr.bf16.mxu0 0
  %1223 = vmatpush2.bf16.msra.mxu0 0
  %1224 = vmatprep.subr.bf16.mxu0 0
  %1225 = vmatpush2.bf16.msra.mxu0 0
  %1226 = vmatprep.subr.bf16.mxu0 0
  %1227 = vmatpush2.bf16.msra.mxu0 0
  %1228 = vmatprep.subr.bf16.mxu0 0
  %1229 = vmatpush2.bf16.msra.mxu0 0
  %1230 = vmatprep.subr.bf16.mxu0 0
  %1231 = vmatpush2.bf16.msra.mxu0 0
  %1232 = vmatprep.subr.bf16.mxu0 0
  %1233 = vmatpush2.bf16.msra.mxu0 0
  %1234 = vmatprep.subr.bf16.mxu0 0
  %1235 = vmatpush2.bf16.msra.mxu0 0
  %1236 = vmatprep.mubr.bf16.mxu0 0
  %1237 = vmatmul.mubr.bf16.gmra.mxu0 %v1159
  %v1238 = vpop.f32.mrf.mxu0
  %v1239 = vadd.f32 %v1145, %v1238
  %v1240 = vpop.f32.mrf.mxu0
  %v1241 = vadd.f32 %v1147, %v1240
  %v1242 = vpop.f32.mrf.mxu0
  %v1243 = vadd.f32 %v1149, %v1242
  %v1244 = vpop.f32.mrf.mxu0
  %v1245 = vadd.f32 %v1151, %v1244
  %1246 = vdwg.mxu0
  %v1247 = vmax.f32 %v1196, 0.0
  %v1248 = vmax.f32 %v1198, 0.0
  %v1249 = vmax.f32 %v1239, 0.0
  %v1250 = vmax.f32 %v1241, 0.0
  %v1251 = vmax.f32 %v1200, 0.0
  %v1252 = vmax.f32 %v1202, 0.0
  %v1253 = vmax.f32 %v1243, 0.0
  %v1254 = vmax.f32 %v1245, 0.0
  %1255 = vst [vmem:[#allocation2] sm:$0xff] %v1247
  %1256 = vst [vmem:[#allocation2 + $0x8] sm:$0xff] %v1248
  %1257 = vst [vmem:[#allocation2 + $0x10] sm:$0xff] %v1249
  %1258 = vst [vmem:[#allocation2 + $0x18] sm:$0xff] %v1250
  %1259 = vst [vmem:[#allocation2 + $0x20] sm:$0xff] %v1251
  %1260 = vst [vmem:[#allocation2 + $0x28] sm:$0xff] %v1252
  %1261 = vst [vmem:[#allocation2 + $0x30] sm:$0xff] %v1253
  %1262 = vst [vmem:[#allocation2 + $0x38] sm:$0xff] %v1254
  %v1263 = vld [vmem:[#allocation2] sm:$0xff]
  %v1264 = vld [vmem:[#allocation2 + $0x8] sm:$0xff]
  %v1265 = vld [vmem:[#allocation2 + $0x10] sm:$0xff]
  %v1266 = vld [vmem:[#allocation2 + $0x18] sm:$0xff]
  %v1267 = vld [vmem:[#allocation2 + $0x20] sm:$0xff]
  %v1268 = vld [vmem:[#allocation2 + $0x28] sm:$0xff]
  %v1269 = vld [vmem:[#allocation2 + $0x30] sm:$0xff]
  %v1270 = vld [vmem:[#allocation2 + $0x38] sm:$0xff]
  %1271 = vrot.lane.b32.xlu0 %v1263, 17
  %v1272 = vpop.permute.xlu0 %1271
  %1273 = vrot.lane.b32.xlu0 %v1267, 17
  %v1274 = vpop.permute.xlu0 %1273
  %1275 = vrot.lane.b32.xlu0 %v1264, 17
  %v1276 = vpop.permute.xlu0 %1275
  %1277 = vrot.lane.b32.xlu0 %v1268, 17
  %v1278 = vpop.permute.xlu0 %1277
  %1279 = vrot.lane.b32.xlu0 %v1265, 17
  %v1280 = vpop.permute.xlu0 %1279
  %1281 = vrot.lane.b32.xlu0 %v1269, 17
  %v1282 = vpop.permute.xlu0 %1281
  %1283 = vrot.lane.b32.xlu0 %v1266, 17
  %v1284 = vpop.permute.xlu0 %1283
  %1285 = vrot.lane.b32.xlu0 %v1270, 17
  %v1286 = vpop.permute.xlu0 %1285
  %v1287 = vsel %vm206, %v1280, %v1284
  %v1288 = vsel %vm206, %v1282, %v1286
  %v1289 = vsel %vm206, %v1276, %v1280
  %v1290 = vsel %vm206, %v1278, %v1282
  %v1291 = vsel %vm206, %v1272, %v1276
  %v1292 = vsel %vm206, %v1274, %v1278
  %v1293 = vsel %vm206, %v1284, %v1272
  %v1294 = vsel %vm206, %v1286, %v1274
  %v1295 = vld [vmem:[%s0] ss:$8 sm:$0xf]
  %v1297 = vlaneseq
  %v1298 = vshrl.u32 %v1297, 7
  %v1299 = vsub.s32 0, %v1298
  %v1300 = vrot.slane %v1295, %v1299
  %v1301 = vlaneseq
  %v1302 = vshrl.u32 %v1301, 7
  %v1303 = vsub.s32 1, %v1302
  %v1304 = vrot.slane %v1295, %v1303
  %v1305 = vlaneseq
  %v1306 = vshrl.u32 %v1305, 7
  %v1307 = vsub.s32 2, %v1306
  %v1308 = vrot.slane %v1295, %v1307
  %v1309 = vlaneseq
  %v1310 = vshrl.u32 %v1309, 7
  %v1311 = vsub.s32 3, %v1310
  %v1312 = vrot.slane %v1295, %v1311
  %v1317 = vmul.f32 %v1293, %v1300
  %v1318 = vmul.f32 %v1291, %v1304
  %v1319 = vmul.f32 %v1289, %v1308
  %v1320 = vmul.f32 %v1287, %v1312
  %v1321 = vmul.f32 %v1294, %v1300
  %v1322 = vmul.f32 %v1292, %v1304
  %v1323 = vmul.f32 %v1290, %v1308
  %v1324 = vmul.f32 %v1288, %v1312
  %v1325 = vpack.c.bf16 %v1321, %v1317
  %v1326 = vpack.c.bf16 %v1322, %v1318
  %v1327 = vpack.c.bf16 %v1323, %v1319
  %v1328 = vpack.c.bf16 %v1324, %v1320
  %v1333 = vunpack.c.l.b16 %v1325
  %v1334 = vunpack.c.l.b16 %v1326
  %v1335 = vunpack.c.l.b16 %v1327
  %v1336 = vunpack.c.l.b16 %v1328
  %v1337 = vunpack.c.h.b16 %v1325
  %v1338 = vunpack.c.h.b16 %v1326
  %v1339 = vunpack.c.h.b16 %v1327
  %v1340 = vunpack.c.h.b16 %v1328
  %v1341 = vpack.c.b16 %v1334, %v1333
  %v1342 = vpack.c.b16 %v1336, %v1335
  %v1343 = vpack.c.b16 %v1338, %v1337
  %v1344 = vpack.c.b16 %v1340, %v1339
  %1349 = vst [vmem:[#allocation3] sm:$0xff] %v1341
  %1350 = vst [vmem:[#allocation3 + $0x8] sm:$0xff] %v1342
  %1351 = vst [vmem:[#allocation3 + $0x10] sm:$0xff] %v1343
  %1352 = vst [vmem:[#allocation3 + $0x18] sm:$0xff] %v1344
  %1353 = vrot.lane.b32.xlu0 %v1263, 16
  %v1354 = vpop.permute.xlu0 %1353
  %1355 = vrot.lane.b32.xlu0 %v1267, 16
  %v1356 = vpop.permute.xlu0 %1355
  %1357 = vrot.lane.b32.xlu0 %v1264, 16
  %v1358 = vpop.permute.xlu0 %1357
  %1359 = vrot.lane.b32.xlu0 %v1268, 16
  %v1360 = vpop.permute.xlu0 %1359
  %1361 = vrot.lane.b32.xlu0 %v1265, 16
  %v1362 = vpop.permute.xlu0 %1361
  %1363 = vrot.lane.b32.xlu0 %v1269, 16
  %v1364 = vpop.permute.xlu0 %1363
  %1365 = vrot.lane.b32.xlu0 %v1266, 16
  %v1366 = vpop.permute.xlu0 %1365
  %1367 = vrot.lane.b32.xlu0 %v1270, 16
  %v1368 = vpop.permute.xlu0 %1367
  %v1369 = vsel %vm289, %v1362, %v1366
  %v1370 = vsel %vm289, %v1364, %v1368
  %v1371 = vsel %vm289, %v1358, %v1362
  %v1372 = vsel %vm289, %v1360, %v1364
  %v1373 = vsel %vm289, %v1354, %v1358
  %v1374 = vsel %vm289, %v1356, %v1360
  %v1375 = vsel %vm289, %v1366, %v1354
  %v1376 = vsel %vm289, %v1368, %v1356
  %v1377 = vld [vmem:[%s298] ss:$8 sm:$0xf]
  %v1379 = vlaneseq
  %v1380 = vshrl.u32 %v1379, 7
  %v1381 = vsub.s32 0, %v1380
  %v1382 = vrot.slane %v1377, %v1381
  %v1383 = vlaneseq
  %v1384 = vshrl.u32 %v1383, 7
  %v1385 = vsub.s32 1, %v1384
  %v1386 = vrot.slane %v1377, %v1385
  %v1387 = vlaneseq
  %v1388 = vshrl.u32 %v1387, 7
  %v1389 = vsub.s32 2, %v1388
  %v1390 = vrot.slane %v1377, %v1389
  %v1391 = vlaneseq
  %v1392 = vshrl.u32 %v1391, 7
  %v1393 = vsub.s32 3, %v1392
  %v1394 = vrot.slane %v1377, %v1393
  %v1399 = vmul.f32 %v1375, %v1382
  %v1400 = vmul.f32 %v1373, %v1386
  %v1401 = vmul.f32 %v1371, %v1390
  %v1402 = vmul.f32 %v1369, %v1394
  %v1403 = vmul.f32 %v1376, %v1382
  %v1404 = vmul.f32 %v1374, %v1386
  %v1405 = vmul.f32 %v1372, %v1390
  %v1406 = vmul.f32 %v1370, %v1394
  %v1407 = vpack.c.bf16 %v1403, %v1399
  %v1408 = vpack.c.bf16 %v1404, %v1400
  %v1409 = vpack.c.bf16 %v1405, %v1401
  %v1410 = vpack.c.bf16 %v1406, %v1402
  %v1415 = vunpack.c.l.b16 %v1407
  %v1416 = vunpack.c.l.b16 %v1408
  %v1417 = vunpack.c.l.b16 %v1409
  %v1418 = vunpack.c.l.b16 %v1410
  %v1419 = vunpack.c.h.b16 %v1407
  %v1420 = vunpack.c.h.b16 %v1408
  %v1421 = vunpack.c.h.b16 %v1409
  %v1422 = vunpack.c.h.b16 %v1410
  %v1423 = vpack.c.b16 %v1416, %v1415
  %v1424 = vpack.c.b16 %v1418, %v1417
  %v1425 = vpack.c.b16 %v1420, %v1419
  %v1426 = vpack.c.b16 %v1422, %v1421
  %1431 = vst [vmem:[#allocation3 + $0x20] sm:$0xff] %v1423
  %1432 = vst [vmem:[#allocation3 + $0x28] sm:$0xff] %v1424
  %1433 = vst [vmem:[#allocation3 + $0x30] sm:$0xff] %v1425
  %1434 = vst [vmem:[#allocation3 + $0x38] sm:$0xff] %v1426
  %1435 = vrot.lane.b32.xlu0 %v1263, 15
  %v1436 = vpop.permute.xlu0 %1435
  %1437 = vrot.lane.b32.xlu0 %v1267, 15
  %v1438 = vpop.permute.xlu0 %1437
  %1439 = vrot.lane.b32.xlu0 %v1264, 15
  %v1440 = vpop.permute.xlu0 %1439
  %1441 = vrot.lane.b32.xlu0 %v1268, 15
  %v1442 = vpop.permute.xlu0 %1441
  %1443 = vrot.lane.b32.xlu0 %v1265, 15
  %v1444 = vpop.permute.xlu0 %1443
  %1445 = vrot.lane.b32.xlu0 %v1269, 15
  %v1446 = vpop.permute.xlu0 %1445
  %1447 = vrot.lane.b32.xlu0 %v1266, 15
  %v1448 = vpop.permute.xlu0 %1447
  %1449 = vrot.lane.b32.xlu0 %v1270, 15
  %v1450 = vpop.permute.xlu0 %1449
  %v1451 = vsel %vm373, %v1444, %v1448
  %v1452 = vsel %vm373, %v1446, %v1450
  %v1453 = vsel %vm373, %v1440, %v1444
  %v1454 = vsel %vm373, %v1442, %v1446
  %v1455 = vsel %vm373, %v1436, %v1440
  %v1456 = vsel %vm373, %v1438, %v1442
  %v1457 = vsel %vm373, %v1448, %v1436
  %v1458 = vsel %vm373, %v1450, %v1438
  %v1459 = vld [vmem:[%s382] ss:$8 sm:$0xf]
  %v1461 = vlaneseq
  %v1462 = vshrl.u32 %v1461, 7
  %v1463 = vsub.s32 0, %v1462
  %v1464 = vrot.slane %v1459, %v1463
  %v1465 = vlaneseq
  %v1466 = vshrl.u32 %v1465, 7
  %v1467 = vsub.s32 1, %v1466
  %v1468 = vrot.slane %v1459, %v1467
  %v1469 = vlaneseq
  %v1470 = vshrl.u32 %v1469, 7
  %v1471 = vsub.s32 2, %v1470
  %v1472 = vrot.slane %v1459, %v1471
  %v1473 = vlaneseq
  %v1474 = vshrl.u32 %v1473, 7
  %v1475 = vsub.s32 3, %v1474
  %v1476 = vrot.slane %v1459, %v1475
  %v1481 = vmul.f32 %v1457, %v1464
  %v1482 = vmul.f32 %v1455, %v1468
  %v1483 = vmul.f32 %v1453, %v1472
  %v1484 = vmul.f32 %v1451, %v1476
  %v1485 = vmul.f32 %v1458, %v1464
  %v1486 = vmul.f32 %v1456, %v1468
  %v1487 = vmul.f32 %v1454, %v1472
  %v1488 = vmul.f32 %v1452, %v1476
  %v1489 = vpack.c.bf16 %v1485, %v1481
  %v1490 = vpack.c.bf16 %v1486, %v1482
  %v1491 = vpack.c.bf16 %v1487, %v1483
  %v1492 = vpack.c.bf16 %v1488, %v1484
  %v1497 = vunpack.c.l.b16 %v1489
  %v1498 = vunpack.c.l.b16 %v1490
  %v1499 = vunpack.c.l.b16 %v1491
  %v1500 = vunpack.c.l.b16 %v1492
  %v1501 = vunpack.c.h.b16 %v1489
  %v1502 = vunpack.c.h.b16 %v1490
  %v1503 = vunpack.c.h.b16 %v1491
  %v1504 = vunpack.c.h.b16 %v1492
  %v1505 = vpack.c.b16 %v1498, %v1497
  %v1506 = vpack.c.b16 %v1500, %v1499
  %v1507 = vpack.c.b16 %v1502, %v1501
  %v1508 = vpack.c.b16 %v1504, %v1503
  %1513 = vst [vmem:[#allocation3 + $0x40] sm:$0xff] %v1505
  %1514 = vst [vmem:[#allocation3 + $0x48] sm:$0xff] %v1506
  %1515 = vst [vmem:[#allocation3 + $0x50] sm:$0xff] %v1507
  %1516 = vst [vmem:[#allocation3 + $0x58] sm:$0xff] %v1508
  %1517 = vrot.lane.b32.xlu0 %v1263, 1
  %v1518 = vpop.permute.xlu0 %1517
  %1519 = vrot.lane.b32.xlu0 %v1267, 1
  %v1520 = vpop.permute.xlu0 %1519
  %1521 = vrot.lane.b32.xlu0 %v1264, 1
  %v1522 = vpop.permute.xlu0 %1521
  %1523 = vrot.lane.b32.xlu0 %v1268, 1
  %v1524 = vpop.permute.xlu0 %1523
  %1525 = vrot.lane.b32.xlu0 %v1265, 1
  %v1526 = vpop.permute.xlu0 %1525
  %1527 = vrot.lane.b32.xlu0 %v1269, 1
  %v1528 = vpop.permute.xlu0 %1527
  %1529 = vrot.lane.b32.xlu0 %v1266, 1
  %v1530 = vpop.permute.xlu0 %1529
  %1531 = vrot.lane.b32.xlu0 %v1270, 1
  %v1532 = vpop.permute.xlu0 %1531
  %v1533 = vsel %vm457, %v1526, %v1530
  %v1534 = vsel %vm457, %v1528, %v1532
  %v1535 = vsel %vm457, %v1522, %v1526
  %v1536 = vsel %vm457, %v1524, %v1528
  %v1537 = vsel %vm457, %v1518, %v1522
  %v1538 = vsel %vm457, %v1520, %v1524
  %v1539 = vsel %vm457, %v1530, %v1518
  %v1540 = vsel %vm457, %v1532, %v1520
  %v1541 = vld [vmem:[%s466] ss:$8 sm:$0xf]
  %v1543 = vlaneseq
  %v1544 = vshrl.u32 %v1543, 7
  %v1545 = vsub.s32 0, %v1544
  %v1546 = vrot.slane %v1541, %v1545
  %v1547 = vlaneseq
  %v1548 = vshrl.u32 %v1547, 7
  %v1549 = vsub.s32 1, %v1548
  %v1550 = vrot.slane %v1541, %v1549
  %v1551 = vlaneseq
  %v1552 = vshrl.u32 %v1551, 7
  %v1553 = vsub.s32 2, %v1552
  %v1554 = vrot.slane %v1541, %v1553
  %v1555 = vlaneseq
  %v1556 = vshrl.u32 %v1555, 7
  %v1557 = vsub.s32 3, %v1556
  %v1558 = vrot.slane %v1541, %v1557
  %v1563 = vmul.f32 %v1539, %v1546
  %v1564 = vmul.f32 %v1537, %v1550
  %v1565 = vmul.f32 %v1535, %v1554
  %v1566 = vmul.f32 %v1533, %v1558
  %v1567 = vmul.f32 %v1540, %v1546
  %v1568 = vmul.f32 %v1538, %v1550
  %v1569 = vmul.f32 %v1536, %v1554
  %v1570 = vmul.f32 %v1534, %v1558
  %v1571 = vpack.c.bf16 %v1567, %v1563
  %v1572 = vpack.c.bf16 %v1568, %v1564
  %v1573 = vpack.c.bf16 %v1569, %v1565
  %v1574 = vpack.c.bf16 %v1570, %v1566
  %v1579 = vunpack.c.l.b16 %v1571
  %v1580 = vunpack.c.l.b16 %v1572
  %v1581 = vunpack.c.l.b16 %v1573
  %v1582 = vunpack.c.l.b16 %v1574
  %v1583 = vunpack.c.h.b16 %v1571
  %v1584 = vunpack.c.h.b16 %v1572
  %v1585 = vunpack.c.h.b16 %v1573
  %v1586 = vunpack.c.h.b16 %v1574
  %v1587 = vpack.c.b16 %v1580, %v1579
  %v1588 = vpack.c.b16 %v1582, %v1581
  %v1589 = vpack.c.b16 %v1584, %v1583
  %v1590 = vpack.c.b16 %v1586, %v1585
  %1595 = vst [vmem:[#allocation3 + $0x60] sm:$0xff] %v1587
  %1596 = vst [vmem:[#allocation3 + $0x68] sm:$0xff] %v1588
  %1597 = vst [vmem:[#allocation3 + $0x70] sm:$0xff] %v1589
  %1598 = vst [vmem:[#allocation3 + $0x78] sm:$0xff] %v1590
  %1599 = vrot.lane.b32.xlu0 %v1263, 127
  %v1600 = vpop.permute.xlu0 %1599
  %1601 = vrot.lane.b32.xlu0 %v1267, 127
  %v1602 = vpop.permute.xlu0 %1601
  %1603 = vrot.lane.b32.xlu0 %v1264, 127
  %v1604 = vpop.permute.xlu0 %1603
  %1605 = vrot.lane.b32.xlu0 %v1268, 127
  %v1606 = vpop.permute.xlu0 %1605
  %1607 = vrot.lane.b32.xlu0 %v1265, 127
  %v1608 = vpop.permute.xlu0 %1607
  %1609 = vrot.lane.b32.xlu0 %v1269, 127
  %v1610 = vpop.permute.xlu0 %1609
  %1611 = vrot.lane.b32.xlu0 %v1266, 127
  %v1612 = vpop.permute.xlu0 %1611
  %1613 = vrot.lane.b32.xlu0 %v1270, 127
  %v1614 = vpop.permute.xlu0 %1613
  %v1615 = vsel %vm541, %v1608, %v1612
  %v1616 = vsel %vm541, %v1610, %v1614
  %v1617 = vsel %vm541, %v1604, %v1608
  %v1618 = vsel %vm541, %v1606, %v1610
  %v1619 = vsel %vm541, %v1600, %v1604
  %v1620 = vsel %vm541, %v1602, %v1606
  %v1621 = vsel %vm541, %v1612, %v1600
  %v1622 = vsel %vm541, %v1614, %v1602
  %v1623 = vld [vmem:[%s550] ss:$8 sm:$0xf]
  %v1625 = vlaneseq
  %v1626 = vshrl.u32 %v1625, 7
  %v1627 = vsub.s32 0, %v1626
  %v1628 = vrot.slane %v1623, %v1627
  %v1629 = vlaneseq
  %v1630 = vshrl.u32 %v1629, 7
  %v1631 = vsub.s32 1, %v1630
  %v1632 = vrot.slane %v1623, %v1631
  %v1633 = vlaneseq
  %v1634 = vshrl.u32 %v1633, 7
  %v1635 = vsub.s32 2, %v1634
  %v1636 = vrot.slane %v1623, %v1635
  %v1637 = vlaneseq
  %v1638 = vshrl.u32 %v1637, 7
  %v1639 = vsub.s32 3, %v1638
  %v1640 = vrot.slane %v1623, %v1639
  %v1645 = vmul.f32 %v1619, %v1628
  %v1646 = vmul.f32 %v1617, %v1632
  %v1647 = vmul.f32 %v1615, %v1636
  %v1648 = vmul.f32 %v1621, %v1640
  %v1649 = vmul.f32 %v1620, %v1628
  %v1650 = vmul.f32 %v1618, %v1632
  %v1651 = vmul.f32 %v1616, %v1636
  %v1652 = vmul.f32 %v1622, %v1640
  %v1653 = vpack.c.bf16 %v1649, %v1645
  %v1654 = vpack.c.bf16 %v1650, %v1646
  %v1655 = vpack.c.bf16 %v1651, %v1647
  %v1656 = vpack.c.bf16 %v1652, %v1648
  %v1661 = vunpack.c.l.b16 %v1653
  %v1662 = vunpack.c.l.b16 %v1654
  %v1663 = vunpack.c.l.b16 %v1655
  %v1664 = vunpack.c.l.b16 %v1656
  %v1665 = vunpack.c.h.b16 %v1653
  %v1666 = vunpack.c.h.b16 %v1654
  %v1667 = vunpack.c.h.b16 %v1655
  %v1668 = vunpack.c.h.b16 %v1656
  %v1669 = vpack.c.b16 %v1662, %v1661
  %v1670 = vpack.c.b16 %v1664, %v1663
  %v1671 = vpack.c.b16 %v1666, %v1665
  %v1672 = vpack.c.b16 %v1668, %v1667
  %1677 = vst [vmem:[#allocation3 + $0x80] sm:$0xff] %v1669
  %1678 = vst [vmem:[#allocation3 + $0x88] sm:$0xff] %v1670
  %1679 = vst [vmem:[#allocation3 + $0x90] sm:$0xff] %v1671
  %1680 = vst [vmem:[#allocation3 + $0x98] sm:$0xff] %v1672
  %1681 = vrot.lane.b32.xlu0 %v1263, 113
  %v1682 = vpop.permute.xlu0 %1681
  %1683 = vrot.lane.b32.xlu0 %v1267, 113
  %v1684 = vpop.permute.xlu0 %1683
  %1685 = vrot.lane.b32.xlu0 %v1264, 113
  %v1686 = vpop.permute.xlu0 %1685
  %1687 = vrot.lane.b32.xlu0 %v1268, 113
  %v1688 = vpop.permute.xlu0 %1687
  %1689 = vrot.lane.b32.xlu0 %v1265, 113
  %v1690 = vpop.permute.xlu0 %1689
  %1691 = vrot.lane.b32.xlu0 %v1269, 113
  %v1692 = vpop.permute.xlu0 %1691
  %1693 = vrot.lane.b32.xlu0 %v1266, 113
  %v1694 = vpop.permute.xlu0 %1693
  %1695 = vrot.lane.b32.xlu0 %v1270, 113
  %v1696 = vpop.permute.xlu0 %1695
  %v1697 = vsel %vm625, %v1690, %v1694
  %v1698 = vsel %vm625, %v1692, %v1696
  %v1699 = vsel %vm625, %v1686, %v1690
  %v1700 = vsel %vm625, %v1688, %v1692
  %v1701 = vsel %vm625, %v1682, %v1686
  %v1702 = vsel %vm625, %v1684, %v1688
  %v1703 = vsel %vm625, %v1694, %v1682
  %v1704 = vsel %vm625, %v1696, %v1684
  %v1705 = vld [vmem:[%s634] ss:$8 sm:$0xf]
  %v1707 = vlaneseq
  %v1708 = vshrl.u32 %v1707, 7
  %v1709 = vsub.s32 0, %v1708
  %v1710 = vrot.slane %v1705, %v1709
  %v1711 = vlaneseq
  %v1712 = vshrl.u32 %v1711, 7
  %v1713 = vsub.s32 1, %v1712
  %v1714 = vrot.slane %v1705, %v1713
  %v1715 = vlaneseq
  %v1716 = vshrl.u32 %v1715, 7
  %v1717 = vsub.s32 2, %v1716
  %v1718 = vrot.slane %v1705, %v1717
  %v1719 = vlaneseq
  %v1720 = vshrl.u32 %v1719, 7
  %v1721 = vsub.s32 3, %v1720
  %v1722 = vrot.slane %v1705, %v1721
  %v1727 = vmul.f32 %v1701, %v1710
  %v1728 = vmul.f32 %v1699, %v1714
  %v1729 = vmul.f32 %v1697, %v1718
  %v1730 = vmul.f32 %v1703, %v1722
  %v1731 = vmul.f32 %v1702, %v1710
  %v1732 = vmul.f32 %v1700, %v1714
  %v1733 = vmul.f32 %v1698, %v1718
  %v1734 = vmul.f32 %v1704, %v1722
  %v1735 = vpack.c.bf16 %v1731, %v1727
  %v1736 = vpack.c.bf16 %v1732, %v1728
  %v1737 = vpack.c.bf16 %v1733, %v1729
  %v1738 = vpack.c.bf16 %v1734, %v1730
  %v1743 = vunpack.c.l.b16 %v1735
  %v1744 = vunpack.c.l.b16 %v1736
  %v1745 = vunpack.c.l.b16 %v1737
  %v1746 = vunpack.c.l.b16 %v1738
  %v1747 = vunpack.c.h.b16 %v1735
  %v1748 = vunpack.c.h.b16 %v1736
  %v1749 = vunpack.c.h.b16 %v1737
  %v1750 = vunpack.c.h.b16 %v1738
  %v1751 = vpack.c.b16 %v1744, %v1743
  %v1752 = vpack.c.b16 %v1746, %v1745
  %v1753 = vpack.c.b16 %v1748, %v1747
  %v1754 = vpack.c.b16 %v1750, %v1749
  %1759 = vst [vmem:[#allocation3 + $0xa0] sm:$0xff] %v1751
  %1760 = vst [vmem:[#allocation3 + $0xa8] sm:$0xff] %v1752
  %1761 = vst [vmem:[#allocation3 + $0xb0] sm:$0xff] %v1753
  %1762 = vst [vmem:[#allocation3 + $0xb8] sm:$0xff] %v1754
  %1763 = vrot.lane.b32.xlu0 %v1263, 112
  %v1764 = vpop.permute.xlu0 %1763
  %1765 = vrot.lane.b32.xlu0 %v1267, 112
  %v1766 = vpop.permute.xlu0 %1765
  %1767 = vrot.lane.b32.xlu0 %v1264, 112
  %v1768 = vpop.permute.xlu0 %1767
  %1769 = vrot.lane.b32.xlu0 %v1268, 112
  %v1770 = vpop.permute.xlu0 %1769
  %1771 = vrot.lane.b32.xlu0 %v1265, 112
  %v1772 = vpop.permute.xlu0 %1771
  %1773 = vrot.lane.b32.xlu0 %v1269, 112
  %v1774 = vpop.permute.xlu0 %1773
  %1775 = vrot.lane.b32.xlu0 %v1266, 112
  %v1776 = vpop.permute.xlu0 %1775
  %1777 = vrot.lane.b32.xlu0 %v1270, 112
  %v1778 = vpop.permute.xlu0 %1777
  %v1779 = vsel %vm709, %v1772, %v1776
  %v1780 = vsel %vm709, %v1774, %v1778
  %v1781 = vsel %vm709, %v1768, %v1772
  %v1782 = vsel %vm709, %v1770, %v1774
  %v1783 = vsel %vm709, %v1764, %v1768
  %v1784 = vsel %vm709, %v1766, %v1770
  %v1785 = vsel %vm709, %v1776, %v1764
  %v1786 = vsel %vm709, %v1778, %v1766
  %v1787 = vld [vmem:[%s718] ss:$8 sm:$0xf]
  %v1789 = vlaneseq
  %v1790 = vshrl.u32 %v1789, 7
  %v1791 = vsub.s32 0, %v1790
  %v1792 = vrot.slane %v1787, %v1791
  %v1793 = vlaneseq
  %v1794 = vshrl.u32 %v1793, 7
  %v1795 = vsub.s32 1, %v1794
  %v1796 = vrot.slane %v1787, %v1795
  %v1797 = vlaneseq
  %v1798 = vshrl.u32 %v1797, 7
  %v1799 = vsub.s32 2, %v1798
  %v1800 = vrot.slane %v1787, %v1799
  %v1801 = vlaneseq
  %v1802 = vshrl.u32 %v1801, 7
  %v1803 = vsub.s32 3, %v1802
  %v1804 = vrot.slane %v1787, %v1803
  %v1809 = vmul.f32 %v1783, %v1792
  %v1810 = vmul.f32 %v1781, %v1796
  %v1811 = vmul.f32 %v1779, %v1800
  %v1812 = vmul.f32 %v1785, %v1804
  %v1813 = vmul.f32 %v1784, %v1792
  %v1814 = vmul.f32 %v1782, %v1796
  %v1815 = vmul.f32 %v1780, %v1800
  %v1816 = vmul.f32 %v1786, %v1804
  %v1817 = vpack.c.bf16 %v1813, %v1809
  %v1818 = vpack.c.bf16 %v1814, %v1810
  %v1819 = vpack.c.bf16 %v1815, %v1811
  %v1820 = vpack.c.bf16 %v1816, %v1812
  %v1825 = vunpack.c.l.b16 %v1817
  %v1826 = vunpack.c.l.b16 %v1818
  %v1827 = vunpack.c.l.b16 %v1819
  %v1828 = vunpack.c.l.b16 %v1820
  %v1829 = vunpack.c.h.b16 %v1817
  %v1830 = vunpack.c.h.b16 %v1818
  %v1831 = vunpack.c.h.b16 %v1819
  %v1832 = vunpack.c.h.b16 %v1820
  %v1833 = vpack.c.b16 %v1826, %v1825
  %v1834 = vpack.c.b16 %v1828, %v1827
  %v1835 = vpack.c.b16 %v1830, %v1829
  %v1836 = vpack.c.b16 %v1832, %v1831
  %1841 = vst [vmem:[#allocation3 + $0xc0] sm:$0xff] %v1833
  %1842 = vst [vmem:[#allocation3 + $0xc8] sm:$0xff] %v1834
  %1843 = vst [vmem:[#allocation3 + $0xd0] sm:$0xff] %v1835
  %1844 = vst [vmem:[#allocation3 + $0xd8] sm:$0xff] %v1836
  %1845 = vrot.lane.b32.xlu0 %v1263, 111
  %v1846 = vpop.permute.xlu0 %1845
  %1847 = vrot.lane.b32.xlu0 %v1267, 111
  %v1848 = vpop.permute.xlu0 %1847
  %1849 = vrot.lane.b32.xlu0 %v1264, 111
  %v1850 = vpop.permute.xlu0 %1849
  %1851 = vrot.lane.b32.xlu0 %v1268, 111
  %v1852 = vpop.permute.xlu0 %1851
  %1853 = vrot.lane.b32.xlu0 %v1265, 111
  %v1854 = vpop.permute.xlu0 %1853
  %1855 = vrot.lane.b32.xlu0 %v1269, 111
  %v1856 = vpop.permute.xlu0 %1855
  %1857 = vrot.lane.b32.xlu0 %v1266, 111
  %v1858 = vpop.permute.xlu0 %1857
  %1859 = vrot.lane.b32.xlu0 %v1270, 111
  %v1860 = vpop.permute.xlu0 %1859
  %v1861 = vsel %vm793, %v1854, %v1858
  %v1862 = vsel %vm793, %v1856, %v1860
  %v1863 = vsel %vm793, %v1850, %v1854
  %v1864 = vsel %vm793, %v1852, %v1856
  %v1865 = vsel %vm793, %v1846, %v1850
  %v1866 = vsel %vm793, %v1848, %v1852
  %v1867 = vsel %vm793, %v1858, %v1846
  %v1868 = vsel %vm793, %v1860, %v1848
  %v1869 = vld [vmem:[%s802] ss:$8 sm:$0xf]
  %v1871 = vlaneseq
  %v1872 = vshrl.u32 %v1871, 7
  %v1873 = vsub.s32 0, %v1872
  %v1874 = vrot.slane %v1869, %v1873
  %v1875 = vlaneseq
  %v1876 = vshrl.u32 %v1875, 7
  %v1877 = vsub.s32 1, %v1876
  %v1878 = vrot.slane %v1869, %v1877
  %v1879 = vlaneseq
  %v1880 = vshrl.u32 %v1879, 7
  %v1881 = vsub.s32 2, %v1880
  %v1882 = vrot.slane %v1869, %v1881
  %v1883 = vlaneseq
  %v1884 = vshrl.u32 %v1883, 7
  %v1885 = vsub.s32 3, %v1884
  %v1886 = vrot.slane %v1869, %v1885
  %v1891 = vmul.f32 %v1865, %v1874
  %v1892 = vmul.f32 %v1863, %v1878
  %v1893 = vmul.f32 %v1861, %v1882
  %v1894 = vmul.f32 %v1867, %v1886
  %v1895 = vmul.f32 %v1866, %v1874
  %v1896 = vmul.f32 %v1864, %v1878
  %v1897 = vmul.f32 %v1862, %v1882
  %v1898 = vmul.f32 %v1868, %v1886
  %v1899 = vpack.c.bf16 %v1895, %v1891
  %v1900 = vpack.c.bf16 %v1896, %v1892
  %v1901 = vpack.c.bf16 %v1897, %v1893
  %v1902 = vpack.c.bf16 %v1898, %v1894
  %v1907 = vunpack.c.l.b16 %v1899
  %v1908 = vunpack.c.l.b16 %v1900
  %v1909 = vunpack.c.l.b16 %v1901
  %v1910 = vunpack.c.l.b16 %v1902
  %v1911 = vunpack.c.h.b16 %v1899
  %v1912 = vunpack.c.h.b16 %v1900
  %v1913 = vunpack.c.h.b16 %v1901
  %v1914 = vunpack.c.h.b16 %v1902
  %v1915 = vpack.c.b16 %v1908, %v1907
  %v1916 = vpack.c.b16 %v1910, %v1909
  %v1917 = vpack.c.b16 %v1912, %v1911
  %v1918 = vpack.c.b16 %v1914, %v1913
  %1923 = vst [vmem:[#allocation3 + $0xe0] sm:$0xff] %v1915
  %1924 = vst [vmem:[#allocation3 + $0xe8] sm:$0xff] %v1916
  %1925 = vst [vmem:[#allocation3 + $0xf0] sm:$0xff] %v1917
  %1926 = vst [vmem:[#allocation3 + $0xf8] sm:$0xff] %v1918
  %s1927 = scalar_lea.vmem %s3, 8
  %v1928 = vld [vmem:[%s1927] sm:$0xf]
  %v1929 = vld [vmem:[%s1927 + $0x4] sm:$0xf]
  %v1930 = vpack.c.bf16 %v1267, %v1263
  %v1931 = vpack.c.bf16 %v1268, %v1264
  %v1932 = vpack.c.bf16 %v1269, %v1265
  %v1933 = vpack.c.bf16 %v1270, %v1266
  %s1934 = scalar_lea.vmem %s4, 8
  %v1935 = vld [vmem:[%s1934] sm:$0xf]
  %v1936 = vld [vmem:[%s1934 + $0x4] sm:$0xf]
  %v1937 = vld [vmem:[#allocation3] sm:$0xff]
  %v1938 = vld [vmem:[#allocation3 + $0x8] sm:$0xff]
  %v1939 = vld [vmem:[#allocation3 + $0x10] sm:$0xff]
  %v1940 = vld [vmem:[#allocation3 + $0x18] sm:$0xff]
  %v1941 = vld [vmem:[#allocation3 + $0x20] sm:$0xff]
  %v1942 = vld [vmem:[#allocation3 + $0x28] sm:$0xff]
  %v1943 = vld [vmem:[#allocation3 + $0x30] sm:$0xff]
  %v1944 = vld [vmem:[#allocation3 + $0x38] sm:$0xff]
  %v1945 = vld [vmem:[#allocation3 + $0x40] sm:$0xff]
  %v1946 = vld [vmem:[#allocation3 + $0x48] sm:$0xff]
  %v1947 = vld [vmem:[#allocation3 + $0x50] sm:$0xff]
  %v1948 = vld [vmem:[#allocation3 + $0x58] sm:$0xff]
  %v1949 = vld [vmem:[#allocation3 + $0x60] sm:$0xff]
  %v1950 = vld [vmem:[#allocation3 + $0x68] sm:$0xff]
  %v1951 = vld [vmem:[#allocation3 + $0x70] sm:$0xff]
  %v1952 = vld [vmem:[#allocation3 + $0x78] sm:$0xff]
  %v1953 = vld [vmem:[#allocation3 + $0x80] sm:$0xff]
  %v1954 = vld [vmem:[#allocation3 + $0x88] sm:$0xff]
  %v1955 = vld [vmem:[#allocation3 + $0x90] sm:$0xff]
  %v1956 = vld [vmem:[#allocation3 + $0x98] sm:$0xff]
  %v1957 = vld [vmem:[#allocation3 + $0xa0] sm:$0xff]
  %v1958 = vld [vmem:[#allocation3 + $0xa8] sm:$0xff]
  %v1959 = vld [vmem:[#allocation3 + $0xb0] sm:$0xff]
  %v1960 = vld [vmem:[#allocation3 + $0xb8] sm:$0xff]
  %v1961 = vld [vmem:[#allocation3 + $0xc0] sm:$0xff]
  %v1962 = vld [vmem:[#allocation3 + $0xc8] sm:$0xff]
  %v1963 = vld [vmem:[#allocation3 + $0xd0] sm:$0xff]
  %v1964 = vld [vmem:[#allocation3 + $0xd8] sm:$0xff]
  %v1965 = vld [vmem:[#allocation3 + $0xe0] sm:$0xff]
  %v1966 = vld [vmem:[#allocation3 + $0xe8] sm:$0xff]
  %v1967 = vld [vmem:[#allocation3 + $0xf0] sm:$0xff]
  %v1968 = vld [vmem:[#allocation3 + $0xf8] sm:$0xff]
  %v1971 = vunpack.c.l.b16 %v1935
  %v1972 = vunpack.c.l.b16 %v1936
  %v1973 = vpack.c.b16 %v1972, %v1971
  %v2007 = vunpack.c.l.b16 %v1937
  %v2008 = vunpack.c.h.b16 %v1937
  %v2009 = vunpack.c.l.b16 %v1938
  %v2010 = vunpack.c.h.b16 %v1938
  %v2011 = vunpack.c.l.b16 %v1939
  %v2012 = vunpack.c.h.b16 %v1939
  %v2013 = vunpack.c.l.b16 %v1940
  %v2014 = vunpack.c.h.b16 %v1940
  %v2015 = vunpack.c.l.b16 %v1941
  %v2016 = vunpack.c.h.b16 %v1941
  %v2017 = vunpack.c.l.b16 %v1942
  %v2018 = vunpack.c.h.b16 %v1942
  %v2019 = vunpack.c.l.b16 %v1943
  %v2020 = vunpack.c.h.b16 %v1943
  %v2021 = vunpack.c.l.b16 %v1944
  %v2022 = vunpack.c.h.b16 %v1944
  %v2023 = vunpack.c.l.b16 %v1945
  %v2024 = vunpack.c.h.b16 %v1945
  %v2025 = vunpack.c.l.b16 %v1946
  %v2026 = vunpack.c.h.b16 %v1946
  %v2027 = vunpack.c.l.b16 %v1947
  %v2028 = vunpack.c.h.b16 %v1947
  %v2029 = vunpack.c.l.b16 %v1948
  %v2030 = vunpack.c.h.b16 %v1948
  %v2031 = vunpack.c.l.b16 %v1949
  %v2032 = vunpack.c.h.b16 %v1949
  %v2033 = vunpack.c.l.b16 %v1950
  %v2034 = vunpack.c.h.b16 %v1950
  %v2035 = vunpack.c.l.b16 %v1951
  %v2036 = vunpack.c.h.b16 %v1951
  %v2037 = vunpack.c.l.b16 %v1952
  %v2038 = vunpack.c.h.b16 %v1952
  %v2039 = vunpack.c.l.b16 %v1953
  %v2040 = vunpack.c.h.b16 %v1953
  %v2041 = vunpack.c.l.b16 %v1954
  %v2042 = vunpack.c.h.b16 %v1954
  %v2043 = vunpack.c.l.b16 %v1955
  %v2044 = vunpack.c.h.b16 %v1955
  %v2045 = vunpack.c.l.b16 %v1956
  %v2046 = vunpack.c.h.b16 %v1956
  %v2047 = vunpack.c.l.b16 %v1957
  %v2048 = vunpack.c.h.b16 %v1957
  %v2049 = vunpack.c.l.b16 %v1958
  %v2050 = vunpack.c.h.b16 %v1958
  %v2051 = vunpack.c.l.b16 %v1959
  %v2052 = vunpack.c.h.b16 %v1959
  %v2053 = vunpack.c.l.b16 %v1960
  %v2054 = vunpack.c.h.b16 %v1960
  %v2055 = vunpack.c.l.b16 %v1961
  %v2056 = vunpack.c.h.b16 %v1961
  %v2057 = vunpack.c.l.b16 %v1962
  %v2058 = vunpack.c.h.b16 %v1962
  %v2059 = vunpack.c.l.b16 %v1963
  %v2060 = vunpack.c.h.b16 %v1963
  %v2061 = vunpack.c.l.b16 %v1964
  %v2062 = vunpack.c.h.b16 %v1964
  %v2063 = vunpack.c.l.b16 %v1965
  %v2064 = vunpack.c.h.b16 %v1965
  %v2065 = vunpack.c.l.b16 %v1966
  %v2066 = vunpack.c.h.b16 %v1966
  %v2067 = vunpack.c.l.b16 %v1967
  %v2068 = vunpack.c.h.b16 %v1967
  %v2069 = vunpack.c.l.b16 %v1968
  %v2070 = vunpack.c.h.b16 %v1968
  %v2071 = vpack.c.b16 %v2011, %v2007
  %v2072 = vpack.c.b16 %v2012, %v2008
  %v2073 = vpack.c.b16 %v2013, %v2009
  %v2074 = vpack.c.b16 %v2014, %v2010
  %v2075 = vpack.c.b16 %v2019, %v2015
  %v2076 = vpack.c.b16 %v2020, %v2016
  %v2077 = vpack.c.b16 %v2021, %v2017
  %v2078 = vpack.c.b16 %v2022, %v2018
  %v2079 = vpack.c.b16 %v2027, %v2023
  %v2080 = vpack.c.b16 %v2028, %v2024
  %v2081 = vpack.c.b16 %v2029, %v2025
  %v2082 = vpack.c.b16 %v2030, %v2026
  %v2083 = vpack.c.b16 %v2035, %v2031
  %v2084 = vpack.c.b16 %v2036, %v2032
  %v2085 = vpack.c.b16 %v2037, %v2033
  %v2086 = vpack.c.b16 %v2038, %v2034
  %v2087 = vpack.c.b16 %v2043, %v2039
  %v2088 = vpack.c.b16 %v2044, %v2040
  %v2089 = vpack.c.b16 %v2045, %v2041
  %v2090 = vpack.c.b16 %v2046, %v2042
  %v2091 = vpack.c.b16 %v2051, %v2047
  %v2092 = vpack.c.b16 %v2052, %v2048
  %v2093 = vpack.c.b16 %v2053, %v2049
  %v2094 = vpack.c.b16 %v2054, %v2050
  %v2095 = vpack.c.b16 %v2059, %v2055
  %v2096 = vpack.c.b16 %v2060, %v2056
  %v2097 = vpack.c.b16 %v2061, %v2057
  %v2098 = vpack.c.b16 %v2062, %v2058
  %v2099 = vpack.c.b16 %v2067, %v2063
  %v2100 = vpack.c.b16 %v2068, %v2064
  %v2101 = vpack.c.b16 %v2069, %v2065
  %v2102 = vpack.c.b16 %v2070, %v2066
  %2135 = vmatprep.subr.bf16.mxu0 %v2100
  %2136 = vmatpush1.bf16.msra.mxu0 %v2099
  %2137 = vmatprep.subr.bf16.mxu0 %v2096
  %2138 = vmatpush1.bf16.msra.mxu0 %v2095
  %2139 = vmatprep.subr.bf16.mxu0 %v2092
  %2140 = vmatpush1.bf16.msra.mxu0 %v2091
  %2141 = vmatprep.subr.bf16.mxu0 %v2088
  %2142 = vmatpush1.bf16.msra.mxu0 %v2087
  %2143 = vmatprep.subr.bf16.mxu0 %v2084
  %2144 = vmatpush1.bf16.msra.mxu0 %v2083
  %2145 = vmatprep.subr.bf16.mxu0 %v2080
  %2146 = vmatpush1.bf16.msra.mxu0 %v2079
  %2147 = vmatprep.subr.bf16.mxu0 %v2076
  %2148 = vmatpush1.bf16.msra.mxu0 %v2075
  %2149 = vmatprep.subr.bf16.mxu0 %v2072
  %2150 = vmatpush1.bf16.msra.mxu0 %v2071
  %2151 = vmatprep.subr.bf16.mxu0 0
  %2152 = vmatpush2.bf16.msra.mxu0 0
  %2153 = vmatprep.subr.bf16.mxu0 0
  %2154 = vmatpush2.bf16.msra.mxu0 0
  %2155 = vmatprep.subr.bf16.mxu0 0
  %2156 = vmatpush2.bf16.msra.mxu0 0
  %2157 = vmatprep.subr.bf16.mxu0 0
  %2158 = vmatpush2.bf16.msra.mxu0 0
  %2159 = vmatprep.subr.bf16.mxu0 0
  %2160 = vmatpush2.bf16.msra.mxu0 0
  %2161 = vmatprep.subr.bf16.mxu0 0
  %2162 = vmatpush2.bf16.msra.mxu0 0
  %2163 = vmatprep.subr.bf16.mxu0 0
  %2164 = vmatpush2.bf16.msra.mxu0 0
  %2165 = vmatprep.subr.bf16.mxu0 0
  %2166 = vmatpush2.bf16.msra.mxu0 0
  %2167 = vmatprep.mubr.bf16.mxu0 0
  %2168 = vmatmul.mubr.bf16.gmra.mxu0 %v1973
  %v2169 = vpop.f32.mrf.mxu0
  %v2170 = vadd.f32 0.0, %v2169
  %v2171 = vpop.f32.mrf.mxu0
  %v2172 = vadd.f32 0.0, %v2171
  %v2173 = vpop.f32.mrf.mxu0
  %v2174 = vadd.f32 0.0, %v2173
  %v2175 = vpop.f32.mrf.mxu0
  %v2176 = vadd.f32 0.0, %v2175
  %2177 = vdwg.mxu0
  %2178 = vmatprep.subr.bf16.mxu0 %v2102
  %2179 = vmatpush1.bf16.msra.mxu0 %v2101
  %2180 = vmatprep.subr.bf16.mxu0 %v2098
  %2181 = vmatpush1.bf16.msra.mxu0 %v2097
  %2182 = vmatprep.subr.bf16.mxu0 %v2094
  %2183 = vmatpush1.bf16.msra.mxu0 %v2093
  %2184 = vmatprep.subr.bf16.mxu0 %v2090
  %2185 = vmatpush1.bf16.msra.mxu0 %v2089
  %2186 = vmatprep.subr.bf16.mxu0 %v2086
  %2187 = vmatpush1.bf16.msra.mxu0 %v2085
  %2188 = vmatprep.subr.bf16.mxu0 %v2082
  %2189 = vmatpush1.bf16.msra.mxu0 %v2081
  %2190 = vmatprep.subr.bf16.mxu0 %v2078
  %2191 = vmatpush1.bf16.msra.mxu0 %v2077
  %2192 = vmatprep.subr.bf16.mxu0 %v2074
  %2193 = vmatpush1.bf16.msra.mxu0 %v2073
  %2194 = vmatprep.subr.bf16.mxu0 0
  %2195 = vmatpush2.bf16.msra.mxu0 0
  %2196 = vmatprep.subr.bf16.mxu0 0
  %2197 = vmatpush2.bf16.msra.mxu0 0
  %2198 = vmatprep.subr.bf16.mxu0 0
  %2199 = vmatpush2.bf16.msra.mxu0 0
  %2200 = vmatprep.subr.bf16.mxu0 0
  %2201 = vmatpush2.bf16.msra.mxu0 0
  %2202 = vmatprep.subr.bf16.mxu0 0
  %2203 = vmatpush2.bf16.msra.mxu0 0
  %2204 = vmatprep.subr.bf16.mxu0 0
  %2205 = vmatpush2.bf16.msra.mxu0 0
  %2206 = vmatprep.subr.bf16.mxu0 0
  %2207 = vmatpush2.bf16.msra.mxu0 0
  %2208 = vmatprep.subr.bf16.mxu0 0
  %2209 = vmatpush2.bf16.msra.mxu0 0
  %2210 = vmatprep.mubr.bf16.mxu0 0
  %2211 = vmatmul.mubr.bf16.gmra.mxu0 %v1973
  %v2212 = vpop.f32.mrf.mxu0
  %v2213 = vadd.f32 0.0, %v2212
  %v2214 = vpop.f32.mrf.mxu0
  %v2215 = vadd.f32 0.0, %v2214
  %v2216 = vpop.f32.mrf.mxu0
  %v2217 = vadd.f32 0.0, %v2216
  %v2218 = vpop.f32.mrf.mxu0
  %v2219 = vadd.f32 0.0, %v2218
  %2220 = vdwg.mxu0
  %v2223 = vunpack.c.l.b16 %v1928
  %v2224 = vunpack.c.l.b16 %v1929
  %v2225 = vpack.c.b16 %v2224, %v2223
  %v2227 = vsel %vm43, %v2225, 0
  %2229 = vmatprep.subr.bf16.mxu0 0
  %2230 = vmatpush1.bf16.msra.mxu0 0
  %2231 = vmatprep.subr.bf16.mxu0 0
  %2232 = vmatpush1.bf16.msra.mxu0 0
  %2233 = vmatprep.subr.bf16.mxu0 0
  %2234 = vmatpush1.bf16.msra.mxu0 0
  %2235 = vmatprep.subr.bf16.mxu0 0
  %2236 = vmatpush1.bf16.msra.mxu0 0
  %2237 = vmatprep.subr.bf16.mxu0 0
  %2238 = vmatpush1.bf16.msra.mxu0 0
  %2239 = vmatprep.subr.bf16.mxu0 0
  %2240 = vmatpush1.bf16.msra.mxu0 0
  %2241 = vmatprep.subr.bf16.mxu0 0
  %2242 = vmatpush1.bf16.msra.mxu0 0
  %2243 = vmatprep.subr.bf16.mxu0 %v1931
  %2244 = vmatpush1.bf16.msra.mxu0 %v1930
  %2245 = vmatprep.subr.bf16.mxu0 0
  %2246 = vmatpush2.bf16.msra.mxu0 0
  %2247 = vmatprep.subr.bf16.mxu0 0
  %2248 = vmatpush2.bf16.msra.mxu0 0
  %2249 = vmatprep.subr.bf16.mxu0 0
  %2250 = vmatpush2.bf16.msra.mxu0 0
  %2251 = vmatprep.subr.bf16.mxu0 0
  %2252 = vmatpush2.bf16.msra.mxu0 0
  %2253 = vmatprep.subr.bf16.mxu0 0
  %2254 = vmatpush2.bf16.msra.mxu0 0
  %2255 = vmatprep.subr.bf16.mxu0 0
  %2256 = vmatpush2.bf16.msra.mxu0 0
  %2257 = vmatprep.subr.bf16.mxu0 0
  %2258 = vmatpush2.bf16.msra.mxu0 0
  %2259 = vmatprep.subr.bf16.mxu0 0
  %2260 = vmatpush2.bf16.msra.mxu0 0
  %2261 = vmatprep.mubr.bf16.mxu0 0
  %2262 = vmatmul.mubr.bf16.gmra.mxu0 %v2227
  %v2263 = vpop.f32.mrf.mxu0
  %v2264 = vadd.f32 %v2170, %v2263
  %v2265 = vpop.f32.mrf.mxu0
  %v2266 = vadd.f32 %v2172, %v2265
  %v2267 = vpop.f32.mrf.mxu0
  %v2268 = vadd.f32 %v2174, %v2267
  %v2269 = vpop.f32.mrf.mxu0
  %v2270 = vadd.f32 %v2176, %v2269
  %2271 = vdwg.mxu0
  %2272 = vmatprep.subr.bf16.mxu0 0
  %2273 = vmatpush1.bf16.msra.mxu0 0
  %2274 = vmatprep.subr.bf16.mxu0 0
  %2275 = vmatpush1.bf16.msra.mxu0 0
  %2276 = vmatprep.subr.bf16.mxu0 0
  %2277 = vmatpush1.bf16.msra.mxu0 0
  %2278 = vmatprep.subr.bf16.mxu0 0
  %2279 = vmatpush1.bf16.msra.mxu0 0
  %2280 = vmatprep.subr.bf16.mxu0 0
  %2281 = vmatpush1.bf16.msra.mxu0 0
  %2282 = vmatprep.subr.bf16.mxu0 0
  %2283 = vmatpush1.bf16.msra.mxu0 0
  %2284 = vmatprep.subr.bf16.mxu0 0
  %2285 = vmatpush1.bf16.msra.mxu0 0
  %2286 = vmatprep.subr.bf16.mxu0 %v1933
  %2287 = vmatpush1.bf16.msra.mxu0 %v1932
  %2288 = vmatprep.subr.bf16.mxu0 0
  %2289 = vmatpush2.bf16.msra.mxu0 0
  %2290 = vmatprep.subr.bf16.mxu0 0
  %2291 = vmatpush2.bf16.msra.mxu0 0
  %2292 = vmatprep.subr.bf16.mxu0 0
  %2293 = vmatpush2.bf16.msra.mxu0 0
  %2294 = vmatprep.subr.bf16.mxu0 0
  %2295 = vmatpush2.bf16.msra.mxu0 0
  %2296 = vmatprep.subr.bf16.mxu0 0
  %2297 = vmatpush2.bf16.msra.mxu0 0
  %2298 = vmatprep.subr.bf16.mxu0 0
  %2299 = vmatpush2.bf16.msra.mxu0 0
  %2300 = vmatprep.subr.bf16.mxu0 0
  %2301 = vmatpush2.bf16.msra.mxu0 0
  %2302 = vmatprep.subr.bf16.mxu0 0
  %2303 = vmatpush2.bf16.msra.mxu0 0
  %2304 = vmatprep.mubr.bf16.mxu0 0
  %2305 = vmatmul.mubr.bf16.gmra.mxu0 %v2227
  %v2306 = vpop.f32.mrf.mxu0
  %v2307 = vadd.f32 %v2213, %v2306
  %v2308 = vpop.f32.mrf.mxu0
  %v2309 = vadd.f32 %v2215, %v2308
  %v2310 = vpop.f32.mrf.mxu0
  %v2311 = vadd.f32 %v2217, %v2310
  %v2312 = vpop.f32.mrf.mxu0
  %v2313 = vadd.f32 %v2219, %v2312
  %2314 = vdwg.mxu0
  %v2315 = vld [vmem:[#allocation4] sm:$0xff]
  %v2316 = vld [vmem:[#allocation4 + $0x8] sm:$0xff]
  %v2317 = vld [vmem:[#allocation4 + $0x10] sm:$0xff]
  %v2318 = vld [vmem:[#allocation4 + $0x18] sm:$0xff]
  %v2319 = vld [vmem:[#allocation4 + $0x20] sm:$0xff]
  %v2320 = vld [vmem:[#allocation4 + $0x28] sm:$0xff]
  %v2321 = vld [vmem:[#allocation4 + $0x30] sm:$0xff]
  %v2322 = vld [vmem:[#allocation4 + $0x38] sm:$0xff]
  %v2323 = vadd.f32 %v2264, %v2315
  %v2324 = vadd.f32 %v2266, %v2316
  %v2325 = vadd.f32 %v2307, %v2317
  %v2326 = vadd.f32 %v2309, %v2318
  %v2327 = vadd.f32 %v2268, %v2319
  %v2328 = vadd.f32 %v2270, %v2320
  %v2329 = vadd.f32 %v2311, %v2321
  %v2330 = vadd.f32 %v2313, %v2322
  %v2331 = vmax.f32 %v2323, 0.0
  %v2332 = vmax.f32 %v2324, 0.0
  %v2333 = vmax.f32 %v2325, 0.0
  %v2334 = vmax.f32 %v2326, 0.0
  %v2335 = vmax.f32 %v2327, 0.0
  %v2336 = vmax.f32 %v2328, 0.0
  %v2337 = vmax.f32 %v2329, 0.0
  %v2338 = vmax.f32 %v2330, 0.0
  %2339 = vst [vmem:[#allocation2] sm:$0xff] %v2331
  %2340 = vst [vmem:[#allocation2 + $0x8] sm:$0xff] %v2332
  %2341 = vst [vmem:[#allocation2 + $0x10] sm:$0xff] %v2333
  %2342 = vst [vmem:[#allocation2 + $0x18] sm:$0xff] %v2334
  %2343 = vst [vmem:[#allocation2 + $0x20] sm:$0xff] %v2335
  %2344 = vst [vmem:[#allocation2 + $0x28] sm:$0xff] %v2336
  %2345 = vst [vmem:[#allocation2 + $0x30] sm:$0xff] %v2337
  %2346 = vst [vmem:[#allocation2 + $0x38] sm:$0xff] %v2338
  %v2347 = vld [vmem:[#allocation2] sm:$0xff]
  %v2348 = vld [vmem:[#allocation2 + $0x8] sm:$0xff]
  %v2349 = vld [vmem:[#allocation2 + $0x10] sm:$0xff]
  %v2350 = vld [vmem:[#allocation2 + $0x18] sm:$0xff]
  %v2351 = vld [vmem:[#allocation2 + $0x20] sm:$0xff]
  %v2352 = vld [vmem:[#allocation2 + $0x28] sm:$0xff]
  %v2353 = vld [vmem:[#allocation2 + $0x30] sm:$0xff]
  %v2354 = vld [vmem:[#allocation2 + $0x38] sm:$0xff]
  %2355 = vst [vmem:[#allocation4] sm:$0xff] %v2347
  %2356 = vst [vmem:[#allocation4 + $0x8] sm:$0xff] %v2348
  %2357 = vst [vmem:[#allocation4 + $0x10] sm:$0xff] %v2349
  %2358 = vst [vmem:[#allocation4 + $0x18] sm:$0xff] %v2350
  %2359 = vst [vmem:[#allocation4 + $0x20] sm:$0xff] %v2351
  %2360 = vst [vmem:[#allocation4 + $0x28] sm:$0xff] %v2352
  %2361 = vst [vmem:[#allocation4 + $0x30] sm:$0xff] %v2353
  %2362 = vst [vmem:[#allocation4 + $0x38] sm:$0xff] %v2354
  %v2363 = vld [vmem:[#allocation2] sm:$0xff]
  %v2364 = vld [vmem:[#allocation2 + $0x8] sm:$0xff]
  %v2365 = vld [vmem:[#allocation2 + $0x10] sm:$0xff]
  %v2366 = vld [vmem:[#allocation2 + $0x18] sm:$0xff]
  %v2367 = vld [vmem:[#allocation2 + $0x20] sm:$0xff]
  %v2368 = vld [vmem:[#allocation2 + $0x28] sm:$0xff]
  %v2369 = vld [vmem:[#allocation2 + $0x30] sm:$0xff]
  %v2370 = vld [vmem:[#allocation2 + $0x38] sm:$0xff]
  %2371 = vrot.lane.b32.xlu0 %v2363, 17
  %v2372 = vpop.permute.xlu0 %2371
  %2373 = vrot.lane.b32.xlu0 %v2367, 17
  %v2374 = vpop.permute.xlu0 %2373
  %2375 = vrot.lane.b32.xlu0 %v2364, 17
  %v2376 = vpop.permute.xlu0 %2375
  %2377 = vrot.lane.b32.xlu0 %v2368, 17
  %v2378 = vpop.permute.xlu0 %2377
  %2379 = vrot.lane.b32.xlu0 %v2365, 17
  %v2380 = vpop.permute.xlu0 %2379
  %2381 = vrot.lane.b32.xlu0 %v2369, 17
  %v2382 = vpop.permute.xlu0 %2381
  %2383 = vrot.lane.b32.xlu0 %v2366, 17
  %v2384 = vpop.permute.xlu0 %2383
  %2385 = vrot.lane.b32.xlu0 %v2370, 17
  %v2386 = vpop.permute.xlu0 %2385
  %v2387 = vsel %vm206, %v2380, %v2384
  %v2388 = vsel %vm206, %v2382, %v2386
  %v2389 = vsel %vm206, %v2376, %v2380
  %v2390 = vsel %vm206, %v2378, %v2382
  %v2391 = vsel %vm206, %v2372, %v2376
  %v2392 = vsel %vm206, %v2374, %v2378
  %v2393 = vsel %vm206, %v2384, %v2372
  %v2394 = vsel %vm206, %v2386, %v2374
  %v2395 = vld [vmem:[%s0] ss:$8 sm:$0xf]
  %v2397 = vlaneseq
  %v2398 = vshrl.u32 %v2397, 7
  %v2399 = vsub.s32 0, %v2398
  %v2400 = vrot.slane %v2395, %v2399
  %v2401 = vlaneseq
  %v2402 = vshrl.u32 %v2401, 7
  %v2403 = vsub.s32 1, %v2402
  %v2404 = vrot.slane %v2395, %v2403
  %v2405 = vlaneseq
  %v2406 = vshrl.u32 %v2405, 7
  %v2407 = vsub.s32 2, %v2406
  %v2408 = vrot.slane %v2395, %v2407
  %v2409 = vlaneseq
  %v2410 = vshrl.u32 %v2409, 7
  %v2411 = vsub.s32 3, %v2410
  %v2412 = vrot.slane %v2395, %v2411
  %v2417 = vmul.f32 %v2393, %v2400
  %v2418 = vmul.f32 %v2391, %v2404
  %v2419 = vmul.f32 %v2389, %v2408
  %v2420 = vmul.f32 %v2387, %v2412
  %v2421 = vmul.f32 %v2394, %v2400
  %v2422 = vmul.f32 %v2392, %v2404
  %v2423 = vmul.f32 %v2390, %v2408
  %v2424 = vmul.f32 %v2388, %v2412
  %v2425 = vpack.c.bf16 %v2421, %v2417
  %v2426 = vpack.c.bf16 %v2422, %v2418
  %v2427 = vpack.c.bf16 %v2423, %v2419
  %v2428 = vpack.c.bf16 %v2424, %v2420
  %v2433 = vunpack.c.l.b16 %v2425
  %v2434 = vunpack.c.l.b16 %v2426
  %v2435 = vunpack.c.l.b16 %v2427
  %v2436 = vunpack.c.l.b16 %v2428
  %v2437 = vunpack.c.h.b16 %v2425
  %v2438 = vunpack.c.h.b16 %v2426
  %v2439 = vunpack.c.h.b16 %v2427
  %v2440 = vunpack.c.h.b16 %v2428
  %v2441 = vpack.c.b16 %v2434, %v2433
  %v2442 = vpack.c.b16 %v2436, %v2435
  %v2443 = vpack.c.b16 %v2438, %v2437
  %v2444 = vpack.c.b16 %v2440, %v2439
  %2449 = vst [vmem:[#allocation3] sm:$0xff] %v2441
  %2450 = vst [vmem:[#allocation3 + $0x8] sm:$0xff] %v2442
  %2451 = vst [vmem:[#allocation3 + $0x10] sm:$0xff] %v2443
  %2452 = vst [vmem:[#allocation3 + $0x18] sm:$0xff] %v2444
  %2453 = vrot.lane.b32.xlu0 %v2363, 16
  %v2454 = vpop.permute.xlu0 %2453
  %2455 = vrot.lane.b32.xlu0 %v2367, 16
  %v2456 = vpop.permute.xlu0 %2455
  %2457 = vrot.lane.b32.xlu0 %v2364, 16
  %v2458 = vpop.permute.xlu0 %2457
  %2459 = vrot.lane.b32.xlu0 %v2368, 16
  %v2460 = vpop.permute.xlu0 %2459
  %2461 = vrot.lane.b32.xlu0 %v2365, 16
  %v2462 = vpop.permute.xlu0 %2461
  %2463 = vrot.lane.b32.xlu0 %v2369, 16
  %v2464 = vpop.permute.xlu0 %2463
  %2465 = vrot.lane.b32.xlu0 %v2366, 16
  %v2466 = vpop.permute.xlu0 %2465
  %2467 = vrot.lane.b32.xlu0 %v2370, 16
  %v2468 = vpop.permute.xlu0 %2467
  %v2469 = vsel %vm289, %v2462, %v2466
  %v2470 = vsel %vm289, %v2464, %v2468
  %v2471 = vsel %vm289, %v2458, %v2462
  %v2472 = vsel %vm289, %v2460, %v2464
  %v2473 = vsel %vm289, %v2454, %v2458
  %v2474 = vsel %vm289, %v2456, %v2460
  %v2475 = vsel %vm289, %v2466, %v2454
  %v2476 = vsel %vm289, %v2468, %v2456
  %v2477 = vld [vmem:[%s298] ss:$8 sm:$0xf]
  %v2479 = vlaneseq
  %v2480 = vshrl.u32 %v2479, 7
  %v2481 = vsub.s32 0, %v2480
  %v2482 = vrot.slane %v2477, %v2481
  %v2483 = vlaneseq
  %v2484 = vshrl.u32 %v2483, 7
  %v2485 = vsub.s32 1, %v2484
  %v2486 = vrot.slane %v2477, %v2485
  %v2487 = vlaneseq
  %v2488 = vshrl.u32 %v2487, 7
  %v2489 = vsub.s32 2, %v2488
  %v2490 = vrot.slane %v2477, %v2489
  %v2491 = vlaneseq
  %v2492 = vshrl.u32 %v2491, 7
  %v2493 = vsub.s32 3, %v2492
  %v2494 = vrot.slane %v2477, %v2493
  %v2499 = vmul.f32 %v2475, %v2482
  %v2500 = vmul.f32 %v2473, %v2486
  %v2501 = vmul.f32 %v2471, %v2490
  %v2502 = vmul.f32 %v2469, %v2494
  %v2503 = vmul.f32 %v2476, %v2482
  %v2504 = vmul.f32 %v2474, %v2486
  %v2505 = vmul.f32 %v2472, %v2490
  %v2506 = vmul.f32 %v2470, %v2494
  %v2507 = vpack.c.bf16 %v2503, %v2499
  %v2508 = vpack.c.bf16 %v2504, %v2500
  %v2509 = vpack.c.bf16 %v2505, %v2501
  %v2510 = vpack.c.bf16 %v2506, %v2502
  %v2515 = vunpack.c.l.b16 %v2507
  %v2516 = vunpack.c.l.b16 %v2508
  %v2517 = vunpack.c.l.b16 %v2509
  %v2518 = vunpack.c.l.b16 %v2510
  %v2519 = vunpack.c.h.b16 %v2507
  %v2520 = vunpack.c.h.b16 %v2508
  %v2521 = vunpack.c.h.b16 %v2509
  %v2522 = vunpack.c.h.b16 %v2510
  %v2523 = vpack.c.b16 %v2516, %v2515
  %v2524 = vpack.c.b16 %v2518, %v2517
  %v2525 = vpack.c.b16 %v2520, %v2519
  %v2526 = vpack.c.b16 %v2522, %v2521
  %2531 = vst [vmem:[#allocation3 + $0x20] sm:$0xff] %v2523
  %2532 = vst [vmem:[#allocation3 + $0x28] sm:$0xff] %v2524
  %2533 = vst [vmem:[#allocation3 + $0x30] sm:$0xff] %v2525
  %2534 = vst [vmem:[#allocation3 + $0x38] sm:$0xff] %v2526
  %2535 = vrot.lane.b32.xlu0 %v2363, 15
  %v2536 = vpop.permute.xlu0 %2535
  %2537 = vrot.lane.b32.xlu0 %v2367, 15
  %v2538 = vpop.permute.xlu0 %2537
  %2539 = vrot.lane.b32.xlu0 %v2364, 15
  %v2540 = vpop.permute.xlu0 %2539
  %2541 = vrot.lane.b32.xlu0 %v2368, 15
  %v2542 = vpop.permute.xlu0 %2541
  %2543 = vrot.lane.b32.xlu0 %v2365, 15
  %v2544 = vpop.permute.xlu0 %2543
  %2545 = vrot.lane.b32.xlu0 %v2369, 15
  %v2546 = vpop.permute.xlu0 %2545
  %2547 = vrot.lane.b32.xlu0 %v2366, 15
  %v2548 = vpop.permute.xlu0 %2547
  %2549 = vrot.lane.b32.xlu0 %v2370, 15
  %v2550 = vpop.permute.xlu0 %2549
  %v2551 = vsel %vm373, %v2544, %v2548
  %v2552 = vsel %vm373, %v2546, %v2550
  %v2553 = vsel %vm373, %v2540, %v2544
  %v2554 = vsel %vm373, %v2542, %v2546
  %v2555 = vsel %vm373, %v2536, %v2540
  %v2556 = vsel %vm373, %v2538, %v2542
  %v2557 = vsel %vm373, %v2548, %v2536
  %v2558 = vsel %vm373, %v2550, %v2538
  %v2559 = vld [vmem:[%s382] ss:$8 sm:$0xf]
  %v2561 = vlaneseq
  %v2562 = vshrl.u32 %v2561, 7
  %v2563 = vsub.s32 0, %v2562
  %v2564 = vrot.slane %v2559, %v2563
  %v2565 = vlaneseq
  %v2566 = vshrl.u32 %v2565, 7
  %v2567 = vsub.s32 1, %v2566
  %v2568 = vrot.slane %v2559, %v2567
  %v2569 = vlaneseq
  %v2570 = vshrl.u32 %v2569, 7
  %v2571 = vsub.s32 2, %v2570
  %v2572 = vrot.slane %v2559, %v2571
  %v2573 = vlaneseq
  %v2574 = vshrl.u32 %v2573, 7
  %v2575 = vsub.s32 3, %v2574
  %v2576 = vrot.slane %v2559, %v2575
  %v2581 = vmul.f32 %v2557, %v2564
  %v2582 = vmul.f32 %v2555, %v2568
  %v2583 = vmul.f32 %v2553, %v2572
  %v2584 = vmul.f32 %v2551, %v2576
  %v2585 = vmul.f32 %v2558, %v2564
  %v2586 = vmul.f32 %v2556, %v2568
  %v2587 = vmul.f32 %v2554, %v2572
  %v2588 = vmul.f32 %v2552, %v2576
  %v2589 = vpack.c.bf16 %v2585, %v2581
  %v2590 = vpack.c.bf16 %v2586, %v2582
  %v2591 = vpack.c.bf16 %v2587, %v2583
  %v2592 = vpack.c.bf16 %v2588, %v2584
  %v2597 = vunpack.c.l.b16 %v2589
  %v2598 = vunpack.c.l.b16 %v2590
  %v2599 = vunpack.c.l.b16 %v2591
  %v2600 = vunpack.c.l.b16 %v2592
  %v2601 = vunpack.c.h.b16 %v2589
  %v2602 = vunpack.c.h.b16 %v2590
  %v2603 = vunpack.c.h.b16 %v2591
  %v2604 = vunpack.c.h.b16 %v2592
  %v2605 = vpack.c.b16 %v2598, %v2597
  %v2606 = vpack.c.b16 %v2600, %v2599
  %v2607 = vpack.c.b16 %v2602, %v2601
  %v2608 = vpack.c.b16 %v2604, %v2603
  %2613 = vst [vmem:[#allocation3 + $0x40] sm:$0xff] %v2605
  %2614 = vst [vmem:[#allocation3 + $0x48] sm:$0xff] %v2606
  %2615 = vst [vmem:[#allocation3 + $0x50] sm:$0xff] %v2607
  %2616 = vst [vmem:[#allocation3 + $0x58] sm:$0xff] %v2608
  %2617 = vrot.lane.b32.xlu0 %v2363, 1
  %v2618 = vpop.permute.xlu0 %2617
  %2619 = vrot.lane.b32.xlu0 %v2367, 1
  %v2620 = vpop.permute.xlu0 %2619
  %2621 = vrot.lane.b32.xlu0 %v2364, 1
  %v2622 = vpop.permute.xlu0 %2621
  %2623 = vrot.lane.b32.xlu0 %v2368, 1
  %v2624 = vpop.permute.xlu0 %2623
  %2625 = vrot.lane.b32.xlu0 %v2365, 1
  %v2626 = vpop.permute.xlu0 %2625
  %2627 = vrot.lane.b32.xlu0 %v2369, 1
  %v2628 = vpop.permute.xlu0 %2627
  %2629 = vrot.lane.b32.xlu0 %v2366, 1
  %v2630 = vpop.permute.xlu0 %2629
  %2631 = vrot.lane.b32.xlu0 %v2370, 1
  %v2632 = vpop.permute.xlu0 %2631
  %v2633 = vsel %vm457, %v2626, %v2630
  %v2634 = vsel %vm457, %v2628, %v2632
  %v2635 = vsel %vm457, %v2622, %v2626
  %v2636 = vsel %vm457, %v2624, %v2628
  %v2637 = vsel %vm457, %v2618, %v2622
  %v2638 = vsel %vm457, %v2620, %v2624
  %v2639 = vsel %vm457, %v2630, %v2618
  %v2640 = vsel %vm457, %v2632, %v2620
  %v2641 = vld [vmem:[%s466] ss:$8 sm:$0xf]
  %v2643 = vlaneseq
  %v2644 = vshrl.u32 %v2643, 7
  %v2645 = vsub.s32 0, %v2644
  %v2646 = vrot.slane %v2641, %v2645
  %v2647 = vlaneseq
  %v2648 = vshrl.u32 %v2647, 7
  %v2649 = vsub.s32 1, %v2648
  %v2650 = vrot.slane %v2641, %v2649
  %v2651 = vlaneseq
  %v2652 = vshrl.u32 %v2651, 7
  %v2653 = vsub.s32 2, %v2652
  %v2654 = vrot.slane %v2641, %v2653
  %v2655 = vlaneseq
  %v2656 = vshrl.u32 %v2655, 7
  %v2657 = vsub.s32 3, %v2656
  %v2658 = vrot.slane %v2641, %v2657
  %v2663 = vmul.f32 %v2639, %v2646
  %v2664 = vmul.f32 %v2637, %v2650
  %v2665 = vmul.f32 %v2635, %v2654
  %v2666 = vmul.f32 %v2633, %v2658
  %v2667 = vmul.f32 %v2640, %v2646
  %v2668 = vmul.f32 %v2638, %v2650
  %v2669 = vmul.f32 %v2636, %v2654
  %v2670 = vmul.f32 %v2634, %v2658
  %v2671 = vpack.c.bf16 %v2667, %v2663
  %v2672 = vpack.c.bf16 %v2668, %v2664
  %v2673 = vpack.c.bf16 %v2669, %v2665
  %v2674 = vpack.c.bf16 %v2670, %v2666
  %v2679 = vunpack.c.l.b16 %v2671
  %v2680 = vunpack.c.l.b16 %v2672
  %v2681 = vunpack.c.l.b16 %v2673
  %v2682 = vunpack.c.l.b16 %v2674
  %v2683 = vunpack.c.h.b16 %v2671
  %v2684 = vunpack.c.h.b16 %v2672
  %v2685 = vunpack.c.h.b16 %v2673
  %v2686 = vunpack.c.h.b16 %v2674
  %v2687 = vpack.c.b16 %v2680, %v2679
  %v2688 = vpack.c.b16 %v2682, %v2681
  %v2689 = vpack.c.b16 %v2684, %v2683
  %v2690 = vpack.c.b16 %v2686, %v2685
  %2695 = vst [vmem:[#allocation3 + $0x60] sm:$0xff] %v2687
  %2696 = vst [vmem:[#allocation3 + $0x68] sm:$0xff] %v2688
  %2697 = vst [vmem:[#allocation3 + $0x70] sm:$0xff] %v2689
  %2698 = vst [vmem:[#allocation3 + $0x78] sm:$0xff] %v2690
  %2699 = vrot.lane.b32.xlu0 %v2363, 127
  %v2700 = vpop.permute.xlu0 %2699
  %2701 = vrot.lane.b32.xlu0 %v2367, 127
  %v2702 = vpop.permute.xlu0 %2701
  %2703 = vrot.lane.b32.xlu0 %v2364, 127
  %v2704 = vpop.permute.xlu0 %2703
  %2705 = vrot.lane.b32.xlu0 %v2368, 127
  %v2706 = vpop.permute.xlu0 %2705
  %2707 = vrot.lane.b32.xlu0 %v2365, 127
  %v2708 = vpop.permute.xlu0 %2707
  %2709 = vrot.lane.b32.xlu0 %v2369, 127
  %v2710 = vpop.permute.xlu0 %2709
  %2711 = vrot.lane.b32.xlu0 %v2366, 127
  %v2712 = vpop.permute.xlu0 %2711
  %2713 = vrot.lane.b32.xlu0 %v2370, 127
  %v2714 = vpop.permute.xlu0 %2713
  %v2715 = vsel %vm541, %v2708, %v2712
  %v2716 = vsel %vm541, %v2710, %v2714
  %v2717 = vsel %vm541, %v2704, %v2708
  %v2718 = vsel %vm541, %v2706, %v2710
  %v2719 = vsel %vm541, %v2700, %v2704
  %v2720 = vsel %vm541, %v2702, %v2706
  %v2721 = vsel %vm541, %v2712, %v2700
  %v2722 = vsel %vm541, %v2714, %v2702
  %v2723 = vld [vmem:[%s550] ss:$8 sm:$0xf]
  %v2725 = vlaneseq
  %v2726 = vshrl.u32 %v2725, 7
  %v2727 = vsub.s32 0, %v2726
  %v2728 = vrot.slane %v2723, %v2727
  %v2729 = vlaneseq
  %v2730 = vshrl.u32 %v2729, 7
  %v2731 = vsub.s32 1, %v2730
  %v2732 = vrot.slane %v2723, %v2731
  %v2733 = vlaneseq
  %v2734 = vshrl.u32 %v2733, 7
  %v2735 = vsub.s32 2, %v2734
  %v2736 = vrot.slane %v2723, %v2735
  %v2737 = vlaneseq
  %v2738 = vshrl.u32 %v2737, 7
  %v2739 = vsub.s32 3, %v2738
  %v2740 = vrot.slane %v2723, %v2739
  %v2745 = vmul.f32 %v2719, %v2728
  %v2746 = vmul.f32 %v2717, %v2732
  %v2747 = vmul.f32 %v2715, %v2736
  %v2748 = vmul.f32 %v2721, %v2740
  %v2749 = vmul.f32 %v2720, %v2728
  %v2750 = vmul.f32 %v2718, %v2732
  %v2751 = vmul.f32 %v2716, %v2736
  %v2752 = vmul.f32 %v2722, %v2740
  %v2753 = vpack.c.bf16 %v2749, %v2745
  %v2754 = vpack.c.bf16 %v2750, %v2746
  %v2755 = vpack.c.bf16 %v2751, %v2747
  %v2756 = vpack.c.bf16 %v2752, %v2748
  %v2761 = vunpack.c.l.b16 %v2753
  %v2762 = vunpack.c.l.b16 %v2754
  %v2763 = vunpack.c.l.b16 %v2755
  %v2764 = vunpack.c.l.b16 %v2756
  %v2765 = vunpack.c.h.b16 %v2753
  %v2766 = vunpack.c.h.b16 %v2754
  %v2767 = vunpack.c.h.b16 %v2755
  %v2768 = vunpack.c.h.b16 %v2756
  %v2769 = vpack.c.b16 %v2762, %v2761
  %v2770 = vpack.c.b16 %v2764, %v2763
  %v2771 = vpack.c.b16 %v2766, %v2765
  %v2772 = vpack.c.b16 %v2768, %v2767
  %2777 = vst [vmem:[#allocation3 + $0x80] sm:$0xff] %v2769
  %2778 = vst [vmem:[#allocation3 + $0x88] sm:$0xff] %v2770
  %2779 = vst [vmem:[#allocation3 + $0x90] sm:$0xff] %v2771
  %2780 = vst [vmem:[#allocation3 + $0x98] sm:$0xff] %v2772
  %2781 = vrot.lane.b32.xlu0 %v2363, 113
  %v2782 = vpop.permute.xlu0 %2781
  %2783 = vrot.lane.b32.xlu0 %v2367, 113
  %v2784 = vpop.permute.xlu0 %2783
  %2785 = vrot.lane.b32.xlu0 %v2364, 113
  %v2786 = vpop.permute.xlu0 %2785
  %2787 = vrot.lane.b32.xlu0 %v2368, 113
  %v2788 = vpop.permute.xlu0 %2787
  %2789 = vrot.lane.b32.xlu0 %v2365, 113
  %v2790 = vpop.permute.xlu0 %2789
  %2791 = vrot.lane.b32.xlu0 %v2369, 113
  %v2792 = vpop.permute.xlu0 %2791
  %2793 = vrot.lane.b32.xlu0 %v2366, 113
  %v2794 = vpop.permute.xlu0 %2793
  %2795 = vrot.lane.b32.xlu0 %v2370, 113
  %v2796 = vpop.permute.xlu0 %2795
  %v2797 = vsel %vm625, %v2790, %v2794
  %v2798 = vsel %vm625, %v2792, %v2796
  %v2799 = vsel %vm625, %v2786, %v2790
  %v2800 = vsel %vm625, %v2788, %v2792
  %v2801 = vsel %vm625, %v2782, %v2786
  %v2802 = vsel %vm625, %v2784, %v2788
  %v2803 = vsel %vm625, %v2794, %v2782
  %v2804 = vsel %vm625, %v2796, %v2784
  %v2805 = vld [vmem:[%s634] ss:$8 sm:$0xf]
  %v2807 = vlaneseq
  %v2808 = vshrl.u32 %v2807, 7
  %v2809 = vsub.s32 0, %v2808
  %v2810 = vrot.slane %v2805, %v2809
  %v2811 = vlaneseq
  %v2812 = vshrl.u32 %v2811, 7
  %v2813 = vsub.s32 1, %v2812
  %v2814 = vrot.slane %v2805, %v2813
  %v2815 = vlaneseq
  %v2816 = vshrl.u32 %v2815, 7
  %v2817 = vsub.s32 2, %v2816
  %v2818 = vrot.slane %v2805, %v2817
  %v2819 = vlaneseq
  %v2820 = vshrl.u32 %v2819, 7
  %v2821 = vsub.s32 3, %v2820
  %v2822 = vrot.slane %v2805, %v2821
  %v2827 = vmul.f32 %v2801, %v2810
  %v2828 = vmul.f32 %v2799, %v2814
  %v2829 = vmul.f32 %v2797, %v2818
  %v2830 = vmul.f32 %v2803, %v2822
  %v2831 = vmul.f32 %v2802, %v2810
  %v2832 = vmul.f32 %v2800, %v2814
  %v2833 = vmul.f32 %v2798, %v2818
  %v2834 = vmul.f32 %v2804, %v2822
  %v2835 = vpack.c.bf16 %v2831, %v2827
  %v2836 = vpack.c.bf16 %v2832, %v2828
  %v2837 = vpack.c.bf16 %v2833, %v2829
  %v2838 = vpack.c.bf16 %v2834, %v2830
  %v2843 = vunpack.c.l.b16 %v2835
  %v2844 = vunpack.c.l.b16 %v2836
  %v2845 = vunpack.c.l.b16 %v2837
  %v2846 = vunpack.c.l.b16 %v2838
  %v2847 = vunpack.c.h.b16 %v2835
  %v2848 = vunpack.c.h.b16 %v2836
  %v2849 = vunpack.c.h.b16 %v2837
  %v2850 = vunpack.c.h.b16 %v2838
  %v2851 = vpack.c.b16 %v2844, %v2843
  %v2852 = vpack.c.b16 %v2846, %v2845
  %v2853 = vpack.c.b16 %v2848, %v2847
  %v2854 = vpack.c.b16 %v2850, %v2849
  %2859 = vst [vmem:[#allocation3 + $0xa0] sm:$0xff] %v2851
  %2860 = vst [vmem:[#allocation3 + $0xa8] sm:$0xff] %v2852
  %2861 = vst [vmem:[#allocation3 + $0xb0] sm:$0xff] %v2853
  %2862 = vst [vmem:[#allocation3 + $0xb8] sm:$0xff] %v2854
  %2863 = vrot.lane.b32.xlu0 %v2363, 112
  %v2864 = vpop.permute.xlu0 %2863
  %2865 = vrot.lane.b32.xlu0 %v2367, 112
  %v2866 = vpop.permute.xlu0 %2865
  %2867 = vrot.lane.b32.xlu0 %v2364, 112
  %v2868 = vpop.permute.xlu0 %2867
  %2869 = vrot.lane.b32.xlu0 %v2368, 112
  %v2870 = vpop.permute.xlu0 %2869
  %2871 = vrot.lane.b32.xlu0 %v2365, 112
  %v2872 = vpop.permute.xlu0 %2871
  %2873 = vrot.lane.b32.xlu0 %v2369, 112
  %v2874 = vpop.permute.xlu0 %2873
  %2875 = vrot.lane.b32.xlu0 %v2366, 112
  %v2876 = vpop.permute.xlu0 %2875
  %2877 = vrot.lane.b32.xlu0 %v2370, 112
  %v2878 = vpop.permute.xlu0 %2877
  %v2879 = vsel %vm709, %v2872, %v2876
  %v2880 = vsel %vm709, %v2874, %v2878
  %v2881 = vsel %vm709, %v2868, %v2872
  %v2882 = vsel %vm709, %v2870, %v2874
  %v2883 = vsel %vm709, %v2864, %v2868
  %v2884 = vsel %vm709, %v2866, %v2870
  %v2885 = vsel %vm709, %v2876, %v2864
  %v2886 = vsel %vm709, %v2878, %v2866
  %v2887 = vld [vmem:[%s718] ss:$8 sm:$0xf]
  %v2889 = vlaneseq
  %v2890 = vshrl.u32 %v2889, 7
  %v2891 = vsub.s32 0, %v2890
  %v2892 = vrot.slane %v2887, %v2891
  %v2893 = vlaneseq
  %v2894 = vshrl.u32 %v2893, 7
  %v2895 = vsub.s32 1, %v2894
  %v2896 = vrot.slane %v2887, %v2895
  %v2897 = vlaneseq
  %v2898 = vshrl.u32 %v2897, 7
  %v2899 = vsub.s32 2, %v2898
  %v2900 = vrot.slane %v2887, %v2899
  %v2901 = vlaneseq
  %v2902 = vshrl.u32 %v2901, 7
  %v2903 = vsub.s32 3, %v2902
  %v2904 = vrot.slane %v2887, %v2903
  %v2909 = vmul.f32 %v2883, %v2892
  %v2910 = vmul.f32 %v2881, %v2896
  %v2911 = vmul.f32 %v2879, %v2900
  %v2912 = vmul.f32 %v2885, %v2904
  %v2913 = vmul.f32 %v2884, %v2892
  %v2914 = vmul.f32 %v2882, %v2896
  %v2915 = vmul.f32 %v2880, %v2900
  %v2916 = vmul.f32 %v2886, %v2904
  %v2917 = vpack.c.bf16 %v2913, %v2909
  %v2918 = vpack.c.bf16 %v2914, %v2910
  %v2919 = vpack.c.bf16 %v2915, %v2911
  %v2920 = vpack.c.bf16 %v2916, %v2912
  %v2925 = vunpack.c.l.b16 %v2917
  %v2926 = vunpack.c.l.b16 %v2918
  %v2927 = vunpack.c.l.b16 %v2919
  %v2928 = vunpack.c.l.b16 %v2920
  %v2929 = vunpack.c.h.b16 %v2917
  %v2930 = vunpack.c.h.b16 %v2918
  %v2931 = vunpack.c.h.b16 %v2919
  %v2932 = vunpack.c.h.b16 %v2920
  %v2933 = vpack.c.b16 %v2926, %v2925
  %v2934 = vpack.c.b16 %v2928, %v2927
  %v2935 = vpack.c.b16 %v2930, %v2929
  %v2936 = vpack.c.b16 %v2932, %v2931
  %2941 = vst [vmem:[#allocation3 + $0xc0] sm:$0xff] %v2933
  %2942 = vst [vmem:[#allocation3 + $0xc8] sm:$0xff] %v2934
  %2943 = vst [vmem:[#allocation3 + $0xd0] sm:$0xff] %v2935
  %2944 = vst [vmem:[#allocation3 + $0xd8] sm:$0xff] %v2936
  %2945 = vrot.lane.b32.xlu0 %v2363, 111
  %v2946 = vpop.permute.xlu0 %2945
  %2947 = vrot.lane.b32.xlu0 %v2367, 111
  %v2948 = vpop.permute.xlu0 %2947
  %2949 = vrot.lane.b32.xlu0 %v2364, 111
  %v2950 = vpop.permute.xlu0 %2949
  %2951 = vrot.lane.b32.xlu0 %v2368, 111
  %v2952 = vpop.permute.xlu0 %2951
  %2953 = vrot.lane.b32.xlu0 %v2365, 111
  %v2954 = vpop.permute.xlu0 %2953
  %2955 = vrot.lane.b32.xlu0 %v2369, 111
  %v2956 = vpop.permute.xlu0 %2955
  %2957 = vrot.lane.b32.xlu0 %v2366, 111
  %v2958 = vpop.permute.xlu0 %2957
  %2959 = vrot.lane.b32.xlu0 %v2370, 111
  %v2960 = vpop.permute.xlu0 %2959
  %v2961 = vsel %vm793, %v2954, %v2958
  %v2962 = vsel %vm793, %v2956, %v2960
  %v2963 = vsel %vm793, %v2950, %v2954
  %v2964 = vsel %vm793, %v2952, %v2956
  %v2965 = vsel %vm793, %v2946, %v2950
  %v2966 = vsel %vm793, %v2948, %v2952
  %v2967 = vsel %vm793, %v2958, %v2946
  %v2968 = vsel %vm793, %v2960, %v2948
  %v2969 = vld [vmem:[%s802] ss:$8 sm:$0xf]
  %v2971 = vlaneseq
  %v2972 = vshrl.u32 %v2971, 7
  %v2973 = vsub.s32 0, %v2972
  %v2974 = vrot.slane %v2969, %v2973
  %v2975 = vlaneseq
  %v2976 = vshrl.u32 %v2975, 7
  %v2977 = vsub.s32 1, %v2976
  %v2978 = vrot.slane %v2969, %v2977
  %v2979 = vlaneseq
  %v2980 = vshrl.u32 %v2979, 7
  %v2981 = vsub.s32 2, %v2980
  %v2982 = vrot.slane %v2969, %v2981
  %v2983 = vlaneseq
  %v2984 = vshrl.u32 %v2983, 7
  %v2985 = vsub.s32 3, %v2984
  %v2986 = vrot.slane %v2969, %v2985
  %v2991 = vmul.f32 %v2965, %v2974
  %v2992 = vmul.f32 %v2963, %v2978
  %v2993 = vmul.f32 %v2961, %v2982
  %v2994 = vmul.f32 %v2967, %v2986
  %v2995 = vmul.f32 %v2966, %v2974
  %v2996 = vmul.f32 %v2964, %v2978
  %v2997 = vmul.f32 %v2962, %v2982
  %v2998 = vmul.f32 %v2968, %v2986
  %v2999 = vpack.c.bf16 %v2995, %v2991
  %v3000 = vpack.c.bf16 %v2996, %v2992
  %v3001 = vpack.c.bf16 %v2997, %v2993
  %v3002 = vpack.c.bf16 %v2998, %v2994
  %v3007 = vunpack.c.l.b16 %v2999
  %v3008 = vunpack.c.l.b16 %v3000
  %v3009 = vunpack.c.l.b16 %v3001
  %v3010 = vunpack.c.l.b16 %v3002
  %v3011 = vunpack.c.h.b16 %v2999
  %v3012 = vunpack.c.h.b16 %v3000
  %v3013 = vunpack.c.h.b16 %v3001
  %v3014 = vunpack.c.h.b16 %v3002
  %v3015 = vpack.c.b16 %v3008, %v3007
  %v3016 = vpack.c.b16 %v3010, %v3009
  %v3017 = vpack.c.b16 %v3012, %v3011
  %v3018 = vpack.c.b16 %v3014, %v3013
  %3023 = vst [vmem:[#allocation3 + $0xe0] sm:$0xff] %v3015
  %3024 = vst [vmem:[#allocation3 + $0xe8] sm:$0xff] %v3016
  %3025 = vst [vmem:[#allocation3 + $0xf0] sm:$0xff] %v3017
  %3026 = vst [vmem:[#allocation3 + $0xf8] sm:$0xff] %v3018
  %s3027 = scalar_lea.vmem %s3, 16
  %v3028 = vld [vmem:[%s3027] sm:$0xf]
  %v3029 = vld [vmem:[%s3027 + $0x4] sm:$0xf]
  %v3030 = vpack.c.bf16 %v2367, %v2363
  %v3031 = vpack.c.bf16 %v2368, %v2364
  %v3032 = vpack.c.bf16 %v2369, %v2365
  %v3033 = vpack.c.bf16 %v2370, %v2366
  %s3034 = scalar_lea.vmem %s4, 16
  %v3035 = vld [vmem:[%s3034] sm:$0xf]
  %v3036 = vld [vmem:[%s3034 + $0x4] sm:$0xf]
  %v3037 = vld [vmem:[#allocation3] sm:$0xff]
  %v3038 = vld [vmem:[#allocation3 + $0x8] sm:$0xff]
  %v3039 = vld [vmem:[#allocation3 + $0x10] sm:$0xff]
  %v3040 = vld [vmem:[#allocation3 + $0x18] sm:$0xff]
  %v3041 = vld [vmem:[#allocation3 + $0x20] sm:$0xff]
  %v3042 = vld [vmem:[#allocation3 + $0x28] sm:$0xff]
  %v3043 = vld [vmem:[#allocation3 + $0x30] sm:$0xff]
  %v3044 = vld [vmem:[#allocation3 + $0x38] sm:$0xff]
  %v3045 = vld [vmem:[#allocation3 + $0x40] sm:$0xff]
  %v3046 = vld [vmem:[#allocation3 + $0x48] sm:$0xff]
  %v3047 = vld [vmem:[#allocation3 + $0x50] sm:$0xff]
  %v3048 = vld [vmem:[#allocation3 + $0x58] sm:$0xff]
  %v3049 = vld [vmem:[#allocation3 + $0x60] sm:$0xff]
  %v3050 = vld [vmem:[#allocation3 + $0x68] sm:$0xff]
  %v3051 = vld [vmem:[#allocation3 + $0x70] sm:$0xff]
  %v3052 = vld [vmem:[#allocation3 + $0x78] sm:$0xff]
  %v3053 = vld [vmem:[#allocation3 + $0x80] sm:$0xff]
  %v3054 = vld [vmem:[#allocation3 + $0x88] sm:$0xff]
  %v3055 = vld [vmem:[#allocation3 + $0x90] sm:$0xff]
  %v3056 = vld [vmem:[#allocation3 + $0x98] sm:$0xff]
  %v3057 = vld [vmem:[#allocation3 + $0xa0] sm:$0xff]
  %v3058 = vld [vmem:[#allocation3 + $0xa8] sm:$0xff]
  %v3059 = vld [vmem:[#allocation3 + $0xb0] sm:$0xff]
  %v3060 = vld [vmem:[#allocation3 + $0xb8] sm:$0xff]
  %v3061 = vld [vmem:[#allocation3 + $0xc0] sm:$0xff]
  %v3062 = vld [vmem:[#allocation3 + $0xc8] sm:$0xff]
  %v3063 = vld [vmem:[#allocation3 + $0xd0] sm:$0xff]
  %v3064 = vld [vmem:[#allocation3 + $0xd8] sm:$0xff]
  %v3065 = vld [vmem:[#allocation3 + $0xe0] sm:$0xff]
  %v3066 = vld [vmem:[#allocation3 + $0xe8] sm:$0xff]
  %v3067 = vld [vmem:[#allocation3 + $0xf0] sm:$0xff]
  %v3068 = vld [vmem:[#allocation3 + $0xf8] sm:$0xff]
  %v3071 = vunpack.c.l.b16 %v3035
  %v3072 = vunpack.c.l.b16 %v3036
  %v3073 = vpack.c.b16 %v3072, %v3071
  %v3107 = vunpack.c.l.b16 %v3037
  %v3108 = vunpack.c.h.b16 %v3037
  %v3109 = vunpack.c.l.b16 %v3038
  %v3110 = vunpack.c.h.b16 %v3038
  %v3111 = vunpack.c.l.b16 %v3039
  %v3112 = vunpack.c.h.b16 %v3039
  %v3113 = vunpack.c.l.b16 %v3040
  %v3114 = vunpack.c.h.b16 %v3040
  %v3115 = vunpack.c.l.b16 %v3041
  %v3116 = vunpack.c.h.b16 %v3041
  %v3117 = vunpack.c.l.b16 %v3042
  %v3118 = vunpack.c.h.b16 %v3042
  %v3119 = vunpack.c.l.b16 %v3043
  %v3120 = vunpack.c.h.b16 %v3043
  %v3121 = vunpack.c.l.b16 %v3044
  %v3122 = vunpack.c.h.b16 %v3044
  %v3123 = vunpack.c.l.b16 %v3045
  %v3124 = vunpack.c.h.b16 %v3045
  %v3125 = vunpack.c.l.b16 %v3046
  %v3126 = vunpack.c.h.b16 %v3046
  %v3127 = vunpack.c.l.b16 %v3047
  %v3128 = vunpack.c.h.b16 %v3047
  %v3129 = vunpack.c.l.b16 %v3048
  %v3130 = vunpack.c.h.b16 %v3048
  %v3131 = vunpack.c.l.b16 %v3049
  %v3132 = vunpack.c.h.b16 %v3049
  %v3133 = vunpack.c.l.b16 %v3050
  %v3134 = vunpack.c.h.b16 %v3050
  %v3135 = vunpack.c.l.b16 %v3051
  %v3136 = vunpack.c.h.b16 %v3051
  %v3137 = vunpack.c.l.b16 %v3052
  %v3138 = vunpack.c.h.b16 %v3052
  %v3139 = vunpack.c.l.b16 %v3053
  %v3140 = vunpack.c.h.b16 %v3053
  %v3141 = vunpack.c.l.b16 %v3054
  %v3142 = vunpack.c.h.b16 %v3054
  %v3143 = vunpack.c.l.b16 %v3055
  %v3144 = vunpack.c.h.b16 %v3055
  %v3145 = vunpack.c.l.b16 %v3056
  %v3146 = vunpack.c.h.b16 %v3056
  %v3147 = vunpack.c.l.b16 %v3057
  %v3148 = vunpack.c.h.b16 %v3057
  %v3149 = vunpack.c.l.b16 %v3058
  %v3150 = vunpack.c.h.b16 %v3058
  %v3151 = vunpack.c.l.b16 %v3059
  %v3152 = vunpack.c.h.b16 %v3059
  %v3153 = vunpack.c.l.b16 %v3060
  %v3154 = vunpack.c.h.b16 %v3060
  %v3155 = vunpack.c.l.b16 %v3061
  %v3156 = vunpack.c.h.b16 %v3061
  %v3157 = vunpack.c.l.b16 %v3062
  %v3158 = vunpack.c.h.b16 %v3062
  %v3159 = vunpack.c.l.b16 %v3063
  %v3160 = vunpack.c.h.b16 %v3063
  %v3161 = vunpack.c.l.b16 %v3064
  %v3162 = vunpack.c.h.b16 %v3064
  %v3163 = vunpack.c.l.b16 %v3065
  %v3164 = vunpack.c.h.b16 %v3065
  %v3165 = vunpack.c.l.b16 %v3066
  %v3166 = vunpack.c.h.b16 %v3066
  %v3167 = vunpack.c.l.b16 %v3067
  %v3168 = vunpack.c.h.b16 %v3067
  %v3169 = vunpack.c.l.b16 %v3068
  %v3170 = vunpack.c.h.b16 %v3068
  %v3171 = vpack.c.b16 %v3111, %v3107
  %v3172 = vpack.c.b16 %v3112, %v3108
  %v3173 = vpack.c.b16 %v3113, %v3109
  %v3174 = vpack.c.b16 %v3114, %v3110
  %v3175 = vpack.c.b16 %v3119, %v3115
  %v3176 = vpack.c.b16 %v3120, %v3116
  %v3177 = vpack.c.b16 %v3121, %v3117
  %v3178 = vpack.c.b16 %v3122, %v3118
  %v3179 = vpack.c.b16 %v3127, %v3123
  %v3180 = vpack.c.b16 %v3128, %v3124
  %v3181 = vpack.c.b16 %v3129, %v3125
  %v3182 = vpack.c.b16 %v3130, %v3126
  %v3183 = vpack.c.b16 %v3135, %v3131
  %v3184 = vpack.c.b16 %v3136, %v3132
  %v3185 = vpack.c.b16 %v3137, %v3133
  %v3186 = vpack.c.b16 %v3138, %v3134
  %v3187 = vpack.c.b16 %v3143, %v3139
  %v3188 = vpack.c.b16 %v3144, %v3140
  %v3189 = vpack.c.b16 %v3145, %v3141
  %v3190 = vpack.c.b16 %v3146, %v3142
  %v3191 = vpack.c.b16 %v3151, %v3147
  %v3192 = vpack.c.b16 %v3152, %v3148
  %v3193 = vpack.c.b16 %v3153, %v3149
  %v3194 = vpack.c.b16 %v3154, %v3150
  %v3195 = vpack.c.b16 %v3159, %v3155
  %v3196 = vpack.c.b16 %v3160, %v3156
  %v3197 = vpack.c.b16 %v3161, %v3157
  %v3198 = vpack.c.b16 %v3162, %v3158
  %v3199 = vpack.c.b16 %v3167, %v3163
  %v3200 = vpack.c.b16 %v3168, %v3164
  %v3201 = vpack.c.b16 %v3169, %v3165
  %v3202 = vpack.c.b16 %v3170, %v3166
  %3235 = vmatprep.subr.bf16.mxu0 %v3200
  %3236 = vmatpush1.bf16.msra.mxu0 %v3199
  %3237 = vmatprep.subr.bf16.mxu0 %v3196
  %3238 = vmatpush1.bf16.msra.mxu0 %v3195
  %3239 = vmatprep.subr.bf16.mxu0 %v3192
  %3240 = vmatpush1.bf16.msra.mxu0 %v3191
  %3241 = vmatprep.subr.bf16.mxu0 %v3188
  %3242 = vmatpush1.bf16.msra.mxu0 %v3187
  %3243 = vmatprep.subr.bf16.mxu0 %v3184
  %3244 = vmatpush1.bf16.msra.mxu0 %v3183
  %3245 = vmatprep.subr.bf16.mxu0 %v3180
  %3246 = vmatpush1.bf16.msra.mxu0 %v3179
  %3247 = vmatprep.subr.bf16.mxu0 %v3176
  %3248 = vmatpush1.bf16.msra.mxu0 %v3175
  %3249 = vmatprep.subr.bf16.mxu0 %v3172
  %3250 = vmatpush1.bf16.msra.mxu0 %v3171
  %3251 = vmatprep.subr.bf16.mxu0 0
  %3252 = vmatpush2.bf16.msra.mxu0 0
  %3253 = vmatprep.subr.bf16.mxu0 0
  %3254 = vmatpush2.bf16.msra.mxu0 0
  %3255 = vmatprep.subr.bf16.mxu0 0
  %3256 = vmatpush2.bf16.msra.mxu0 0
  %3257 = vmatprep.subr.bf16.mxu0 0
  %3258 = vmatpush2.bf16.msra.mxu0 0
  %3259 = vmatprep.subr.bf16.mxu0 0
  %3260 = vmatpush2.bf16.msra.mxu0 0
  %3261 = vmatprep.subr.bf16.mxu0 0
  %3262 = vmatpush2.bf16.msra.mxu0 0
  %3263 = vmatprep.subr.bf16.mxu0 0
  %3264 = vmatpush2.bf16.msra.mxu0 0
  %3265 = vmatprep.subr.bf16.mxu0 0
  %3266 = vmatpush2.bf16.msra.mxu0 0
  %3267 = vmatprep.mubr.bf16.mxu0 0
  %3268 = vmatmul.mubr.bf16.gmra.mxu0 %v3073
  %v3269 = vpop.f32.mrf.mxu0
  %v3270 = vadd.f32 0.0, %v3269
  %v3271 = vpop.f32.mrf.mxu0
  %v3272 = vadd.f32 0.0, %v3271
  %v3273 = vpop.f32.mrf.mxu0
  %v3274 = vadd.f32 0.0, %v3273
  %v3275 = vpop.f32.mrf.mxu0
  %v3276 = vadd.f32 0.0, %v3275
  %3277 = vdwg.mxu0
  %3278 = vmatprep.subr.bf16.mxu0 %v3202
  %3279 = vmatpush1.bf16.msra.mxu0 %v3201
  %3280 = vmatprep.subr.bf16.mxu0 %v3198
  %3281 = vmatpush1.bf16.msra.mxu0 %v3197
  %3282 = vmatprep.subr.bf16.mxu0 %v3194
  %3283 = vmatpush1.bf16.msra.mxu0 %v3193
  %3284 = vmatprep.subr.bf16.mxu0 %v3190
  %3285 = vmatpush1.bf16.msra.mxu0 %v3189
  %3286 = vmatprep.subr.bf16.mxu0 %v3186
  %3287 = vmatpush1.bf16.msra.mxu0 %v3185
  %3288 = vmatprep.subr.bf16.mxu0 %v3182
  %3289 = vmatpush1.bf16.msra.mxu0 %v3181
  %3290 = vmatprep.subr.bf16.mxu0 %v3178
  %3291 = vmatpush1.bf16.msra.mxu0 %v3177
  %3292 = vmatprep.subr.bf16.mxu0 %v3174
  %3293 = vmatpush1.bf16.msra.mxu0 %v3173
  %3294 = vmatprep.subr.bf16.mxu0 0
  %3295 = vmatpush2.bf16.msra.mxu0 0
  %3296 = vmatprep.subr.bf16.mxu0 0
  %3297 = vmatpush2.bf16.msra.mxu0 0
  %3298 = vmatprep.subr.bf16.mxu0 0
  %3299 = vmatpush2.bf16.msra.mxu0 0
  %3300 = vmatprep.subr.bf16.mxu0 0
  %3301 = vmatpush2.bf16.msra.mxu0 0
  %3302 = vmatprep.subr.bf16.mxu0 0
  %3303 = vmatpush2.bf16.msra.mxu0 0
  %3304 = vmatprep.subr.bf16.mxu0 0
  %3305 = vmatpush2.bf16.msra.mxu0 0
  %3306 = vmatprep.subr.bf16.mxu0 0
  %3307 = vmatpush2.bf16.msra.mxu0 0
  %3308 = vmatprep.subr.bf16.mxu0 0
  %3309 = vmatpush2.bf16.msra.mxu0 0
  %3310 = vmatprep.mubr.bf16.mxu0 0
  %3311 = vmatmul.mubr.bf16.gmra.mxu0 %v3073
  %v3312 = vpop.f32.mrf.mxu0
  %v3313 = vadd.f32 0.0, %v3312
  %v3314 = vpop.f32.mrf.mxu0
  %v3315 = vadd.f32 0.0, %v3314
  %v3316 = vpop.f32.mrf.mxu0
  %v3317 = vadd.f32 0.0, %v3316
  %v3318 = vpop.f32.mrf.mxu0
  %v3319 = vadd.f32 0.0, %v3318
  %3320 = vdwg.mxu0
  %v3323 = vunpack.c.l.b16 %v3028
  %v3324 = vunpack.c.l.b16 %v3029
  %v3325 = vpack.c.b16 %v3324, %v3323
  %v3327 = vsel %vm43, %v3325, 0
  %3329 = vmatprep.subr.bf16.mxu0 0
  %3330 = vmatpush1.bf16.msra.mxu0 0
  %3331 = vmatprep.subr.bf16.mxu0 0
  %3332 = vmatpush1.bf16.msra.mxu0 0
  %3333 = vmatprep.subr.bf16.mxu0 0
  %3334 = vmatpush1.bf16.msra.mxu0 0
  %3335 = vmatprep.subr.bf16.mxu0 0
  %3336 = vmatpush1.bf16.msra.mxu0 0
  %3337 = vmatprep.subr.bf16.mxu0 0
  %3338 = vmatpush1.bf16.msra.mxu0 0
  %3339 = vmatprep.subr.bf16.mxu0 0
  %3340 = vmatpush1.bf16.msra.mxu0 0
  %3341 = vmatprep.subr.bf16.mxu0 0
  %3342 = vmatpush1.bf16.msra.mxu0 0
  %3343 = vmatprep.subr.bf16.mxu0 %v3031
  %3344 = vmatpush1.bf16.msra.mxu0 %v3030
  %3345 = vmatprep.subr.bf16.mxu0 0
  %3346 = vmatpush2.bf16.msra.mxu0 0
  %3347 = vmatprep.subr.bf16.mxu0 0
  %3348 = vmatpush2.bf16.msra.mxu0 0
  %3349 = vmatprep.subr.bf16.mxu0 0
  %3350 = vmatpush2.bf16.msra.mxu0 0
  %3351 = vmatprep.subr.bf16.mxu0 0
  %3352 = vmatpush2.bf16.msra.mxu0 0
  %3353 = vmatprep.subr.bf16.mxu0 0
  %3354 = vmatpush2.bf16.msra.mxu0 0
  %3355 = vmatprep.subr.bf16.mxu0 0
  %3356 = vmatpush2.bf16.msra.mxu0 0
  %3357 = vmatprep.subr.bf16.mxu0 0
  %3358 = vmatpush2.bf16.msra.mxu0 0
  %3359 = vmatprep.subr.bf16.mxu0 0
  %3360 = vmatpush2.bf16.msra.mxu0 0
  %3361 = vmatprep.mubr.bf16.mxu0 0
  %3362 = vmatmul.mubr.bf16.gmra.mxu0 %v3327
  %v3363 = vpop.f32.mrf.mxu0
  %v3364 = vadd.f32 %v3270, %v3363
  %v3365 = vpop.f32.mrf.mxu0
  %v3366 = vadd.f32 %v3272, %v3365
  %v3367 = vpop.f32.mrf.mxu0
  %v3368 = vadd.f32 %v3274, %v3367
  %v3369 = vpop.f32.mrf.mxu0
  %v3370 = vadd.f32 %v3276, %v3369
  %3371 = vdwg.mxu0
  %3372 = vmatprep.subr.bf16.mxu0 0
  %3373 = vmatpush1.bf16.msra.mxu0 0
  %3374 = vmatprep.subr.bf16.mxu0 0
  %3375 = vmatpush1.bf16.msra.mxu0 0
  %3376 = vmatprep.subr.bf16.mxu0 0
  %3377 = vmatpush1.bf16.msra.mxu0 0
  %3378 = vmatprep.subr.bf16.mxu0 0
  %3379 = vmatpush1.bf16.msra.mxu0 0
  %3380 = vmatprep.subr.bf16.mxu0 0
  %3381 = vmatpush1.bf16.msra.mxu0 0
  %3382 = vmatprep.subr.bf16.mxu0 0
  %3383 = vmatpush1.bf16.msra.mxu0 0
  %3384 = vmatprep.subr.bf16.mxu0 0
  %3385 = vmatpush1.bf16.msra.mxu0 0
  %3386 = vmatprep.subr.bf16.mxu0 %v3033
  %3387 = vmatpush1.bf16.msra.mxu0 %v3032
  %3388 = vmatprep.subr.bf16.mxu0 0
  %3389 = vmatpush2.bf16.msra.mxu0 0
  %3390 = vmatprep.subr.bf16.mxu0 0
  %3391 = vmatpush2.bf16.msra.mxu0 0
  %3392 = vmatprep.subr.bf16.mxu0 0
  %3393 = vmatpush2.bf16.msra.mxu0 0
  %3394 = vmatprep.subr.bf16.mxu0 0
  %3395 = vmatpush2.bf16.msra.mxu0 0
  %3396 = vmatprep.subr.bf16.mxu0 0
  %3397 = vmatpush2.bf16.msra.mxu0 0
  %3398 = vmatprep.subr.bf16.mxu0 0
  %3399 = vmatpush2.bf16.msra.mxu0 0
  %3400 = vmatprep.subr.bf16.mxu0 0
  %3401 = vmatpush2.bf16.msra.mxu0 0
  %3402 = vmatprep.subr.bf16.mxu0 0
  %3403 = vmatpush2.bf16.msra.mxu0 0
  %3404 = vmatprep.mubr.bf16.mxu0 0
  %3405 = vmatmul.mubr.bf16.gmra.mxu0 %v3327
  %v3406 = vpop.f32.mrf.mxu0
  %v3407 = vadd.f32 %v3313, %v3406
  %v3408 = vpop.f32.mrf.mxu0
  %v3409 = vadd.f32 %v3315, %v3408
  %v3410 = vpop.f32.mrf.mxu0
  %v3411 = vadd.f32 %v3317, %v3410
  %v3412 = vpop.f32.mrf.mxu0
  %v3413 = vadd.f32 %v3319, %v3412
  %3414 = vdwg.mxu0
  %v3415 = vmax.f32 %v3364, 0.0
  %v3416 = vmax.f32 %v3366, 0.0
  %v3417 = vmax.f32 %v3407, 0.0
  %v3418 = vmax.f32 %v3409, 0.0
  %v3419 = vmax.f32 %v3368, 0.0
  %v3420 = vmax.f32 %v3370, 0.0
  %v3421 = vmax.f32 %v3411, 0.0
  %v3422 = vmax.f32 %v3413, 0.0
  %3423 = vst [vmem:[#allocation2] sm:$0xff] %v3415
  %3424 = vst [vmem:[#allocation2 + $0x8] sm:$0xff] %v3416
  %3425 = vst [vmem:[#allocation2 + $0x10] sm:$0xff] %v3417
  %3426 = vst [vmem:[#allocation2 + $0x18] sm:$0xff] %v3418
  %3427 = vst [vmem:[#allocation2 + $0x20] sm:$0xff] %v3419
  %3428 = vst [vmem:[#allocation2 + $0x28] sm:$0xff] %v3420
  %3429 = vst [vmem:[#allocation2 + $0x30] sm:$0xff] %v3421
  %3430 = vst [vmem:[#allocation2 + $0x38] sm:$0xff] %v3422
  %v3431 = vld [vmem:[#allocation2] sm:$0xff]
  %v3432 = vld [vmem:[#allocation2 + $0x8] sm:$0xff]
  %v3433 = vld [vmem:[#allocation2 + $0x10] sm:$0xff]
  %v3434 = vld [vmem:[#allocation2 + $0x18] sm:$0xff]
  %v3435 = vld [vmem:[#allocation2 + $0x20] sm:$0xff]
  %v3436 = vld [vmem:[#allocation2 + $0x28] sm:$0xff]
  %v3437 = vld [vmem:[#allocation2 + $0x30] sm:$0xff]
  %v3438 = vld [vmem:[#allocation2 + $0x38] sm:$0xff]
  %3439 = vrot.lane.b32.xlu0 %v3431, 17
  %v3440 = vpop.permute.xlu0 %3439
  %3441 = vrot.lane.b32.xlu0 %v3435, 17
  %v3442 = vpop.permute.xlu0 %3441
  %3443 = vrot.lane.b32.xlu0 %v3432, 17
  %v3444 = vpop.permute.xlu0 %3443
  %3445 = vrot.lane.b32.xlu0 %v3436, 17
  %v3446 = vpop.permute.xlu0 %3445
  %3447 = vrot.lane.b32.xlu0 %v3433, 17
  %v3448 = vpop.permute.xlu0 %3447
  %3449 = vrot.lane.b32.xlu0 %v3437, 17
  %v3450 = vpop.permute.xlu0 %3449
  %3451 = vrot.lane.b32.xlu0 %v3434, 17
  %v3452 = vpop.permute.xlu0 %3451
  %3453 = vrot.lane.b32.xlu0 %v3438, 17
  %v3454 = vpop.permute.xlu0 %3453
  %v3455 = vsel %vm206, %v3448, %v3452
  %v3456 = vsel %vm206, %v3450, %v3454
  %v3457 = vsel %vm206, %v3444, %v3448
  %v3458 = vsel %vm206, %v3446, %v3450
  %v3459 = vsel %vm206, %v3440, %v3444
  %v3460 = vsel %vm206, %v3442, %v3446
  %v3461 = vsel %vm206, %v3452, %v3440
  %v3462 = vsel %vm206, %v3454, %v3442
  %v3463 = vld [vmem:[%s0] ss:$8 sm:$0xf]
  %v3465 = vlaneseq
  %v3466 = vshrl.u32 %v3465, 7
  %v3467 = vsub.s32 0, %v3466
  %v3468 = vrot.slane %v3463, %v3467
  %v3469 = vlaneseq
  %v3470 = vshrl.u32 %v3469, 7
  %v3471 = vsub.s32 1, %v3470
  %v3472 = vrot.slane %v3463, %v3471
  %v3473 = vlaneseq
  %v3474 = vshrl.u32 %v3473, 7
  %v3475 = vsub.s32 2, %v3474
  %v3476 = vrot.slane %v3463, %v3475
  %v3477 = vlaneseq
  %v3478 = vshrl.u32 %v3477, 7
  %v3479 = vsub.s32 3, %v3478
  %v3480 = vrot.slane %v3463, %v3479
  %v3485 = vmul.f32 %v3461, %v3468
  %v3486 = vmul.f32 %v3459, %v3472
  %v3487 = vmul.f32 %v3457, %v3476
  %v3488 = vmul.f32 %v3455, %v3480
  %v3489 = vmul.f32 %v3462, %v3468
  %v3490 = vmul.f32 %v3460, %v3472
  %v3491 = vmul.f32 %v3458, %v3476
  %v3492 = vmul.f32 %v3456, %v3480
  %v3493 = vpack.c.bf16 %v3489, %v3485
  %v3494 = vpack.c.bf16 %v3490, %v3486
  %v3495 = vpack.c.bf16 %v3491, %v3487
  %v3496 = vpack.c.bf16 %v3492, %v3488
  %v3501 = vunpack.c.l.b16 %v3493
  %v3502 = vunpack.c.l.b16 %v3494
  %v3503 = vunpack.c.l.b16 %v3495
  %v3504 = vunpack.c.l.b16 %v3496
  %v3505 = vunpack.c.h.b16 %v3493
  %v3506 = vunpack.c.h.b16 %v3494
  %v3507 = vunpack.c.h.b16 %v3495
  %v3508 = vunpack.c.h.b16 %v3496
  %v3509 = vpack.c.b16 %v3502, %v3501
  %v3510 = vpack.c.b16 %v3504, %v3503
  %v3511 = vpack.c.b16 %v3506, %v3505
  %v3512 = vpack.c.b16 %v3508, %v3507
  %3517 = vst [vmem:[#allocation3] sm:$0xff] %v3509
  %3518 = vst [vmem:[#allocation3 + $0x8] sm:$0xff] %v3510
  %3519 = vst [vmem:[#allocation3 + $0x10] sm:$0xff] %v3511
  %3520 = vst [vmem:[#allocation3 + $0x18] sm:$0xff] %v3512
  %3521 = vrot.lane.b32.xlu0 %v3431, 16
  %v3522 = vpop.permute.xlu0 %3521
  %3523 = vrot.lane.b32.xlu0 %v3435, 16
  %v3524 = vpop.permute.xlu0 %3523
  %3525 = vrot.lane.b32.xlu0 %v3432, 16
  %v3526 = vpop.permute.xlu0 %3525
  %3527 = vrot.lane.b32.xlu0 %v3436, 16
  %v3528 = vpop.permute.xlu0 %3527
  %3529 = vrot.lane.b32.xlu0 %v3433, 16
  %v3530 = vpop.permute.xlu0 %3529
  %3531 = vrot.lane.b32.xlu0 %v3437, 16
  %v3532 = vpop.permute.xlu0 %3531
  %3533 = vrot.lane.b32.xlu0 %v3434, 16
  %v3534 = vpop.permute.xlu0 %3533
  %3535 = vrot.lane.b32.xlu0 %v3438, 16
  %v3536 = vpop.permute.xlu0 %3535
  %v3537 = vsel %vm289, %v3530, %v3534
  %v3538 = vsel %vm289, %v3532, %v3536
  %v3539 = vsel %vm289, %v3526, %v3530
  %v3540 = vsel %vm289, %v3528, %v3532
  %v3541 = vsel %vm289, %v3522, %v3526
  %v3542 = vsel %vm289, %v3524, %v3528
  %v3543 = vsel %vm289, %v3534, %v3522
  %v3544 = vsel %vm289, %v3536, %v3524
  %v3545 = vld [vmem:[%s298] ss:$8 sm:$0xf]
  %v3547 = vlaneseq
  %v3548 = vshrl.u32 %v3547, 7
  %v3549 = vsub.s32 0, %v3548
  %v3550 = vrot.slane %v3545, %v3549
  %v3551 = vlaneseq
  %v3552 = vshrl.u32 %v3551, 7
  %v3553 = vsub.s32 1, %v3552
  %v3554 = vrot.slane %v3545, %v3553
  %v3555 = vlaneseq
  %v3556 = vshrl.u32 %v3555, 7
  %v3557 = vsub.s32 2, %v3556
  %v3558 = vrot.slane %v3545, %v3557
  %v3559 = vlaneseq
  %v3560 = vshrl.u32 %v3559, 7
  %v3561 = vsub.s32 3, %v3560
  %v3562 = vrot.slane %v3545, %v3561
  %v3567 = vmul.f32 %v3543, %v3550
  %v3568 = vmul.f32 %v3541, %v3554
  %v3569 = vmul.f32 %v3539, %v3558
  %v3570 = vmul.f32 %v3537, %v3562
  %v3571 = vmul.f32 %v3544, %v3550
  %v3572 = vmul.f32 %v3542, %v3554
  %v3573 = vmul.f32 %v3540, %v3558
  %v3574 = vmul.f32 %v3538, %v3562
  %v3575 = vpack.c.bf16 %v3571, %v3567
  %v3576 = vpack.c.bf16 %v3572, %v3568
  %v3577 = vpack.c.bf16 %v3573, %v3569
  %v3578 = vpack.c.bf16 %v3574, %v3570
  %v3583 = vunpack.c.l.b16 %v3575
  %v3584 = vunpack.c.l.b16 %v3576
  %v3585 = vunpack.c.l.b16 %v3577
  %v3586 = vunpack.c.l.b16 %v3578
  %v3587 = vunpack.c.h.b16 %v3575
  %v3588 = vunpack.c.h.b16 %v3576
  %v3589 = vunpack.c.h.b16 %v3577
  %v3590 = vunpack.c.h.b16 %v3578
  %v3591 = vpack.c.b16 %v3584, %v3583
  %v3592 = vpack.c.b16 %v3586, %v3585
  %v3593 = vpack.c.b16 %v3588, %v3587
  %v3594 = vpack.c.b16 %v3590, %v3589
  %3599 = vst [vmem:[#allocation3 + $0x20] sm:$0xff] %v3591
  %3600 = vst [vmem:[#allocation3 + $0x28] sm:$0xff] %v3592
  %3601 = vst [vmem:[#allocation3 + $0x30] sm:$0xff] %v3593
  %3602 = vst [vmem:[#allocation3 + $0x38] sm:$0xff] %v3594
  %3603 = vrot.lane.b32.xlu0 %v3431, 15
  %v3604 = vpop.permute.xlu0 %3603
  %3605 = vrot.lane.b32.xlu0 %v3435, 15
  %v3606 = vpop.permute.xlu0 %3605
  %3607 = vrot.lane.b32.xlu0 %v3432, 15
  %v3608 = vpop.permute.xlu0 %3607
  %3609 = vrot.lane.b32.xlu0 %v3436, 15
  %v3610 = vpop.permute.xlu0 %3609
  %3611 = vrot.lane.b32.xlu0 %v3433, 15
  %v3612 = vpop.permute.xlu0 %3611
  %3613 = vrot.lane.b32.xlu0 %v3437, 15
  %v3614 = vpop.permute.xlu0 %3613
  %3615 = vrot.lane.b32.xlu0 %v3434, 15
  %v3616 = vpop.permute.xlu0 %3615
  %3617 = vrot.lane.b32.xlu0 %v3438, 15
  %v3618 = vpop.permute.xlu0 %3617
  %v3619 = vsel %vm373, %v3612, %v3616
  %v3620 = vsel %vm373, %v3614, %v3618
  %v3621 = vsel %vm373, %v3608, %v3612
  %v3622 = vsel %vm373, %v3610, %v3614
  %v3623 = vsel %vm373, %v3604, %v3608
  %v3624 = vsel %vm373, %v3606, %v3610
  %v3625 = vsel %vm373, %v3616, %v3604
  %v3626 = vsel %vm373, %v3618, %v3606
  %v3627 = vld [vmem:[%s382] ss:$8 sm:$0xf]
  %v3629 = vlaneseq
  %v3630 = vshrl.u32 %v3629, 7
  %v3631 = vsub.s32 0, %v3630
  %v3632 = vrot.slane %v3627, %v3631
  %v3633 = vlaneseq
  %v3634 = vshrl.u32 %v3633, 7
  %v3635 = vsub.s32 1, %v3634
  %v3636 = vrot.slane %v3627, %v3635
  %v3637 = vlaneseq
  %v3638 = vshrl.u32 %v3637, 7
  %v3639 = vsub.s32 2, %v3638
  %v3640 = vrot.slane %v3627, %v3639
  %v3641 = vlaneseq
  %v3642 = vshrl.u32 %v3641, 7
  %v3643 = vsub.s32 3, %v3642
  %v3644 = vrot.slane %v3627, %v3643
  %v3649 = vmul.f32 %v3625, %v3632
  %v3650 = vmul.f32 %v3623, %v3636
  %v3651 = vmul.f32 %v3621, %v3640
  %v3652 = vmul.f32 %v3619, %v3644
  %v3653 = vmul.f32 %v3626, %v3632
  %v3654 = vmul.f32 %v3624, %v3636
  %v3655 = vmul.f32 %v3622, %v3640
  %v3656 = vmul.f32 %v3620, %v3644
  %v3657 = vpack.c.bf16 %v3653, %v3649
  %v3658 = vpack.c.bf16 %v3654, %v3650
  %v3659 = vpack.c.bf16 %v3655, %v3651
  %v3660 = vpack.c.bf16 %v3656, %v3652
  %v3665 = vunpack.c.l.b16 %v3657
  %v3666 = vunpack.c.l.b16 %v3658
  %v3667 = vunpack.c.l.b16 %v3659
  %v3668 = vunpack.c.l.b16 %v3660
  %v3669 = vunpack.c.h.b16 %v3657
  %v3670 = vunpack.c.h.b16 %v3658
  %v3671 = vunpack.c.h.b16 %v3659
  %v3672 = vunpack.c.h.b16 %v3660
  %v3673 = vpack.c.b16 %v3666, %v3665
  %v3674 = vpack.c.b16 %v3668, %v3667
  %v3675 = vpack.c.b16 %v3670, %v3669
  %v3676 = vpack.c.b16 %v3672, %v3671
  %3681 = vst [vmem:[#allocation3 + $0x40] sm:$0xff] %v3673
  %3682 = vst [vmem:[#allocation3 + $0x48] sm:$0xff] %v3674
  %3683 = vst [vmem:[#allocation3 + $0x50] sm:$0xff] %v3675
  %3684 = vst [vmem:[#allocation3 + $0x58] sm:$0xff] %v3676
  %3685 = vrot.lane.b32.xlu0 %v3431, 1
  %v3686 = vpop.permute.xlu0 %3685
  %3687 = vrot.lane.b32.xlu0 %v3435, 1
  %v3688 = vpop.permute.xlu0 %3687
  %3689 = vrot.lane.b32.xlu0 %v3432, 1
  %v3690 = vpop.permute.xlu0 %3689
  %3691 = vrot.lane.b32.xlu0 %v3436, 1
  %v3692 = vpop.permute.xlu0 %3691
  %3693 = vrot.lane.b32.xlu0 %v3433, 1
  %v3694 = vpop.permute.xlu0 %3693
  %3695 = vrot.lane.b32.xlu0 %v3437, 1
  %v3696 = vpop.permute.xlu0 %3695
  %3697 = vrot.lane.b32.xlu0 %v3434, 1
  %v3698 = vpop.permute.xlu0 %3697
  %3699 = vrot.lane.b32.xlu0 %v3438, 1
  %v3700 = vpop.permute.xlu0 %3699
  %v3701 = vsel %vm457, %v3694, %v3698
  %v3702 = vsel %vm457, %v3696, %v3700
  %v3703 = vsel %vm457, %v3690, %v3694
  %v3704 = vsel %vm457, %v3692, %v3696
  %v3705 = vsel %vm457, %v3686, %v3690
  %v3706 = vsel %vm457, %v3688, %v3692
  %v3707 = vsel %vm457, %v3698, %v3686
  %v3708 = vsel %vm457, %v3700, %v3688
  %v3709 = vld [vmem:[%s466] ss:$8 sm:$0xf]
  %v3711 = vlaneseq
  %v3712 = vshrl.u32 %v3711, 7
  %v3713 = vsub.s32 0, %v3712
  %v3714 = vrot.slane %v3709, %v3713
  %v3715 = vlaneseq
  %v3716 = vshrl.u32 %v3715, 7
  %v3717 = vsub.s32 1, %v3716
  %v3718 = vrot.slane %v3709, %v3717
  %v3719 = vlaneseq
  %v3720 = vshrl.u32 %v3719, 7
  %v3721 = vsub.s32 2, %v3720
  %v3722 = vrot.slane %v3709, %v3721
  %v3723 = vlaneseq
  %v3724 = vshrl.u32 %v3723, 7
  %v3725 = vsub.s32 3, %v3724
  %v3726 = vrot.slane %v3709, %v3725
  %v3731 = vmul.f32 %v3707, %v3714
  %v3732 = vmul.f32 %v3705, %v3718
  %v3733 = vmul.f32 %v3703, %v3722
  %v3734 = vmul.f32 %v3701, %v3726
  %v3735 = vmul.f32 %v3708, %v3714
  %v3736 = vmul.f32 %v3706, %v3718
  %v3737 = vmul.f32 %v3704, %v3722
  %v3738 = vmul.f32 %v3702, %v3726
  %v3739 = vpack.c.bf16 %v3735, %v3731
  %v3740 = vpack.c.bf16 %v3736, %v3732
  %v3741 = vpack.c.bf16 %v3737, %v3733
  %v3742 = vpack.c.bf16 %v3738, %v3734
  %v3747 = vunpack.c.l.b16 %v3739
  %v3748 = vunpack.c.l.b16 %v3740
  %v3749 = vunpack.c.l.b16 %v3741
  %v3750 = vunpack.c.l.b16 %v3742
  %v3751 = vunpack.c.h.b16 %v3739
  %v3752 = vunpack.c.h.b16 %v3740
  %v3753 = vunpack.c.h.b16 %v3741
  %v3754 = vunpack.c.h.b16 %v3742
  %v3755 = vpack.c.b16 %v3748, %v3747
  %v3756 = vpack.c.b16 %v3750, %v3749
  %v3757 = vpack.c.b16 %v3752, %v3751
  %v3758 = vpack.c.b16 %v3754, %v3753
  %3763 = vst [vmem:[#allocation3 + $0x60] sm:$0xff] %v3755
  %3764 = vst [vmem:[#allocation3 + $0x68] sm:$0xff] %v3756
  %3765 = vst [vmem:[#allocation3 + $0x70] sm:$0xff] %v3757
  %3766 = vst [vmem:[#allocation3 + $0x78] sm:$0xff] %v3758
  %3767 = vrot.lane.b32.xlu0 %v3431, 127
  %v3768 = vpop.permute.xlu0 %3767
  %3769 = vrot.lane.b32.xlu0 %v3435, 127
  %v3770 = vpop.permute.xlu0 %3769
  %3771 = vrot.lane.b32.xlu0 %v3432, 127
  %v3772 = vpop.permute.xlu0 %3771
  %3773 = vrot.lane.b32.xlu0 %v3436, 127
  %v3774 = vpop.permute.xlu0 %3773
  %3775 = vrot.lane.b32.xlu0 %v3433, 127
  %v3776 = vpop.permute.xlu0 %3775
  %3777 = vrot.lane.b32.xlu0 %v3437, 127
  %v3778 = vpop.permute.xlu0 %3777
  %3779 = vrot.lane.b32.xlu0 %v3434, 127
  %v3780 = vpop.permute.xlu0 %3779
  %3781 = vrot.lane.b32.xlu0 %v3438, 127
  %v3782 = vpop.permute.xlu0 %3781
  %v3783 = vsel %vm541, %v3776, %v3780
  %v3784 = vsel %vm541, %v3778, %v3782
  %v3785 = vsel %vm541, %v3772, %v3776
  %v3786 = vsel %vm541, %v3774, %v3778
  %v3787 = vsel %vm541, %v3768, %v3772
  %v3788 = vsel %vm541, %v3770, %v3774
  %v3789 = vsel %vm541, %v3780, %v3768
  %v3790 = vsel %vm541, %v3782, %v3770
  %v3791 = vld [vmem:[%s550] ss:$8 sm:$0xf]
  %v3793 = vlaneseq
  %v3794 = vshrl.u32 %v3793, 7
  %v3795 = vsub.s32 0, %v3794
  %v3796 = vrot.slane %v3791, %v3795
  %v3797 = vlaneseq
  %v3798 = vshrl.u32 %v3797, 7
  %v3799 = vsub.s32 1, %v3798
  %v3800 = vrot.slane %v3791, %v3799
  %v3801 = vlaneseq
  %v3802 = vshrl.u32 %v3801, 7
  %v3803 = vsub.s32 2, %v3802
  %v3804 = vrot.slane %v3791, %v3803
  %v3805 = vlaneseq
  %v3806 = vshrl.u32 %v3805, 7
  %v3807 = vsub.s32 3, %v3806
  %v3808 = vrot.slane %v3791, %v3807
  %v3813 = vmul.f32 %v3787, %v3796
  %v3814 = vmul.f32 %v3785, %v3800
  %v3815 = vmul.f32 %v3783, %v3804
  %v3816 = vmul.f32 %v3789, %v3808
  %v3817 = vmul.f32 %v3788, %v3796
  %v3818 = vmul.f32 %v3786, %v3800
  %v3819 = vmul.f32 %v3784, %v3804
  %v3820 = vmul.f32 %v3790, %v3808
  %v3821 = vpack.c.bf16 %v3817, %v3813
  %v3822 = vpack.c.bf16 %v3818, %v3814
  %v3823 = vpack.c.bf16 %v3819, %v3815
  %v3824 = vpack.c.bf16 %v3820, %v3816
  %v3829 = vunpack.c.l.b16 %v3821
  %v3830 = vunpack.c.l.b16 %v3822
  %v3831 = vunpack.c.l.b16 %v3823
  %v3832 = vunpack.c.l.b16 %v3824
  %v3833 = vunpack.c.h.b16 %v3821
  %v3834 = vunpack.c.h.b16 %v3822
  %v3835 = vunpack.c.h.b16 %v3823
  %v3836 = vunpack.c.h.b16 %v3824
  %v3837 = vpack.c.b16 %v3830, %v3829
  %v3838 = vpack.c.b16 %v3832, %v3831
  %v3839 = vpack.c.b16 %v3834, %v3833
  %v3840 = vpack.c.b16 %v3836, %v3835
  %3845 = vst [vmem:[#allocation3 + $0x80] sm:$0xff] %v3837
  %3846 = vst [vmem:[#allocation3 + $0x88] sm:$0xff] %v3838
  %3847 = vst [vmem:[#allocation3 + $0x90] sm:$0xff] %v3839
  %3848 = vst [vmem:[#allocation3 + $0x98] sm:$0xff] %v3840
  %3849 = vrot.lane.b32.xlu0 %v3431, 113
  %v3850 = vpop.permute.xlu0 %3849
  %3851 = vrot.lane.b32.xlu0 %v3435, 113
  %v3852 = vpop.permute.xlu0 %3851
  %3853 = vrot.lane.b32.xlu0 %v3432, 113
  %v3854 = vpop.permute.xlu0 %3853
  %3855 = vrot.lane.b32.xlu0 %v3436, 113
  %v3856 = vpop.permute.xlu0 %3855
  %3857 = vrot.lane.b32.xlu0 %v3433, 113
  %v3858 = vpop.permute.xlu0 %3857
  %3859 = vrot.lane.b32.xlu0 %v3437, 113
  %v3860 = vpop.permute.xlu0 %3859
  %3861 = vrot.lane.b32.xlu0 %v3434, 113
  %v3862 = vpop.permute.xlu0 %3861
  %3863 = vrot.lane.b32.xlu0 %v3438, 113
  %v3864 = vpop.permute.xlu0 %3863
  %v3865 = vsel %vm625, %v3858, %v3862
  %v3866 = vsel %vm625, %v3860, %v3864
  %v3867 = vsel %vm625, %v3854, %v3858
  %v3868 = vsel %vm625, %v3856, %v3860
  %v3869 = vsel %vm625, %v3850, %v3854
  %v3870 = vsel %vm625, %v3852, %v3856
  %v3871 = vsel %vm625, %v3862, %v3850
  %v3872 = vsel %vm625, %v3864, %v3852
  %v3873 = vld [vmem:[%s634] ss:$8 sm:$0xf]
  %v3875 = vlaneseq
  %v3876 = vshrl.u32 %v3875, 7
  %v3877 = vsub.s32 0, %v3876
  %v3878 = vrot.slane %v3873, %v3877
  %v3879 = vlaneseq
  %v3880 = vshrl.u32 %v3879, 7
  %v3881 = vsub.s32 1, %v3880
  %v3882 = vrot.slane %v3873, %v3881
  %v3883 = vlaneseq
  %v3884 = vshrl.u32 %v3883, 7
  %v3885 = vsub.s32 2, %v3884
  %v3886 = vrot.slane %v3873, %v3885
  %v3887 = vlaneseq
  %v3888 = vshrl.u32 %v3887, 7
  %v3889 = vsub.s32 3, %v3888
  %v3890 = vrot.slane %v3873, %v3889
  %v3895 = vmul.f32 %v3869, %v3878
  %v3896 = vmul.f32 %v3867, %v3882
  %v3897 = vmul.f32 %v3865, %v3886
  %v3898 = vmul.f32 %v3871, %v3890
  %v3899 = vmul.f32 %v3870, %v3878
  %v3900 = vmul.f32 %v3868, %v3882
  %v3901 = vmul.f32 %v3866, %v3886
  %v3902 = vmul.f32 %v3872, %v3890
  %v3903 = vpack.c.bf16 %v3899, %v3895
  %v3904 = vpack.c.bf16 %v3900, %v3896
  %v3905 = vpack.c.bf16 %v3901, %v3897
  %v3906 = vpack.c.bf16 %v3902, %v3898
  %v3911 = vunpack.c.l.b16 %v3903
  %v3912 = vunpack.c.l.b16 %v3904
  %v3913 = vunpack.c.l.b16 %v3905
  %v3914 = vunpack.c.l.b16 %v3906
  %v3915 = vunpack.c.h.b16 %v3903
  %v3916 = vunpack.c.h.b16 %v3904
  %v3917 = vunpack.c.h.b16 %v3905
  %v3918 = vunpack.c.h.b16 %v3906
  %v3919 = vpack.c.b16 %v3912, %v3911
  %v3920 = vpack.c.b16 %v3914, %v3913
  %v3921 = vpack.c.b16 %v3916, %v3915
  %v3922 = vpack.c.b16 %v3918, %v3917
  %3927 = vst [vmem:[#allocation3 + $0xa0] sm:$0xff] %v3919
  %3928 = vst [vmem:[#allocation3 + $0xa8] sm:$0xff] %v3920
  %3929 = vst [vmem:[#allocation3 + $0xb0] sm:$0xff] %v3921
  %3930 = vst [vmem:[#allocation3 + $0xb8] sm:$0xff] %v3922
  %3931 = vrot.lane.b32.xlu0 %v3431, 112
  %v3932 = vpop.permute.xlu0 %3931
  %3933 = vrot.lane.b32.xlu0 %v3435, 112
  %v3934 = vpop.permute.xlu0 %3933
  %3935 = vrot.lane.b32.xlu0 %v3432, 112
  %v3936 = vpop.permute.xlu0 %3935
  %3937 = vrot.lane.b32.xlu0 %v3436, 112
  %v3938 = vpop.permute.xlu0 %3937
  %3939 = vrot.lane.b32.xlu0 %v3433, 112
  %v3940 = vpop.permute.xlu0 %3939
  %3941 = vrot.lane.b32.xlu0 %v3437, 112
  %v3942 = vpop.permute.xlu0 %3941
  %3943 = vrot.lane.b32.xlu0 %v3434, 112
  %v3944 = vpop.permute.xlu0 %3943
  %3945 = vrot.lane.b32.xlu0 %v3438, 112
  %v3946 = vpop.permute.xlu0 %3945
  %v3947 = vsel %vm709, %v3940, %v3944
  %v3948 = vsel %vm709, %v3942, %v3946
  %v3949 = vsel %vm709, %v3936, %v3940
  %v3950 = vsel %vm709, %v3938, %v3942
  %v3951 = vsel %vm709, %v3932, %v3936
  %v3952 = vsel %vm709, %v3934, %v3938
  %v3953 = vsel %vm709, %v3944, %v3932
  %v3954 = vsel %vm709, %v3946, %v3934
  %v3955 = vld [vmem:[%s718] ss:$8 sm:$0xf]
  %v3957 = vlaneseq
  %v3958 = vshrl.u32 %v3957, 7
  %v3959 = vsub.s32 0, %v3958
  %v3960 = vrot.slane %v3955, %v3959
  %v3961 = vlaneseq
  %v3962 = vshrl.u32 %v3961, 7
  %v3963 = vsub.s32 1, %v3962
  %v3964 = vrot.slane %v3955, %v3963
  %v3965 = vlaneseq
  %v3966 = vshrl.u32 %v3965, 7
  %v3967 = vsub.s32 2, %v3966
  %v3968 = vrot.slane %v3955, %v3967
  %v3969 = vlaneseq
  %v3970 = vshrl.u32 %v3969, 7
  %v3971 = vsub.s32 3, %v3970
  %v3972 = vrot.slane %v3955, %v3971
  %v3977 = vmul.f32 %v3951, %v3960
  %v3978 = vmul.f32 %v3949, %v3964
  %v3979 = vmul.f32 %v3947, %v3968
  %v3980 = vmul.f32 %v3953, %v3972
  %v3981 = vmul.f32 %v3952, %v3960
  %v3982 = vmul.f32 %v3950, %v3964
  %v3983 = vmul.f32 %v3948, %v3968
  %v3984 = vmul.f32 %v3954, %v3972
  %v3985 = vpack.c.bf16 %v3981, %v3977
  %v3986 = vpack.c.bf16 %v3982, %v3978
  %v3987 = vpack.c.bf16 %v3983, %v3979
  %v3988 = vpack.c.bf16 %v3984, %v3980
  %v3993 = vunpack.c.l.b16 %v3985
  %v3994 = vunpack.c.l.b16 %v3986
  %v3995 = vunpack.c.l.b16 %v3987
  %v3996 = vunpack.c.l.b16 %v3988
  %v3997 = vunpack.c.h.b16 %v3985
  %v3998 = vunpack.c.h.b16 %v3986
  %v3999 = vunpack.c.h.b16 %v3987
  %v4000 = vunpack.c.h.b16 %v3988
  %v4001 = vpack.c.b16 %v3994, %v3993
  %v4002 = vpack.c.b16 %v3996, %v3995
  %v4003 = vpack.c.b16 %v3998, %v3997
  %v4004 = vpack.c.b16 %v4000, %v3999
  %4009 = vst [vmem:[#allocation3 + $0xc0] sm:$0xff] %v4001
  %4010 = vst [vmem:[#allocation3 + $0xc8] sm:$0xff] %v4002
  %4011 = vst [vmem:[#allocation3 + $0xd0] sm:$0xff] %v4003
  %4012 = vst [vmem:[#allocation3 + $0xd8] sm:$0xff] %v4004
  %4013 = vrot.lane.b32.xlu0 %v3431, 111
  %v4014 = vpop.permute.xlu0 %4013
  %4015 = vrot.lane.b32.xlu0 %v3435, 111
  %v4016 = vpop.permute.xlu0 %4015
  %4017 = vrot.lane.b32.xlu0 %v3432, 111
  %v4018 = vpop.permute.xlu0 %4017
  %4019 = vrot.lane.b32.xlu0 %v3436, 111
  %v4020 = vpop.permute.xlu0 %4019
  %4021 = vrot.lane.b32.xlu0 %v3433, 111
  %v4022 = vpop.permute.xlu0 %4021
  %4023 = vrot.lane.b32.xlu0 %v3437, 111
  %v4024 = vpop.permute.xlu0 %4023
  %4025 = vrot.lane.b32.xlu0 %v3434, 111
  %v4026 = vpop.permute.xlu0 %4025
  %4027 = vrot.lane.b32.xlu0 %v3438, 111
  %v4028 = vpop.permute.xlu0 %4027
  %v4029 = vsel %vm793, %v4022, %v4026
  %v4030 = vsel %vm793, %v4024, %v4028
  %v4031 = vsel %vm793, %v4018, %v4022
  %v4032 = vsel %vm793, %v4020, %v4024
  %v4033 = vsel %vm793, %v4014, %v4018
  %v4034 = vsel %vm793, %v4016, %v4020
  %v4035 = vsel %vm793, %v4026, %v4014
  %v4036 = vsel %vm793, %v4028, %v4016
  %v4037 = vld [vmem:[%s802] ss:$8 sm:$0xf]
  %v4039 = vlaneseq
  %v4040 = vshrl.u32 %v4039, 7
  %v4041 = vsub.s32 0, %v4040
  %v4042 = vrot.slane %v4037, %v4041
  %v4043 = vlaneseq
  %v4044 = vshrl.u32 %v4043, 7
  %v4045 = vsub.s32 1, %v4044
  %v4046 = vrot.slane %v4037, %v4045
  %v4047 = vlaneseq
  %v4048 = vshrl.u32 %v4047, 7
  %v4049 = vsub.s32 2, %v4048
  %v4050 = vrot.slane %v4037, %v4049
  %v4051 = vlaneseq
  %v4052 = vshrl.u32 %v4051, 7
  %v4053 = vsub.s32 3, %v4052
  %v4054 = vrot.slane %v4037, %v4053
  %v4059 = vmul.f32 %v4033, %v4042
  %v4060 = vmul.f32 %v4031, %v4046
  %v4061 = vmul.f32 %v4029, %v4050
  %v4062 = vmul.f32 %v4035, %v4054
  %v4063 = vmul.f32 %v4034, %v4042
  %v4064 = vmul.f32 %v4032, %v4046
  %v4065 = vmul.f32 %v4030, %v4050
  %v4066 = vmul.f32 %v4036, %v4054
  %v4067 = vpack.c.bf16 %v4063, %v4059
  %v4068 = vpack.c.bf16 %v4064, %v4060
  %v4069 = vpack.c.bf16 %v4065, %v4061
  %v4070 = vpack.c.bf16 %v4066, %v4062
  %v4075 = vunpack.c.l.b16 %v4067
  %v4076 = vunpack.c.l.b16 %v4068
  %v4077 = vunpack.c.l.b16 %v4069
  %v4078 = vunpack.c.l.b16 %v4070
  %v4079 = vunpack.c.h.b16 %v4067
  %v4080 = vunpack.c.h.b16 %v4068
  %v4081 = vunpack.c.h.b16 %v4069
  %v4082 = vunpack.c.h.b16 %v4070
  %v4083 = vpack.c.b16 %v4076, %v4075
  %v4084 = vpack.c.b16 %v4078, %v4077
  %v4085 = vpack.c.b16 %v4080, %v4079
  %v4086 = vpack.c.b16 %v4082, %v4081
  %4091 = vst [vmem:[#allocation3 + $0xe0] sm:$0xff] %v4083
  %4092 = vst [vmem:[#allocation3 + $0xe8] sm:$0xff] %v4084
  %4093 = vst [vmem:[#allocation3 + $0xf0] sm:$0xff] %v4085
  %4094 = vst [vmem:[#allocation3 + $0xf8] sm:$0xff] %v4086
  %s4095 = scalar_lea.vmem %s3, 24
  %v4096 = vld [vmem:[%s4095] sm:$0xf]
  %v4097 = vld [vmem:[%s4095 + $0x4] sm:$0xf]
  %v4098 = vpack.c.bf16 %v3435, %v3431
  %v4099 = vpack.c.bf16 %v3436, %v3432
  %v4100 = vpack.c.bf16 %v3437, %v3433
  %v4101 = vpack.c.bf16 %v3438, %v3434
  %s4102 = scalar_lea.vmem %s4, 24
  %v4103 = vld [vmem:[%s4102] sm:$0xf]
  %v4104 = vld [vmem:[%s4102 + $0x4] sm:$0xf]
  %v4105 = vld [vmem:[#allocation3] sm:$0xff]
  %v4106 = vld [vmem:[#allocation3 + $0x8] sm:$0xff]
  %v4107 = vld [vmem:[#allocation3 + $0x10] sm:$0xff]
  %v4108 = vld [vmem:[#allocation3 + $0x18] sm:$0xff]
  %v4109 = vld [vmem:[#allocation3 + $0x20] sm:$0xff]
  %v4110 = vld [vmem:[#allocation3 + $0x28] sm:$0xff]
  %v4111 = vld [vmem:[#allocation3 + $0x30] sm:$0xff]
  %v4112 = vld [vmem:[#allocation3 + $0x38] sm:$0xff]
  %v4113 = vld [vmem:[#allocation3 + $0x40] sm:$0xff]
  %v4114 = vld [vmem:[#allocation3 + $0x48] sm:$0xff]
  %v4115 = vld [vmem:[#allocation3 + $0x50] sm:$0xff]
  %v4116 = vld [vmem:[#allocation3 + $0x58] sm:$0xff]
  %v4117 = vld [vmem:[#allocation3 + $0x60] sm:$0xff]
  %v4118 = vld [vmem:[#allocation3 + $0x68] sm:$0xff]
  %v4119 = vld [vmem:[#allocation3 + $0x70] sm:$0xff]
  %v4120 = vld [vmem:[#allocation3 + $0x78] sm:$0xff]
  %v4121 = vld [vmem:[#allocation3 + $0x80] sm:$0xff]
  %v4122 = vld [vmem:[#allocation3 + $0x88] sm:$0xff]
  %v4123 = vld [vmem:[#allocation3 + $0x90] sm:$0xff]
  %v4124 = vld [vmem:[#allocation3 + $0x98] sm:$0xff]
  %v4125 = vld [vmem:[#allocation3 + $0xa0] sm:$0xff]
  %v4126 = vld [vmem:[#allocation3 + $0xa8] sm:$0xff]
  %v4127 = vld [vmem:[#allocation3 + $0xb0] sm:$0xff]
  %v4128 = vld [vmem:[#allocation3 + $0xb8] sm:$0xff]
  %v4129 = vld [vmem:[#allocation3 + $0xc0] sm:$0xff]
  %v4130 = vld [vmem:[#allocation3 + $0xc8] sm:$0xff]
  %v4131 = vld [vmem:[#allocation3 + $0xd0] sm:$0xff]
  %v4132 = vld [vmem:[#allocation3 + $0xd8] sm:$0xff]
  %v4133 = vld [vmem:[#allocation3 + $0xe0] sm:$0xff]
  %v4134 = vld [vmem:[#allocation3 + $0xe8] sm:$0xff]
  %v4135 = vld [vmem:[#allocation3 + $0xf0] sm:$0xff]
  %v4136 = vld [vmem:[#allocation3 + $0xf8] sm:$0xff]
  %v4139 = vunpack.c.l.b16 %v4103
  %v4140 = vunpack.c.l.b16 %v4104
  %v4141 = vpack.c.b16 %v4140, %v4139
  %v4175 = vunpack.c.l.b16 %v4105
  %v4176 = vunpack.c.h.b16 %v4105
  %v4177 = vunpack.c.l.b16 %v4106
  %v4178 = vunpack.c.h.b16 %v4106
  %v4179 = vunpack.c.l.b16 %v4107
  %v4180 = vunpack.c.h.b16 %v4107
  %v4181 = vunpack.c.l.b16 %v4108
  %v4182 = vunpack.c.h.b16 %v4108
  %v4183 = vunpack.c.l.b16 %v4109
  %v4184 = vunpack.c.h.b16 %v4109
  %v4185 = vunpack.c.l.b16 %v4110
  %v4186 = vunpack.c.h.b16 %v4110
  %v4187 = vunpack.c.l.b16 %v4111
  %v4188 = vunpack.c.h.b16 %v4111
  %v4189 = vunpack.c.l.b16 %v4112
  %v4190 = vunpack.c.h.b16 %v4112
  %v4191 = vunpack.c.l.b16 %v4113
  %v4192 = vunpack.c.h.b16 %v4113
  %v4193 = vunpack.c.l.b16 %v4114
  %v4194 = vunpack.c.h.b16 %v4114
  %v4195 = vunpack.c.l.b16 %v4115
  %v4196 = vunpack.c.h.b16 %v4115
  %v4197 = vunpack.c.l.b16 %v4116
  %v4198 = vunpack.c.h.b16 %v4116
  %v4199 = vunpack.c.l.b16 %v4117
  %v4200 = vunpack.c.h.b16 %v4117
  %v4201 = vunpack.c.l.b16 %v4118
  %v4202 = vunpack.c.h.b16 %v4118
  %v4203 = vunpack.c.l.b16 %v4119
  %v4204 = vunpack.c.h.b16 %v4119
  %v4205 = vunpack.c.l.b16 %v4120
  %v4206 = vunpack.c.h.b16 %v4120
  %v4207 = vunpack.c.l.b16 %v4121
  %v4208 = vunpack.c.h.b16 %v4121
  %v4209 = vunpack.c.l.b16 %v4122
  %v4210 = vunpack.c.h.b16 %v4122
  %v4211 = vunpack.c.l.b16 %v4123
  %v4212 = vunpack.c.h.b16 %v4123
  %v4213 = vunpack.c.l.b16 %v4124
  %v4214 = vunpack.c.h.b16 %v4124
  %v4215 = vunpack.c.l.b16 %v4125
  %v4216 = vunpack.c.h.b16 %v4125
  %v4217 = vunpack.c.l.b16 %v4126
  %v4218 = vunpack.c.h.b16 %v4126
  %v4219 = vunpack.c.l.b16 %v4127
  %v4220 = vunpack.c.h.b16 %v4127
  %v4221 = vunpack.c.l.b16 %v4128
  %v4222 = vunpack.c.h.b16 %v4128
  %v4223 = vunpack.c.l.b16 %v4129
  %v4224 = vunpack.c.h.b16 %v4129
  %v4225 = vunpack.c.l.b16 %v4130
  %v4226 = vunpack.c.h.b16 %v4130
  %v4227 = vunpack.c.l.b16 %v4131
  %v4228 = vunpack.c.h.b16 %v4131
  %v4229 = vunpack.c.l.b16 %v4132
  %v4230 = vunpack.c.h.b16 %v4132
  %v4231 = vunpack.c.l.b16 %v4133
  %v4232 = vunpack.c.h.b16 %v4133
  %v4233 = vunpack.c.l.b16 %v4134
  %v4234 = vunpack.c.h.b16 %v4134
  %v4235 = vunpack.c.l.b16 %v4135
  %v4236 = vunpack.c.h.b16 %v4135
  %v4237 = vunpack.c.l.b16 %v4136
  %v4238 = vunpack.c.h.b16 %v4136
  %v4239 = vpack.c.b16 %v4179, %v4175
  %v4240 = vpack.c.b16 %v4180, %v4176
  %v4241 = vpack.c.b16 %v4181, %v4177
  %v4242 = vpack.c.b16 %v4182, %v4178
  %v4243 = vpack.c.b16 %v4187, %v4183
  %v4244 = vpack.c.b16 %v4188, %v4184
  %v4245 = vpack.c.b16 %v4189, %v4185
  %v4246 = vpack.c.b16 %v4190, %v4186
  %v4247 = vpack.c.b16 %v4195, %v4191
  %v4248 = vpack.c.b16 %v4196, %v4192
  %v4249 = vpack.c.b16 %v4197, %v4193
  %v4250 = vpack.c.b16 %v4198, %v4194
  %v4251 = vpack.c.b16 %v4203, %v4199
  %v4252 = vpack.c.b16 %v4204, %v4200
  %v4253 = vpack.c.b16 %v4205, %v4201
  %v4254 = vpack.c.b16 %v4206, %v4202
  %v4255 = vpack.c.b16 %v4211, %v4207
  %v4256 = vpack.c.b16 %v4212, %v4208
  %v4257 = vpack.c.b16 %v4213, %v4209
  %v4258 = vpack.c.b16 %v4214, %v4210
  %v4259 = vpack.c.b16 %v4219, %v4215
  %v4260 = vpack.c.b16 %v4220, %v4216
  %v4261 = vpack.c.b16 %v4221, %v4217
  %v4262 = vpack.c.b16 %v4222, %v4218
  %v4263 = vpack.c.b16 %v4227, %v4223
  %v4264 = vpack.c.b16 %v4228, %v4224
  %v4265 = vpack.c.b16 %v4229, %v4225
  %v4266 = vpack.c.b16 %v4230, %v4226
  %v4267 = vpack.c.b16 %v4235, %v4231
  %v4268 = vpack.c.b16 %v4236, %v4232
  %v4269 = vpack.c.b16 %v4237, %v4233
  %v4270 = vpack.c.b16 %v4238, %v4234
  %4303 = vmatprep.subr.bf16.mxu0 %v4268
  %4304 = vmatpush1.bf16.msra.mxu0 %v4267
  %4305 = vmatprep.subr.bf16.mxu0 %v4264
  %4306 = vmatpush1.bf16.msra.mxu0 %v4263
  %4307 = vmatprep.subr.bf16.mxu0 %v4260
  %4308 = vmatpush1.bf16.msra.mxu0 %v4259
  %4309 = vmatprep.subr.bf16.mxu0 %v4256
  %4310 = vmatpush1.bf16.msra.mxu0 %v4255
  %4311 = vmatprep.subr.bf16.mxu0 %v4252
  %4312 = vmatpush1.bf16.msra.mxu0 %v4251
  %4313 = vmatprep.subr.bf16.mxu0 %v4248
  %4314 = vmatpush1.bf16.msra.mxu0 %v4247
  %4315 = vmatprep.subr.bf16.mxu0 %v4244
  %4316 = vmatpush1.bf16.msra.mxu0 %v4243
  %4317 = vmatprep.subr.bf16.mxu0 %v4240
  %4318 = vmatpush1.bf16.msra.mxu0 %v4239
  %4319 = vmatprep.subr.bf16.mxu0 0
  %4320 = vmatpush2.bf16.msra.mxu0 0
  %4321 = vmatprep.subr.bf16.mxu0 0
  %4322 = vmatpush2.bf16.msra.mxu0 0
  %4323 = vmatprep.subr.bf16.mxu0 0
  %4324 = vmatpush2.bf16.msra.mxu0 0
  %4325 = vmatprep.subr.bf16.mxu0 0
  %4326 = vmatpush2.bf16.msra.mxu0 0
  %4327 = vmatprep.subr.bf16.mxu0 0
  %4328 = vmatpush2.bf16.msra.mxu0 0
  %4329 = vmatprep.subr.bf16.mxu0 0
  %4330 = vmatpush2.bf16.msra.mxu0 0
  %4331 = vmatprep.subr.bf16.mxu0 0
  %4332 = vmatpush2.bf16.msra.mxu0 0
  %4333 = vmatprep.subr.bf16.mxu0 0
  %4334 = vmatpush2.bf16.msra.mxu0 0
  %4335 = vmatprep.mubr.bf16.mxu0 0
  %4336 = vmatmul.mubr.bf16.gmra.mxu0 %v4141
  %v4337 = vpop.f32.mrf.mxu0
  %v4338 = vadd.f32 0.0, %v4337
  %v4339 = vpop.f32.mrf.mxu0
  %v4340 = vadd.f32 0.0, %v4339
  %v4341 = vpop.f32.mrf.mxu0
  %v4342 = vadd.f32 0.0, %v4341
  %v4343 = vpop.f32.mrf.mxu0
  %v4344 = vadd.f32 0.0, %v4343
  %4345 = vdwg.mxu0
  %4346 = vmatprep.subr.bf16.mxu0 %v4270
  %4347 = vmatpush1.bf16.msra.mxu0 %v4269
  %4348 = vmatprep.subr.bf16.mxu0 %v4266
  %4349 = vmatpush1.bf16.msra.mxu0 %v4265
  %4350 = vmatprep.subr.bf16.mxu0 %v4262
  %4351 = vmatpush1.bf16.msra.mxu0 %v4261
  %4352 = vmatprep.subr.bf16.mxu0 %v4258
  %4353 = vmatpush1.bf16.msra.mxu0 %v4257
  %4354 = vmatprep.subr.bf16.mxu0 %v4254
  %4355 = vmatpush1.bf16.msra.mxu0 %v4253
  %4356 = vmatprep.subr.bf16.mxu0 %v4250
  %4357 = vmatpush1.bf16.msra.mxu0 %v4249
  %4358 = vmatprep.subr.bf16.mxu0 %v4246
  %4359 = vmatpush1.bf16.msra.mxu0 %v4245
  %4360 = vmatprep.subr.bf16.mxu0 %v4242
  %4361 = vmatpush1.bf16.msra.mxu0 %v4241
  %4362 = vmatprep.subr.bf16.mxu0 0
  %4363 = vmatpush2.bf16.msra.mxu0 0
  %4364 = vmatprep.subr.bf16.mxu0 0
  %4365 = vmatpush2.bf16.msra.mxu0 0
  %4366 = vmatprep.subr.bf16.mxu0 0
  %4367 = vmatpush2.bf16.msra.mxu0 0
  %4368 = vmatprep.subr.bf16.mxu0 0
  %4369 = vmatpush2.bf16.msra.mxu0 0
  %4370 = vmatprep.subr.bf16.mxu0 0
  %4371 = vmatpush2.bf16.msra.mxu0 0
  %4372 = vmatprep.subr.bf16.mxu0 0
  %4373 = vmatpush2.bf16.msra.mxu0 0
  %4374 = vmatprep.subr.bf16.mxu0 0
  %4375 = vmatpush2.bf16.msra.mxu0 0
  %4376 = vmatprep.subr.bf16.mxu0 0
  %4377 = vmatpush2.bf16.msra.mxu0 0
  %4378 = vmatprep.mubr.bf16.mxu0 0
  %4379 = vmatmul.mubr.bf16.gmra.mxu0 %v4141
  %v4380 = vpop.f32.mrf.mxu0
  %v4381 = vadd.f32 0.0, %v4380
  %v4382 = vpop.f32.mrf.mxu0
  %v4383 = vadd.f32 0.0, %v4382
  %v4384 = vpop.f32.mrf.mxu0
  %v4385 = vadd.f32 0.0, %v4384
  %v4386 = vpop.f32.mrf.mxu0
  %v4387 = vadd.f32 0.0, %v4386
  %4388 = vdwg.mxu0
  %v4391 = vunpack.c.l.b16 %v4096
  %v4392 = vunpack.c.l.b16 %v4097
  %v4393 = vpack.c.b16 %v4392, %v4391
  %v4395 = vsel %vm43, %v4393, 0
  %4397 = vmatprep.subr.bf16.mxu0 0
  %4398 = vmatpush1.bf16.msra.mxu0 0
  %4399 = vmatprep.subr.bf16.mxu0 0
  %4400 = vmatpush1.bf16.msra.mxu0 0
  %4401 = vmatprep.subr.bf16.mxu0 0
  %4402 = vmatpush1.bf16.msra.mxu0 0
  %4403 = vmatprep.subr.bf16.mxu0 0
  %4404 = vmatpush1.bf16.msra.mxu0 0
  %4405 = vmatprep.subr.bf16.mxu0 0
  %4406 = vmatpush1.bf16.msra.mxu0 0
  %4407 = vmatprep.subr.bf16.mxu0 0
  %4408 = vmatpush1.bf16.msra.mxu0 0
  %4409 = vmatprep.subr.bf16.mxu0 0
  %4410 = vmatpush1.bf16.msra.mxu0 0
  %4411 = vmatprep.subr.bf16.mxu0 %v4099
  %4412 = vmatpush1.bf16.msra.mxu0 %v4098
  %4413 = vmatprep.subr.bf16.mxu0 0
  %4414 = vmatpush2.bf16.msra.mxu0 0
  %4415 = vmatprep.subr.bf16.mxu0 0
  %4416 = vmatpush2.bf16.msra.mxu0 0
  %4417 = vmatprep.subr.bf16.mxu0 0
  %4418 = vmatpush2.bf16.msra.mxu0 0
  %4419 = vmatprep.subr.bf16.mxu0 0
  %4420 = vmatpush2.bf16.msra.mxu0 0
  %4421 = vmatprep.subr.bf16.mxu0 0
  %4422 = vmatpush2.bf16.msra.mxu0 0
  %4423 = vmatprep.subr.bf16.mxu0 0
  %4424 = vmatpush2.bf16.msra.mxu0 0
  %4425 = vmatprep.subr.bf16.mxu0 0
  %4426 = vmatpush2.bf16.msra.mxu0 0
  %4427 = vmatprep.subr.bf16.mxu0 0
  %4428 = vmatpush2.bf16.msra.mxu0 0
  %4429 = vmatprep.mubr.bf16.mxu0 0
  %4430 = vmatmul.mubr.bf16.gmra.mxu0 %v4395
  %v4431 = vpop.f32.mrf.mxu0
  %v4432 = vadd.f32 %v4338, %v4431
  %v4433 = vpop.f32.mrf.mxu0
  %v4434 = vadd.f32 %v4340, %v4433
  %v4435 = vpop.f32.mrf.mxu0
  %v4436 = vadd.f32 %v4342, %v4435
  %v4437 = vpop.f32.mrf.mxu0
  %v4438 = vadd.f32 %v4344, %v4437
  %4439 = vdwg.mxu0
  %4440 = vmatprep.subr.bf16.mxu0 0
  %4441 = vmatpush1.bf16.msra.mxu0 0
  %4442 = vmatprep.subr.bf16.mxu0 0
  %4443 = vmatpush1.bf16.msra.mxu0 0
  %4444 = vmatprep.subr.bf16.mxu0 0
  %4445 = vmatpush1.bf16.msra.mxu0 0
  %4446 = vmatprep.subr.bf16.mxu0 0
  %4447 = vmatpush1.bf16.msra.mxu0 0
  %4448 = vmatprep.subr.bf16.mxu0 0
  %4449 = vmatpush1.bf16.msra.mxu0 0
  %4450 = vmatprep.subr.bf16.mxu0 0
  %4451 = vmatpush1.bf16.msra.mxu0 0
  %4452 = vmatprep.subr.bf16.mxu0 0
  %4453 = vmatpush1.bf16.msra.mxu0 0
  %4454 = vmatprep.subr.bf16.mxu0 %v4101
  %4455 = vmatpush1.bf16.msra.mxu0 %v4100
  %4456 = vmatprep.subr.bf16.mxu0 0
  %4457 = vmatpush2.bf16.msra.mxu0 0
  %4458 = vmatprep.subr.bf16.mxu0 0
  %4459 = vmatpush2.bf16.msra.mxu0 0
  %4460 = vmatprep.subr.bf16.mxu0 0
  %4461 = vmatpush2.bf16.msra.mxu0 0
  %4462 = vmatprep.subr.bf16.mxu0 0
  %4463 = vmatpush2.bf16.msra.mxu0 0
  %4464 = vmatprep.subr.bf16.mxu0 0
  %4465 = vmatpush2.bf16.msra.mxu0 0
  %4466 = vmatprep.subr.bf16.mxu0 0
  %4467 = vmatpush2.bf16.msra.mxu0 0
  %4468 = vmatprep.subr.bf16.mxu0 0
  %4469 = vmatpush2.bf16.msra.mxu0 0
  %4470 = vmatprep.subr.bf16.mxu0 0
  %4471 = vmatpush2.bf16.msra.mxu0 0
  %4472 = vmatprep.mubr.bf16.mxu0 0
  %4473 = vmatmul.mubr.bf16.gmra.mxu0 %v4395
  %v4474 = vpop.f32.mrf.mxu0
  %v4475 = vadd.f32 %v4381, %v4474
  %v4476 = vpop.f32.mrf.mxu0
  %v4477 = vadd.f32 %v4383, %v4476
  %v4478 = vpop.f32.mrf.mxu0
  %v4479 = vadd.f32 %v4385, %v4478
  %v4480 = vpop.f32.mrf.mxu0
  %v4481 = vadd.f32 %v4387, %v4480
  %4482 = vdwg.mxu0
  %v4483 = vld [vmem:[#allocation4] sm:$0xff]
  %v4484 = vld [vmem:[#allocation4 + $0x8] sm:$0xff]
  %v4485 = vld [vmem:[#allocation4 + $0x10] sm:$0xff]
  %v4486 = vld [vmem:[#allocation4 + $0x18] sm:$0xff]
  %v4487 = vld [vmem:[#allocation4 + $0x20] sm:$0xff]
  %v4488 = vld [vmem:[#allocation4 + $0x28] sm:$0xff]
  %v4489 = vld [vmem:[#allocation4 + $0x30] sm:$0xff]
  %v4490 = vld [vmem:[#allocation4 + $0x38] sm:$0xff]
  %v4491 = vadd.f32 %v4432, %v4483
  %v4492 = vadd.f32 %v4434, %v4484
  %v4493 = vadd.f32 %v4475, %v4485
  %v4494 = vadd.f32 %v4477, %v4486
  %v4495 = vadd.f32 %v4436, %v4487
  %v4496 = vadd.f32 %v4438, %v4488
  %v4497 = vadd.f32 %v4479, %v4489
  %v4498 = vadd.f32 %v4481, %v4490
  %v4499 = vmax.f32 %v4491, 0.0
  %v4500 = vmax.f32 %v4492, 0.0
  %v4501 = vmax.f32 %v4493, 0.0
  %v4502 = vmax.f32 %v4494, 0.0
  %v4503 = vmax.f32 %v4495, 0.0
  %v4504 = vmax.f32 %v4496, 0.0
  %v4505 = vmax.f32 %v4497, 0.0
  %v4506 = vmax.f32 %v4498, 0.0
  %4507 = vst [vmem:[#allocation2] sm:$0xff] %v4499
  %4508 = vst [vmem:[#allocation2 + $0x8] sm:$0xff] %v4500
  %4509 = vst [vmem:[#allocation2 + $0x10] sm:$0xff] %v4501
  %4510 = vst [vmem:[#allocation2 + $0x18] sm:$0xff] %v4502
  %4511 = vst [vmem:[#allocation2 + $0x20] sm:$0xff] %v4503
  %4512 = vst [vmem:[#allocation2 + $0x28] sm:$0xff] %v4504
  %4513 = vst [vmem:[#allocation2 + $0x30] sm:$0xff] %v4505
  %4514 = vst [vmem:[#allocation2 + $0x38] sm:$0xff] %v4506
  %v4515 = vld [vmem:[%s5] sm:$0xf]
  %v4516 = vld [vmem:[%s5 + $0x4] sm:$0xf]
  %v4517 = vld [vmem:[#allocation2] sm:$0xff]
  %v4518 = vld [vmem:[#allocation2 + $0x8] sm:$0xff]
  %v4519 = vld [vmem:[#allocation2 + $0x20] sm:$0xff]
  %v4520 = vld [vmem:[#allocation2 + $0x28] sm:$0xff]
  %v4521 = vpack.c.bf16 %v4519, %v4517
  %v4522 = vpack.c.bf16 %v4520, %v4518
  %v4525 = vunpack.c.l.b16 %v4515
  %v4526 = vunpack.c.l.b16 %v4516
  %v4527 = vpack.c.b16 %v4526, %v4525
  %v4529 = vsel %vm43, %v4527, 0
  %4531 = vmatprep.subr.bf16.mxu0 0
  %4532 = vmatpush1.bf16.msra.mxu0 0
  %4533 = vmatprep.subr.bf16.mxu0 0
  %4534 = vmatpush1.bf16.msra.mxu0 0
  %4535 = vmatprep.subr.bf16.mxu0 0
  %4536 = vmatpush1.bf16.msra.mxu0 0
  %4537 = vmatprep.subr.bf16.mxu0 0
  %4538 = vmatpush1.bf16.msra.mxu0 0
  %4539 = vmatprep.subr.bf16.mxu0 0
  %4540 = vmatpush1.bf16.msra.mxu0 0
  %4541 = vmatprep.subr.bf16.mxu0 0
  %4542 = vmatpush1.bf16.msra.mxu0 0
  %4543 = vmatprep.subr.bf16.mxu0 0
  %4544 = vmatpush1.bf16.msra.mxu0 0
  %4545 = vmatprep.subr.bf16.mxu0 %v4522
  %4546 = vmatpush1.bf16.msra.mxu0 %v4521
  %4547 = vmatprep.subr.bf16.mxu0 0
  %4548 = vmatpush2.bf16.msra.mxu0 0
  %4549 = vmatprep.subr.bf16.mxu0 0
  %4550 = vmatpush2.bf16.msra.mxu0 0
  %4551 = vmatprep.subr.bf16.mxu0 0
  %4552 = vmatpush2.bf16.msra.mxu0 0
  %4553 = vmatprep.subr.bf16.mxu0 0
  %4554 = vmatpush2.bf16.msra.mxu0 0
  %4555 = vmatprep.subr.bf16.mxu0 0
  %4556 = vmatpush2.bf16.msra.mxu0 0
  %4557 = vmatprep.subr.bf16.mxu0 0
  %4558 = vmatpush2.bf16.msra.mxu0 0
  %4559 = vmatprep.subr.bf16.mxu0 0
  %4560 = vmatpush2.bf16.msra.mxu0 0
  %4561 = vmatprep.subr.bf16.mxu0 0
  %4562 = vmatpush2.bf16.msra.mxu0 0
  %4563 = vmatprep.mubr.bf16.mxu0 0
  %4564 = vmatmul.mubr.bf16.gmra.mxu0 %v4529
  %v4565 = vpop.f32.mrf.mxu0
  %v4566 = vadd.f32 0.0, %v4565
  %v4567 = vpop.f32.mrf.mxu0
  %v4568 = vadd.f32 0.0, %v4567
  %v4569 = vpop.f32.mrf.mxu0
  %v4570 = vadd.f32 0.0, %v4569
  %v4571 = vpop.f32.mrf.mxu0
  %v4572 = vadd.f32 0.0, %v4571
  %4573 = vdwg.mxu0
  %4574 = vst [vmem:[%s6] sm:$0xff] %v4566
  %4575 = vst [vmem:[%s6 + $0x8] sm:$0xff] %v4568
  %4576 = vst [vmem:[%s6 + $0x10] sm:$0xff] %v4570
  %4577 = vst [vmem:[%s6 + $0x18] sm:$0xff] %v4572
  %v4578 = vld [vmem:[%s5] sm:$0xf]
  %v4579 = vld [vmem:[%s5 + $0x4] sm:$0xf]
  %v4580 = vld [vmem:[#allocation2 + $0x10] sm:$0xff]
  %v4581 = vld [vmem:[#allocation2 + $0x18] sm:$0xff]
  %v4582 = vld [vmem:[#allocation2 + $0x30] sm:$0xff]
  %v4583 = vld [vmem:[#allocation2 + $0x38] sm:$0xff]
  %v4584 = vpack.c.bf16 %v4582, %v4580
  %v4585 = vpack.c.bf16 %v4583, %v4581
  %v4588 = vunpack.c.l.b16 %v4578
  %v4589 = vunpack.c.l.b16 %v4579
  %v4590 = vpack.c.b16 %v4589, %v4588
  %v4592 = vsel %vm43, %v4590, 0
  %4594 = vmatprep.subr.bf16.mxu0 0
  %4595 = vmatpush1.bf16.msra.mxu0 0
  %4596 = vmatprep.subr.bf16.mxu0 0
  %4597 = vmatpush1.bf16.msra.mxu0 0
  %4598 = vmatprep.subr.bf16.mxu0 0
  %4599 = vmatpush1.bf16.msra.mxu0 0
  %4600 = vmatprep.subr.bf16.mxu0 0
  %4601 = vmatpush1.bf16.msra.mxu0 0
  %4602 = vmatprep.subr.bf16.mxu0 0
  %4603 = vmatpush1.bf16.msra.mxu0 0
  %4604 = vmatprep.subr.bf16.mxu0 0
  %4605 = vmatpush1.bf16.msra.mxu0 0
  %4606 = vmatprep.subr.bf16.mxu0 0
  %4607 = vmatpush1.bf16.msra.mxu0 0
  %4608 = vmatprep.subr.bf16.mxu0 %v4585
  %4609 = vmatpush1.bf16.msra.mxu0 %v4584
  %4610 = vmatprep.subr.bf16.mxu0 0
  %4611 = vmatpush2.bf16.msra.mxu0 0
  %4612 = vmatprep.subr.bf16.mxu0 0
  %4613 = vmatpush2.bf16.msra.mxu0 0
  %4614 = vmatprep.subr.bf16.mxu0 0
  %4615 = vmatpush2.bf16.msra.mxu0 0
  %4616 = vmatprep.subr.bf16.mxu0 0
  %4617 = vmatpush2.bf16.msra.mxu0 0
  %4618 = vmatprep.subr.bf16.mxu0 0
  %4619 = vmatpush2.bf16.msra.mxu0 0
  %4620 = vmatprep.subr.bf16.mxu0 0
  %4621 = vmatpush2.bf16.msra.mxu0 0
  %4622 = vmatprep.subr.bf16.mxu0 0
  %4623 = vmatpush2.bf16.msra.mxu0 0
  %4624 = vmatprep.subr.bf16.mxu0 0
  %4625 = vmatpush2.bf16.msra.mxu0 0
  %4626 = vmatprep.mubr.bf16.mxu0 0
  %4627 = vmatmul.mubr.bf16.gmra.mxu0 %v4592
  %v4628 = vpop.f32.mrf.mxu0
  %v4629 = vadd.f32 0.0, %v4628
  %v4630 = vpop.f32.mrf.mxu0
  %v4631 = vadd.f32 0.0, %v4630
  %v4632 = vpop.f32.mrf.mxu0
  %v4633 = vadd.f32 0.0, %v4632
  %v4634 = vpop.f32.mrf.mxu0
  %v4635 = vadd.f32 0.0, %v4634
  %4636 = vdwg.mxu0
  %s4637 = scalar_lea.vmem %s6, 32
  %4638 = vst [vmem:[%s4637] sm:$0xff] %v4629
  %4639 = vst [vmem:[%s4637 + $0x8] sm:$0xff] %v4631
  %4640 = vst [vmem:[%s4637 + $0x10] sm:$0xff] %v4633
  %4641 = vst [vmem:[%s4637 + $0x18] sm:$0xff] %v4635
  // Predicated region
  $region26: #{deepest_block_forward.1} parent=0 // pred_check
    _
  $region27: #{deepest_block_forward.1} parent=0 // pred_check_branch
    %4643 = sbr.rel (0) target = $region29
  $region28: #{deepest_block_forward.1} parent=0 // pred_region
    _
  $region29: #{deepest_block_forward.1} parent=0 // pred_fallthru
    _
  // Predicated region
  $region30: #{deepest_block_forward.1} parent=0 // pred_check
    _
  $region31: #{deepest_block_forward.1} parent=0 // pred_check_branch
    %4645 = sbr.rel (0) target = $region33
  $region32: #{deepest_block_forward.1} parent=0 // pred_region
    _
  $region33: #{deepest_block_forward.1} parent=0 // pred_fallthru
    _

</llo_original>
